<compile_context>
chip_gen: v7x
topology: tpu7x:2x2x1
jax: 0.10.0
libtpu: 0.0.40
codegen_flags: <defaults>
</compile_context>

<pallas_src>
import functools
import numpy as np
import jax
import jax.numpy as jnp
from jax.experimental import pallas as pl
from jax.experimental.pallas import tpu as pltpu

CHUNK_T = 8  # timesteps per grid step (statically unrolled in the kernel; multiple of 8)


def _bilstm_chunk_kernel(gx_ref, whh_ref, len_ref,
                         out_ref, hn_ref, cn_ref,
                         o_sc, h_sc, c_sc, *, chunk_t, hd, batch, t_pad):
    """One (direction, time-chunk) grid step of the masked bidirectional LSTM recurrence."""
    is_bwd = pl.program_id(0) == 1          # grid axis 0: 0 = forward, 1 = backward
    c = pl.program_id(1)                    # grid axis 1: time chunk (sequential recurrence)

    @pl.when(c == 0)
    def _init():                            # new direction -> reset recurrent state
        h_sc[...] = jnp.zeros_like(h_sc)
        c_sc[...] = jnp.zeros_like(c_sc)

    gx_blk = gx_ref.at[0]                   # [chunk_t*batch, 4*hd] ref view (no load yet)
    w_hh = whh_ref[0]                       # [hd, 4*hd] per-direction recurrent weight
    lens = len_ref[...]                     # [batch, 1] int32 sequence lengths

    def sig(x):                             # sigmoid via tanh: one EUP op, no exp + divide
        return 0.5 * jnp.tanh(0.5 * x) + 0.5

    # Serial recurrence over the chunk, statically unrolled.  The backward stream arrives
    # pre-reversed in time, so the loop body is direction-independent except for the scalar
    # absolute-time index used by the length mask and the output slot.
    for j in range(chunk_t):
        p = c * chunk_t + j                               # position in recurrence order
        t_abs = jnp.where(is_bwd, t_pad - 1 - p, p)       # scalar select (scalar slot)
        mask = t_abs < lens                               # [batch, 1] bool, computed in-kernel
        gx = gx_blk[j * batch:(j + 1) * batch, :]         # sublane-aligned static slice
        h_prev = h_sc[...]
        c_prev = c_sc[...]
        gates = gx + jnp.dot(h_prev, w_hh, preferred_element_type=jnp.float32)
        i = sig(gates[:, 0 * hd:1 * hd])                  # PyTorch gate order (i, f, g, o)
        f = sig(gates[:, 1 * hd:2 * hd])
        g = jnp.tanh(gates[:, 2 * hd:3 * hd])
        o = sig(gates[:, 3 * hd:4 * hd])
        c_new = f * c_prev + i * g
        h_new = o * jnp.tanh(c_new)
        # pack_padded_sequence semantics: freeze state and zero output past the sequence length.
        h_sc[...] = jnp.where(mask, h_new, h_prev)
        c_sc[...] = jnp.where(mask, c_new, c_prev)
        h_out = jnp.where(mask, h_new, 0.0)

        # Store into the chunk scratch at the original-time slot (static indices, pl.when-gated)
        # so the final writeback is a single lane-dense full-block store.
        @pl.when(jnp.logical_not(is_bwd))
        def _store_f():
            o_sc[:, j, :] = h_out

        @pl.when(is_bwd)
        def _store_b():
            o_sc[:, chunk_t - 1 - j, :] = h_out

    out_ref[...] = o_sc[...]                # one unmasked full-block store per chunk

    @pl.when(c == pl.num_programs(1) - 1)   # final states written once, on the last chunk only
    def _final():
        hn_ref[0] = h_sc[...]
        cn_ref[0] = c_sc[...]


def init_encoder_params(key, src_vocab_size, hidden_size, padding_idx):
    """Deterministic synthetic parameters matching nn.Embedding + bidirectional nn.LSTM shapes."""
    Hd = hidden_size // 2
    ks = jax.random.split(key, 9)
    k = 1.0 / np.sqrt(Hd)

    def u(kk, shape):
        return jax.random.uniform(kk, shape, jnp.float32, -k, k)

    emb = jax.random.normal(ks[0], (src_vocab_size, hidden_size), jnp.float32) * 0.1
    emb = emb.at[padding_idx].set(0.0)     # padding_idx row is zero, as in nn.Embedding
    return dict(
        embedding=emb,
        w_ih_f=u(ks[1], (4 * Hd, hidden_size)),
        w_hh_f=u(ks[2], (4 * Hd, Hd)),
        b_ih_f=u(ks[3], (4 * Hd,)),
        b_hh_f=u(ks[4], (4 * Hd,)),
        w_ih_b=u(ks[5], (4 * Hd, hidden_size)),
        w_hh_b=u(ks[6], (4 * Hd, Hd)),
        b_ih_b=u(ks[7], (4 * Hd,)),
        b_hh_b=u(ks[8], (4 * Hd,)),
    )


@jax.jit
def encoder_forward(params, src, lengths):
    """src: [B, T] int32 token ids, lengths: [B] int32. Returns (enc_output [B,T,H], (h_n, c_n))."""
    B, T = src.shape
    H = params["embedding"].shape[1]
    Hd = H // 2
    assert Hd % 128 == 0 and CHUNK_T % 8 == 0      # lane / sublane alignment of all static slices
    C = pl.cdiv(T, CHUNK_T)
    T_pad = C * CHUNK_T
    B_pad = ((B + 7) // 8) * 8                     # pad batch to a sublane multiple

    # ---- XLA-side glue: index-level layout + the hoisted full-sequence input GEMM -------------
    src_tm = jnp.transpose(src, (1, 0)).astype(jnp.int32)                 # [T, B] (tiny int32)
    src_tm = jnp.pad(src_tm, ((0, T_pad - T), (0, B_pad - B)))            # [T_pad, B_pad]
    emb2d = jnp.take(params["embedding"], src_tm.reshape(T_pad * B_pad),
                     axis=0).astype(jnp.float32)                          # [T_pad*B_pad, H]
    # Embedding dropout is identity in eval mode.

    hi = jax.lax.Precision.HIGHEST
    gx_f = jnp.dot(emb2d, params["w_ih_f"].T.astype(jnp.float32), precision=hi) \
        + (params["b_ih_f"] + params["b_hh_f"]).astype(jnp.float32)       # [T_pad*B_pad, 4Hd]
    gx_b = jnp.dot(emb2d, params["w_ih_b"].T.astype(jnp.float32), precision=hi) \
        + (params["b_ih_b"] + params["b_hh_b"]).astype(jnp.float32)
    # Backward stream is fed time-reversed so the kernel recurrence always walks forward.
    gx_b = jnp.flip(gx_b.reshape(T_pad, B_pad, 4 * Hd), axis=0).reshape(T_pad * B_pad, 4 * Hd)
    gx_all = jnp.stack([gx_f, gx_b], axis=0)                              # [2, T_pad*B_pad, 4Hd]

    whh_s = jnp.stack([params["w_hh_f"].T, params["w_hh_b"].T]).astype(jnp.float32)  # [2, Hd, 4Hd]

    lens_pad = jnp.zeros((B_pad,), jnp.int32).at[:B].set(lengths.astype(jnp.int32))
    len_col = lens_pad.reshape(B_pad, 1)                                  # [B_pad, 1] int32

    def out_chunk(d, c):      # forward writes time-chunk c; backward (reversed stream) C-1-c
        return c + d * (C - 1 - 2 * c)

    out_pad, h_n, c_n = pl.pallas_call(
        functools.partial(_bilstm_chunk_kernel, chunk_t=CHUNK_T, hd=Hd,
                          batch=B_pad, t_pad=T_pad),
        out_shape=(jax.ShapeDtypeStruct((B_pad, T_pad, H), jnp.float32),
                   jax.ShapeDtypeStruct((2, B_pad, Hd), jnp.float32),
                   jax.ShapeDtypeStruct((2, B_pad, Hd), jnp.float32)),
        grid=(2, C),  # (direction, time-chunk)
        in_specs=[
            pl.BlockSpec((1, CHUNK_T * B_pad, 4 * Hd), lambda d, c: (d, c, 0)),       # gx chunk
            pl.BlockSpec((1, Hd, 4 * Hd), lambda d, c: (d, 0, 0)),                    # W_hh (dir)
            pl.BlockSpec((B_pad, 1), lambda d, c: (0, 0)),                            # lengths
        ],
        out_specs=(
            pl.BlockSpec((B_pad, CHUNK_T, Hd), lambda d, c: (0, out_chunk(d, c), d)),  # enc output
            pl.BlockSpec((1, B_pad, Hd), lambda d, c: (d, 0, 0)),                      # h_n
            pl.BlockSpec((1, B_pad, Hd), lambda d, c: (d, 0, 0)),                      # c_n
        ),
        scratch_shapes=[
            pltpu.VMEM((B_pad, CHUNK_T, Hd), jnp.float32),   # chunk outputs (original-time order)
            pltpu.VMEM((B_pad, Hd), jnp.float32),            # h state (persists across chunks)
            pltpu.VMEM((B_pad, Hd), jnp.float32),            # c state (persists across chunks)
        ],
        compiler_params=pltpu.CompilerParams(
            dimension_semantics=("parallel", "arbitrary")),  # v7x: directions split across TCs
    )(gx_all, whh_s, len_col)

    enc_output = out_pad[:B, :T, :]          # drop batch/time padding; batch-first [B, T, H]
    # Output dropout is identity in eval mode.
    return enc_output, (h_n[:, :B, :], c_n[:, :B, :])


def encoder_forward_ref(params, src, lengths):
    """Pure numpy reference of the same forward pass (for verification)."""
    emb_tab = np.asarray(params["embedding"])
    src = np.asarray(src)
    lengths = np.asarray(lengths)
    B, T = src.shape
    H = emb_tab.shape[1]
    Hd = H // 2
    emb = emb_tab[src]                                       # [B, T, H]

    def sigmoid(x):
        return 1.0 / (1.0 + np.exp(-x))

    def run_dir(wih, whh, bih, bhh, reverse):
        wih = np.asarray(wih); whh = np.asarray(whh)
        b = np.asarray(bih) + np.asarray(bhh)
        out = np.zeros((B, T, Hd), np.float32)
        h = np.zeros((B, Hd), np.float32)
        c = np.zeros((B, Hd), np.float32)
        steps = range(T - 1, -1, -1) if reverse else range(T)
        for t in steps:
            x_t = emb[:, t, :]
            gates = x_t @ wih.T + h @ whh.T + b
            i = sigmoid(gates[:, 0 * Hd:1 * Hd])
            f = sigmoid(gates[:, 1 * Hd:2 * Hd])
            g = np.tanh(gates[:, 2 * Hd:3 * Hd])
            o = sigmoid(gates[:, 3 * Hd:4 * Hd])
            c_new = f * c + i * g
            h_new = o * np.tanh(c_new)
            m = (lengths > t)[:, None]
            h = np.where(m, h_new, h)
            c = np.where(m, c_new, c)
            out[:, t, :] = np.where(m, h_new, 0.0)
        return out, h, c

    of, hf, cf = run_dir(params["w_ih_f"], params["w_hh_f"],
                         params["b_ih_f"], params["b_hh_f"], False)
    ob, hb, cb = run_dir(params["w_ih_b"], params["w_hh_b"],
                         params["b_ih_b"], params["b_hh_b"], True)
    enc = np.concatenate([of, ob], axis=-1)
    return enc, (np.stack([hf, hb]), np.stack([cf, cb]))


if __name__ == "__main__":
    key = jax.random.PRNGKey(0)
    # hidden=256 -> Hd=128 keeps gate / output lane slices vreg-aligned (still tiny overall).
    src_vocab_size, hidden_size, padding_idx = 16, 256, 0
    B, T = 2, 16

    kp, ks = jax.random.split(key)
    params = init_encoder_params(kp, src_vocab_size, hidden_size, padding_idx)

    lengths = jnp.array([16, 11], dtype=jnp.int32)
    src = jax.random.randint(ks, (B, T), 1, src_vocab_size, dtype=jnp.int32)
    # positions beyond length are padding tokens (padding_idx)
    src = jnp.where(jnp.arange(T)[None, :] < lengths[:, None], src, padding_idx)

    enc_output, (h_n, c_n) = encoder_forward(params, src, lengths)
    enc_output = jax.block_until_ready(enc_output)
    h_n = jax.block_until_ready(h_n)
    c_n = jax.block_until_ready(c_n)

    ref_out, (ref_h, ref_c) = encoder_forward_ref(params, src, lengths)
    np.testing.assert_allclose(np.asarray(enc_output), ref_out, atol=2e-3, rtol=2e-3)
    np.testing.assert_allclose(np.asarray(h_n), ref_h, atol=2e-3, rtol=2e-3)
    np.testing.assert_allclose(np.asarray(c_n), ref_c, atol=2e-3, rtol=2e-3)

    print("KERNEL_OK")
</pallas_src>

<mosaic_0001>
module attributes {stable_mosaic.version = 11 : i64} {
  func.func @_bilstm_chunk_kernel(%arg0: i32, %arg1: i32, %arg2: memref<1x64x512xf32, #tpu.memory_space<vmem>>, %arg3: memref<1x128x512xf32, #tpu.memory_space<vmem>>, %arg4: memref<8x1xi32, #tpu.memory_space<vmem>>, %arg5: memref<8x8x128xf32, #tpu.memory_space<vmem>>, %arg6: memref<1x8x128xf32, #tpu.memory_space<vmem>>, %arg7: memref<1x8x128xf32, #tpu.memory_space<vmem>>, %arg8: memref<8x8x128xf32, #tpu.memory_space<vmem>>, %arg9: memref<8x128xf32, #tpu.memory_space<vmem>>, %arg10: memref<8x128xf32, #tpu.memory_space<vmem>>) attributes {dimension_semantics = [#tpu.dimension_semantics<parallel>, #tpu.dimension_semantics<arbitrary>], iteration_bounds = array<i64: 2, 2>, scalar_prefetch = 0 : i64, scratch_operands = 3 : i64, tpu.core_type = #tpu.core_type<tc>, window_params = [{transform_indices = @transform_0, window_bounds = array<i64: 1, 64, 512>}, {transform_indices = @transform_1, window_bounds = array<i64: 1, 128, 512>}, {pipeline_mode = #tpu.pipeline_mode<synchronous>, transform_indices = @transform_2, window_bounds = array<i64: 8, 1>}, {transform_indices = @transform_3, window_bounds = array<i64: 8, 8, 128>}, {transform_indices = @transform_4, window_bounds = array<i64: 1, 8, 128>}, {transform_indices = @transform_5, window_bounds = array<i64: 1, 8, 128>}]} {
    %c1_i32 = arith.constant 1 : i32
    %0 = arith.cmpi eq, %arg0, %c1_i32 : i32
    %c0_i32 = arith.constant 0 : i32
    %1 = arith.cmpi eq, %arg1, %c0_i32 : i32
    %2 = arith.extui %1 : i1 to i32
    %c0_i32_0 = arith.constant 0 : i32
    %3 = arith.cmpi ne, %2, %c0_i32_0 : i32
    scf.if %3 {
      %cst_236 = arith.constant 0.000000e+00 : f32
      %500 = vector.broadcast %cst_236 : f32 to vector<8x128xf32>
      %c0_237 = arith.constant 0 : index
      %c0_238 = arith.constant 0 : index
      %501 = vector.load %arg9[%c0_237, %c0_238] : memref<8x128xf32, #tpu.memory_space<vmem>>, vector<8x128xf32>
      tpu.vector_store %arg9[%c0_237, %c0_238], %500 {strides = array<i32>} : memref<8x128xf32, #tpu.memory_space<vmem>>, vector<8x128xf32>,
      %cst_239 = arith.constant 0.000000e+00 : f32
      %502 = vector.broadcast %cst_239 : f32 to vector<8x128xf32>
      %c0_240 = arith.constant 0 : index
      %c0_241 = arith.constant 0 : index
      %503 = vector.load %arg10[%c0_240, %c0_241] : memref<8x128xf32, #tpu.memory_space<vmem>>, vector<8x128xf32>
      tpu.vector_store %arg10[%c0_240, %c0_241], %502 {strides = array<i32>} : memref<8x128xf32, #tpu.memory_space<vmem>>, vector<8x128xf32>,
    } else {
    }
    %c0 = arith.constant 0 : index
    %c0_1 = arith.constant 0 : index
    %c0_2 = arith.constant 0 : index
    %4 = vector.load %arg3[%c0, %c0_1, %c0_2] : memref<1x128x512xf32, #tpu.memory_space<vmem>>, vector<1x128x512xf32>
    %5 = vector.shape_cast %4 : vector<1x128x512xf32> to vector<128x512xf32>
    %c0_3 = arith.constant 0 : index
    %c0_4 = arith.constant 0 : index
    %6 = vector.load %arg4[%c0_3, %c0_4] : memref<8x1xi32, #tpu.memory_space<vmem>>, vector<8x1xi32>
    %c8_i32 = arith.constant 8 : i32
    %7 = arith.muli %arg1, %c8_i32 : i32
    %c0_i32_5 = arith.constant 0 : i32
    %8 = arith.addi %7, %c0_i32_5 : i32
    %c15_i32 = arith.constant 15 : i32
    %9 = arith.subi %c15_i32, %8 : i32
    %10 = arith.select %0, %9, %8 : i32
    %11 = vector.broadcast %10 : i32 to vector<8x1xi32>
    %12 = arith.cmpi slt, %11, %6 : vector<8x1xi32>
    %c0_i32_6 = arith.constant 0 : i32
    %c0_i32_7 = arith.constant 0 : i32
    %c0_i32_8 = arith.constant 0 : i32
    %13 = tpu.memref_slice %arg2[%c0_i32_6, %c0_i32_7, %c0_i32_8] : memref<1x64x512xf32, #tpu.memory_space<vmem>> -> memref<1x64x512xf32, #tpu.memory_space<vmem>>
    %14 = tpu.memref_squeeze %13 : memref<1x64x512xf32, #tpu.memory_space<vmem>> -> memref<64x512xf32, #tpu.memory_space<vmem>>
    %c0_9 = arith.constant 0 : index
    %c0_10 = arith.constant 0 : index
    %15 = vector.load %14[%c0_9, %c0_10] : memref<64x512xf32, #tpu.memory_space<vmem>>, vector<8x512xf32>
    %c0_11 = arith.constant 0 : index
    %c0_12 = arith.constant 0 : index
    %16 = vector.load %arg9[%c0_11, %c0_12] : memref<8x128xf32, #tpu.memory_space<vmem>>, vector<8x128xf32>
    %c0_13 = arith.constant 0 : index
    %c0_14 = arith.constant 0 : index
    %17 = vector.load %arg10[%c0_13, %c0_14] : memref<8x128xf32, #tpu.memory_space<vmem>>, vector<8x128xf32>
    %cst = arith.constant dense<0.000000e+00> : vector<8x512xf32>
    %18 = tpu.matmul %16, %5, %cst {dimension_numbers = #tpu.dot_dimension_numbers<[1], [0], [0], [1], [0, 0, 1, 1], [], []>} : vector<8x128xf32>, vector<128x512xf32>, vector<8x512xf32> -> vector<8x512xf32>
    %19 = arith.addf %15, %18 : vector<8x512xf32>
    %20 = vector.extract_strided_slice %19 {offsets = [0, 0], sizes = [8, 128], strides = [1, 1]} : vector<8x512xf32> to vector<8x128xf32>
    %cst_15 = arith.constant 5.000000e-01 : f32
    %21 = vector.broadcast %cst_15 : f32 to vector<8x128xf32>
    %22 = arith.mulf %21, %20 : vector<8x128xf32>
    %23 = math.tanh %22 : vector<8x128xf32>
    %cst_16 = arith.constant 5.000000e-01 : f32
    %24 = vector.broadcast %cst_16 : f32 to vector<8x128xf32>
    %25 = arith.mulf %24, %23 : vector<8x128xf32>
    %cst_17 = arith.constant 5.000000e-01 : f32
    %26 = vector.broadcast %cst_17 : f32 to vector<8x128xf32>
    %27 = arith.addf %25, %26 : vector<8x128xf32>
    %28 = vector.extract_strided_slice %19 {offsets = [0, 128], sizes = [8, 128], strides = [1, 1]} : vector<8x512xf32> to vector<8x128xf32>
    %cst_18 = arith.constant 5.000000e-01 : f32
    %29 = vector.broadcast %cst_18 : f32 to vector<8x128xf32>
    %30 = arith.mulf %29, %28 : vector<8x128xf32>
    %31 = math.tanh %30 : vector<8x128xf32>
    %cst_19 = arith.constant 5.000000e-01 : f32
    %32 = vector.broadcast %cst_19 : f32 to vector<8x128xf32>
    %33 = arith.mulf %32, %31 : vector<8x128xf32>
    %cst_20 = arith.constant 5.000000e-01 : f32
    %34 = vector.broadcast %cst_20 : f32 to vector<8x128xf32>
    %35 = arith.addf %33, %34 : vector<8x128xf32>
    %36 = vector.extract_strided_slice %19 {offsets = [0, 256], sizes = [8, 128], strides = [1, 1]} : vector<8x512xf32> to vector<8x128xf32>
    %37 = math.tanh %36 : vector<8x128xf32>
    %38 = vector.extract_strided_slice %19 {offsets = [0, 384], sizes = [8, 128], strides = [1, 1]} : vector<8x512xf32> to vector<8x128xf32>
    %cst_21 = arith.constant 5.000000e-01 : f32
    %39 = vector.broadcast %cst_21 : f32 to vector<8x128xf32>
    %40 = arith.mulf %39, %38 : vector<8x128xf32>
    %41 = math.tanh %40 : vector<8x128xf32>
    %cst_22 = arith.constant 5.000000e-01 : f32
    %42 = vector.broadcast %cst_22 : f32 to vector<8x128xf32>
    %43 = arith.mulf %42, %41 : vector<8x128xf32>
    %cst_23 = arith.constant 5.000000e-01 : f32
    %44 = vector.broadcast %cst_23 : f32 to vector<8x128xf32>
    %45 = arith.addf %43, %44 : vector<8x128xf32>
    %46 = arith.mulf %35, %17 : vector<8x128xf32>
    %47 = arith.mulf %27, %37 : vector<8x128xf32>
    %48 = arith.addf %46, %47 : vector<8x128xf32>
    %49 = math.tanh %48 : vector<8x128xf32>
    %50 = arith.mulf %45, %49 : vector<8x128xf32>
    %51 = vector.shape_cast %12 : vector<8x1xi1> to vector<8x1xi1>
    %52 = vector.broadcast %51 : vector<8x1xi1> to vector<8x128xi1>
    %53 = arith.select %52, %50, %16 : vector<8x128xi1>, vector<8x128xf32>
    %c0_24 = arith.constant 0 : index
    %c0_25 = arith.constant 0 : index
    %54 = vector.load %arg9[%c0_24, %c0_25] : memref<8x128xf32, #tpu.memory_space<vmem>>, vector<8x128xf32>
    tpu.vector_store %arg9[%c0_24, %c0_25], %53 {strides = array<i32>} : memref<8x128xf32, #tpu.memory_space<vmem>>, vector<8x128xf32>,
    %55 = vector.shape_cast %12 : vector<8x1xi1> to vector<8x1xi1>
    %56 = vector.broadcast %55 : vector<8x1xi1> to vector<8x128xi1>
    %57 = arith.select %56, %48, %17 : vector<8x128xi1>, vector<8x128xf32>
    %c0_26 = arith.constant 0 : index
    %c0_27 = arith.constant 0 : index
    %58 = vector.load %arg10[%c0_26, %c0_27] : memref<8x128xf32, #tpu.memory_space<vmem>>, vector<8x128xf32>
    tpu.vector_store %arg10[%c0_26, %c0_27], %57 {strides = array<i32>} : memref<8x128xf32, #tpu.memory_space<vmem>>, vector<8x128xf32>,
    %cst_28 = arith.constant 0.000000e+00 : f32
    %59 = vector.shape_cast %12 : vector<8x1xi1> to vector<8x1xi1>
    %60 = vector.broadcast %59 : vector<8x1xi1> to vector<8x128xi1>
    %61 = vector.broadcast %cst_28 : f32 to vector<8x128xf32>
    %62 = arith.select %60, %50, %61 : vector<8x128xi1>, vector<8x128xf32>
    %true = arith.constant true
    %63 = arith.xori %0, %true : i1
    %64 = arith.extui %63 : i1 to i32
    %c0_i32_29 = arith.constant 0 : i32
    %65 = arith.cmpi ne, %64, %c0_i32_29 : i32
    scf.if %65 {
      %c0_236 = arith.constant 0 : index
      %c0_237 = arith.constant 0 : index
      %c0_238 = arith.constant 0 : index
      %500 = vector.load %arg8[%c0_236, %c0_237, %c0_238] : memref<8x8x128xf32, #tpu.memory_space<vmem>>, vector<8x1x128xf32>
      %501 = vector.shape_cast %500 : vector<8x1x128xf32> to vector<8x128xf32>
      %502 = vector.shape_cast %62 : vector<8x128xf32> to vector<8x1x128xf32>
      tpu.vector_store %arg8[%c0_236, %c0_237, %c0_238], %502 {strides = array<i32>} : memref<8x8x128xf32, #tpu.memory_space<vmem>>, vector<8x1x128xf32>,
    } else {
    }
    %66 = arith.extui %0 : i1 to i32
    %c0_i32_30 = arith.constant 0 : i32
    %67 = arith.cmpi ne, %66, %c0_i32_30 : i32
    scf.if %67 {
      %c0_236 = arith.constant 0 : index
      %c7 = arith.constant 7 : index
      %c0_237 = arith.constant 0 : index
      %500 = vector.load %arg8[%c0_236, %c7, %c0_237] : memref<8x8x128xf32, #tpu.memory_space<vmem>>, vector<8x1x128xf32>
      %501 = vector.shape_cast %500 : vector<8x1x128xf32> to vector<8x128xf32>
      %502 = vector.shape_cast %62 : vector<8x128xf32> to vector<8x1x128xf32>
      tpu.vector_store %arg8[%c0_236, %c7, %c0_237], %502 {strides = array<i32>} : memref<8x8x128xf32, #tpu.memory_space<vmem>>, vector<8x1x128xf32>,
    } else {
    }
    %c8_i32_31 = arith.constant 8 : i32
    %68 = arith.muli %arg1, %c8_i32_31 : i32
    %c1_i32_32 = arith.constant 1 : i32
    %69 = arith.addi %68, %c1_i32_32 : i32
    %c15_i32_33 = arith.constant 15 : i32
    %70 = arith.subi %c15_i32_33, %69 : i32
    %71 = arith.select %0, %70, %69 : i32
    %72 = vector.broadcast %71 : i32 to vector<8x1xi32>
    %73 = arith.cmpi slt, %72, %6 : vector<8x1xi32>
    %c0_i32_34 = arith.constant 0 : i32
    %c0_i32_35 = arith.constant 0 : i32
    %c0_i32_36 = arith.constant 0 : i32
    %74 = tpu.memref_slice %arg2[%c0_i32_34, %c0_i32_35, %c0_i32_36] : memref<1x64x512xf32, #tpu.memory_space<vmem>> -> memref<1x64x512xf32, #tpu.memory_space<vmem>>
    %75 = tpu.memref_squeeze %74 : memref<1x64x512xf32, #tpu.memory_space<vmem>> -> memref<64x512xf32, #tpu.memory_space<vmem>>
    %c8 = arith.constant 8 : index
    %c0_37 = arith.constant 0 : index
    %76 = vector.load %75[%c8, %c0_37] : memref<64x512xf32, #tpu.memory_space<vmem>>, vector<8x512xf32>
    %c0_38 = arith.constant 0 : index
    %c0_39 = arith.constant 0 : index
    %77 = vector.load %arg9[%c0_38, %c0_39] : memref<8x128xf32, #tpu.memory_space<vmem>>, vector<8x128xf32>
    %c0_40 = arith.constant 0 : index
    %c0_41 = arith.constant 0 : index
    %78 = vector.load %arg10[%c0_40, %c0_41] : memref<8x128xf32, #tpu.memory_space<vmem>>, vector<8x128xf32>
    %cst_42 = arith.constant dense<0.000000e+00> : vector<8x512xf32>
    %79 = tpu.matmul %77, %5, %cst_42 {dimension_numbers = #tpu.dot_dimension_numbers<[1], [0], [0], [1], [0, 0, 1, 1], [], []>} : vector<8x128xf32>, vector<128x512xf32>, vector<8x512xf32> -> vector<8x512xf32>
    %80 = arith.addf %76, %79 : vector<8x512xf32>
    %81 = vector.extract_strided_slice %80 {offsets = [0, 0], sizes = [8, 128], strides = [1, 1]} : vector<8x512xf32> to vector<8x128xf32>
    %cst_43 = arith.constant 5.000000e-01 : f32
    %82 = vector.broadcast %cst_43 : f32 to vector<8x128xf32>
    %83 = arith.mulf %82, %81 : vector<8x128xf32>
    %84 = math.tanh %83 : vector<8x128xf32>
    %cst_44 = arith.constant 5.000000e-01 : f32
    %85 = vector.broadcast %cst_44 : f32 to vector<8x128xf32>
    %86 = arith.mulf %85, %84 : vector<8x128xf32>
    %cst_45 = arith.constant 5.000000e-01 : f32
    %87 = vector.broadcast %cst_45 : f32 to vector<8x128xf32>
    %88 = arith.addf %86, %87 : vector<8x128xf32>
    %89 = vector.extract_strided_slice %80 {offsets = [0, 128], sizes = [8, 128], strides = [1, 1]} : vector<8x512xf32> to vector<8x128xf32>
    %cst_46 = arith.constant 5.000000e-01 : f32
    %90 = vector.broadcast %cst_46 : f32 to vector<8x128xf32>
    %91 = arith.mulf %90, %89 : vector<8x128xf32>
    %92 = math.tanh %91 : vector<8x128xf32>
    %cst_47 = arith.constant 5.000000e-01 : f32
    %93 = vector.broadcast %cst_47 : f32 to vector<8x128xf32>
    %94 = arith.mulf %93, %92 : vector<8x128xf32>
    %cst_48 = arith.constant 5.000000e-01 : f32
    %95 = vector.broadcast %cst_48 : f32 to vector<8x128xf32>
    %96 = arith.addf %94, %95 : vector<8x128xf32>
    %97 = vector.extract_strided_slice %80 {offsets = [0, 256], sizes = [8, 128], strides = [1, 1]} : vector<8x512xf32> to vector<8x128xf32>
    %98 = math.tanh %97 : vector<8x128xf32>
    %99 = vector.extract_strided_slice %80 {offsets = [0, 384], sizes = [8, 128], strides = [1, 1]} : vector<8x512xf32> to vector<8x128xf32>
    %cst_49 = arith.constant 5.000000e-01 : f32
    %100 = vector.broadcast %cst_49 : f32 to vector<8x128xf32>
    %101 = arith.mulf %100, %99 : vector<8x128xf32>
    %102 = math.tanh %101 : vector<8x128xf32>
    %cst_50 = arith.constant 5.000000e-01 : f32
    %103 = vector.broadcast %cst_50 : f32 to vector<8x128xf32>
    %104 = arith.mulf %103, %102 : vector<8x128xf32>
    %cst_51 = arith.constant 5.000000e-01 : f32
    %105 = vector.broadcast %cst_51 : f32 to vector<8x128xf32>
    %106 = arith.addf %104, %105 : vector<8x128xf32>
    %107 = arith.mulf %96, %78 : vector<8x128xf32>
    %108 = arith.mulf %88, %98 : vector<8x128xf32>
    %109 = arith.addf %107, %108 : vector<8x128xf32>
    %110 = math.tanh %109 : vector<8x128xf32>
    %111 = arith.mulf %106, %110 : vector<8x128xf32>
    %112 = vector.shape_cast %73 : vector<8x1xi1> to vector<8x1xi1>
    %113 = vector.broadcast %112 : vector<8x1xi1> to vector<8x128xi1>
    %114 = arith.select %113, %111, %77 : vector<8x128xi1>, vector<8x128xf32>
    %c0_52 = arith.constant 0 : index
    %c0_53 = arith.constant 0 : index
    %115 = vector.load %arg9[%c0_52, %c0_53] : memref<8x128xf32, #tpu.memory_space<vmem>>, vector<8x128xf32>
    tpu.vector_store %arg9[%c0_52, %c0_53], %114 {strides = array<i32>} : memref<8x128xf32, #tpu.memory_space<vmem>>, vector<8x128xf32>,
    %116 = vector.shape_cast %73 : vector<8x1xi1> to vector<8x1xi1>
    %117 = vector.broadcast %116 : vector<8x1xi1> to vector<8x128xi1>
    %118 = arith.select %117, %109, %78 : vector<8x128xi1>, vector<8x128xf32>
    %c0_54 = arith.constant 0 : index
    %c0_55 = arith.constant 0 : index
    %119 = vector.load %arg10[%c0_54, %c0_55] : memref<8x128xf32, #tpu.memory_space<vmem>>, vector<8x128xf32>
    tpu.vector_store %arg10[%c0_54, %c0_55], %118 {strides = array<i32>} : memref<8x128xf32, #tpu.memory_space<vmem>>, vector<8x128xf32>,
    %cst_56 = arith.constant 0.000000e+00 : f32
    %120 = vector.shape_cast %73 : vector<8x1xi1> to vector<8x1xi1>
    %121 = vector.broadcast %120 : vector<8x1xi1> to vector<8x128xi1>
    %122 = vector.broadcast %cst_56 : f32 to vector<8x128xf32>
    %123 = arith.select %121, %111, %122 : vector<8x128xi1>, vector<8x128xf32>
    %true_57 = arith.constant true
    %124 = arith.xori %0, %true_57 : i1
    %125 = arith.extui %124 : i1 to i32
    %c0_i32_58 = arith.constant 0 : i32
    %126 = arith.cmpi ne, %125, %c0_i32_58 : i32
    scf.if %126 {
      %c0_236 = arith.constant 0 : index
      %c1 = arith.constant 1 : index
      %c0_237 = arith.constant 0 : index
      %500 = vector.load %arg8[%c0_236, %c1, %c0_237] : memref<8x8x128xf32, #tpu.memory_space<vmem>>, vector<8x1x128xf32>
      %501 = vector.shape_cast %500 : vector<8x1x128xf32> to vector<8x128xf32>
      %502 = vector.shape_cast %123 : vector<8x128xf32> to vector<8x1x128xf32>
      tpu.vector_store %arg8[%c0_236, %c1, %c0_237], %502 {strides = array<i32>} : memref<8x8x128xf32, #tpu.memory_space<vmem>>, vector<8x1x128xf32>,
    } else {
    }
    %127 = arith.extui %0 : i1 to i32
    %c0_i32_59 = arith.constant 0 : i32
    %128 = arith.cmpi ne, %127, %c0_i32_59 : i32
    scf.if %128 {
      %c0_236 = arith.constant 0 : index
      %c6 = arith.constant 6 : index
      %c0_237 = arith.constant 0 : index
      %500 = vector.load %arg8[%c0_236, %c6, %c0_237] : memref<8x8x128xf32, #tpu.memory_space<vmem>>, vector<8x1x128xf32>
      %501 = vector.shape_cast %500 : vector<8x1x128xf32> to vector<8x128xf32>
      %502 = vector.shape_cast %123 : vector<8x128xf32> to vector<8x1x128xf32>
      tpu.vector_store %arg8[%c0_236, %c6, %c0_237], %502 {strides = array<i32>} : memref<8x8x128xf32, #tpu.memory_space<vmem>>, vector<8x1x128xf32>,
    } else {
    }
    %c8_i32_60 = arith.constant 8 : i32
    %129 = arith.muli %arg1, %c8_i32_60 : i32
    %c2_i32 = arith.constant 2 : i32
    %130 = arith.addi %129, %c2_i32 : i32
    %c15_i32_61 = arith.constant 15 : i32
    %131 = arith.subi %c15_i32_61, %130 : i32
    %132 = arith.select %0, %131, %130 : i32
    %133 = vector.broadcast %132 : i32 to vector<8x1xi32>
    %134 = arith.cmpi slt, %133, %6 : vector<8x1xi32>
    %c0_i32_62 = arith.constant 0 : i32
    %c0_i32_63 = arith.constant 0 : i32
    %c0_i32_64 = arith.constant 0 : i32
    %135 = tpu.memref_slice %arg2[%c0_i32_62, %c0_i32_63, %c0_i32_64] : memref<1x64x512xf32, #tpu.memory_space<vmem>> -> memref<1x64x512xf32, #tpu.memory_space<vmem>>
    %136 = tpu.memref_squeeze %135 : memref<1x64x512xf32, #tpu.memory_space<vmem>> -> memref<64x512xf32, #tpu.memory_space<vmem>>
    %c16 = arith.constant 16 : index
    %c0_65 = arith.constant 0 : index
    %137 = vector.load %136[%c16, %c0_65] : memref<64x512xf32, #tpu.memory_space<vmem>>, vector<8x512xf32>
    %c0_66 = arith.constant 0 : index
    %c0_67 = arith.constant 0 : index
    %138 = vector.load %arg9[%c0_66, %c0_67] : memref<8x128xf32, #tpu.memory_space<vmem>>, vector<8x128xf32>
    %c0_68 = arith.constant 0 : index
    %c0_69 = arith.constant 0 : index
    %139 = vector.load %arg10[%c0_68, %c0_69] : memref<8x128xf32, #tpu.memory_space<vmem>>, vector<8x128xf32>
    %cst_70 = arith.constant dense<0.000000e+00> : vector<8x512xf32>
    %140 = tpu.matmul %138, %5, %cst_70 {dimension_numbers = #tpu.dot_dimension_numbers<[1], [0], [0], [1], [0, 0, 1, 1], [], []>} : vector<8x128xf32>, vector<128x512xf32>, vector<8x512xf32> -> vector<8x512xf32>
    %141 = arith.addf %137, %140 : vector<8x512xf32>
    %142 = vector.extract_strided_slice %141 {offsets = [0, 0], sizes = [8, 128], strides = [1, 1]} : vector<8x512xf32> to vector<8x128xf32>
    %cst_71 = arith.constant 5.000000e-01 : f32
    %143 = vector.broadcast %cst_71 : f32 to vector<8x128xf32>
    %144 = arith.mulf %143, %142 : vector<8x128xf32>
    %145 = math.tanh %144 : vector<8x128xf32>
    %cst_72 = arith.constant 5.000000e-01 : f32
    %146 = vector.broadcast %cst_72 : f32 to vector<8x128xf32>
    %147 = arith.mulf %146, %145 : vector<8x128xf32>
    %cst_73 = arith.constant 5.000000e-01 : f32
    %148 = vector.broadcast %cst_73 : f32 to vector<8x128xf32>
    %149 = arith.addf %147, %148 : vector<8x128xf32>
    %150 = vector.extract_strided_slice %141 {offsets = [0, 128], sizes = [8, 128], strides = [1, 1]} : vector<8x512xf32> to vector<8x128xf32>
    %cst_74 = arith.constant 5.000000e-01 : f32
    %151 = vector.broadcast %cst_74 : f32 to vector<8x128xf32>
    %152 = arith.mulf %151, %150 : vector<8x128xf32>
    %153 = math.tanh %152 : vector<8x128xf32>
    %cst_75 = arith.constant 5.000000e-01 : f32
    %154 = vector.broadcast %cst_75 : f32 to vector<8x128xf32>
    %155 = arith.mulf %154, %153 : vector<8x128xf32>
    %cst_76 = arith.constant 5.000000e-01 : f32
    %156 = vector.broadcast %cst_76 : f32 to vector<8x128xf32>
    %157 = arith.addf %155, %156 : vector<8x128xf32>
    %158 = vector.extract_strided_slice %141 {offsets = [0, 256], sizes = [8, 128], strides = [1, 1]} : vector<8x512xf32> to vector<8x128xf32>
    %159 = math.tanh %158 : vector<8x128xf32>
    %160 = vector.extract_strided_slice %141 {offsets = [0, 384], sizes = [8, 128], strides = [1, 1]} : vector<8x512xf32> to vector<8x128xf32>
    %cst_77 = arith.constant 5.000000e-01 : f32
    %161 = vector.broadcast %cst_77 : f32 to vector<8x128xf32>
    %162 = arith.mulf %161, %160 : vector<8x128xf32>
    %163 = math.tanh %162 : vector<8x128xf32>
    %cst_78 = arith.constant 5.000000e-01 : f32
    %164 = vector.broadcast %cst_78 : f32 to vector<8x128xf32>
    %165 = arith.mulf %164, %163 : vector<8x128xf32>
    %cst_79 = arith.constant 5.000000e-01 : f32
    %166 = vector.broadcast %cst_79 : f32 to vector<8x128xf32>
    %167 = arith.addf %165, %166 : vector<8x128xf32>
    %168 = arith.mulf %157, %139 : vector<8x128xf32>
    %169 = arith.mulf %149, %159 : vector<8x128xf32>
    %170 = arith.addf %168, %169 : vector<8x128xf32>
    %171 = math.tanh %170 : vector<8x128xf32>
    %172 = arith.mulf %167, %171 : vector<8x128xf32>
    %173 = vector.shape_cast %134 : vector<8x1xi1> to vector<8x1xi1>
    %174 = vector.broadcast %173 : vector<8x1xi1> to vector<8x128xi1>
    %175 = arith.select %174, %172, %138 : vector<8x128xi1>, vector<8x128xf32>
    %c0_80 = arith.constant 0 : index
    %c0_81 = arith.constant 0 : index
    %176 = vector.load %arg9[%c0_80, %c0_81] : memref<8x128xf32, #tpu.memory_space<vmem>>, vector<8x128xf32>
    tpu.vector_store %arg9[%c0_80, %c0_81], %175 {strides = array<i32>} : memref<8x128xf32, #tpu.memory_space<vmem>>, vector<8x128xf32>,
    %177 = vector.shape_cast %134 : vector<8x1xi1> to vector<8x1xi1>
    %178 = vector.broadcast %177 : vector<8x1xi1> to vector<8x128xi1>
    %179 = arith.select %178, %170, %139 : vector<8x128xi1>, vector<8x128xf32>
    %c0_82 = arith.constant 0 : index
    %c0_83 = arith.constant 0 : index
    %180 = vector.load %arg10[%c0_82, %c0_83] : memref<8x128xf32, #tpu.memory_space<vmem>>, vector<8x128xf32>
    tpu.vector_store %arg10[%c0_82, %c0_83], %179 {strides = array<i32>} : memref<8x128xf32, #tpu.memory_space<vmem>>, vector<8x128xf32>,
    %cst_84 = arith.constant 0.000000e+00 : f32
    %181 = vector.shape_cast %134 : vector<8x1xi1> to vector<8x1xi1>
    %182 = vector.broadcast %181 : vector<8x1xi1> to vector<8x128xi1>
    %183 = vector.broadcast %cst_84 : f32 to vector<8x128xf32>
    %184 = arith.select %182, %172, %183 : vector<8x128xi1>, vector<8x128xf32>
    %true_85 = arith.constant true
    %185 = arith.xori %0, %true_85 : i1
    %186 = arith.extui %185 : i1 to i32
    %c0_i32_86 = arith.constant 0 : i32
    %187 = arith.cmpi ne, %186, %c0_i32_86 : i32
    scf.if %187 {
      %c0_236 = arith.constant 0 : index
      %c2 = arith.constant 2 : index
      %c0_237 = arith.constant 0 : index
      %500 = vector.load %arg8[%c0_236, %c2, %c0_237] : memref<8x8x128xf32, #tpu.memory_space<vmem>>, vector<8x1x128xf32>
      %501 = vector.shape_cast %500 : vector<8x1x128xf32> to vector<8x128xf32>
      %502 = vector.shape_cast %184 : vector<8x128xf32> to vector<8x1x128xf32>
      tpu.vector_store %arg8[%c0_236, %c2, %c0_237], %502 {strides = array<i32>} : memref<8x8x128xf32, #tpu.memory_space<vmem>>, vector<8x1x128xf32>,
    } else {
    }
    %188 = arith.extui %0 : i1 to i32
    %c0_i32_87 = arith.constant 0 : i32
    %189 = arith.cmpi ne, %188, %c0_i32_87 : i32
    scf.if %189 {
      %c0_236 = arith.constant 0 : index
      %c5 = arith.constant 5 : index
      %c0_237 = arith.constant 0 : index
      %500 = vector.load %arg8[%c0_236, %c5, %c0_237] : memref<8x8x128xf32, #tpu.memory_space<vmem>>, vector<8x1x128xf32>
      %501 = vector.shape_cast %500 : vector<8x1x128xf32> to vector<8x128xf32>
      %502 = vector.shape_cast %184 : vector<8x128xf32> to vector<8x1x128xf32>
      tpu.vector_store %arg8[%c0_236, %c5, %c0_237], %502 {strides = array<i32>} : memref<8x8x128xf32, #tpu.memory_space<vmem>>, vector<8x1x128xf32>,
    } else {
    }
    %c8_i32_88 = arith.constant 8 : i32
    %190 = arith.muli %arg1, %c8_i32_88 : i32
    %c3_i32 = arith.constant 3 : i32
    %191 = arith.addi %190, %c3_i32 : i32
    %c15_i32_89 = arith.constant 15 : i32
    %192 = arith.subi %c15_i32_89, %191 : i32
    %193 = arith.select %0, %192, %191 : i32
    %194 = vector.broadcast %193 : i32 to vector<8x1xi32>
    %195 = arith.cmpi slt, %194, %6 : vector<8x1xi32>
    %c0_i32_90 = arith.constant 0 : i32
    %c0_i32_91 = arith.constant 0 : i32
    %c0_i32_92 = arith.constant 0 : i32
    %196 = tpu.memref_slice %arg2[%c0_i32_90, %c0_i32_91, %c0_i32_92] : memref<1x64x512xf32, #tpu.memory_space<vmem>> -> memref<1x64x512xf32, #tpu.memory_space<vmem>>
    %197 = tpu.memref_squeeze %196 : memref<1x64x512xf32, #tpu.memory_space<vmem>> -> memref<64x512xf32, #tpu.memory_space<vmem>>
    %c24 = arith.constant 24 : index
    %c0_93 = arith.constant 0 : index
    %198 = vector.load %197[%c24, %c0_93] : memref<64x512xf32, #tpu.memory_space<vmem>>, vector<8x512xf32>
    %c0_94 = arith.constant 0 : index
    %c0_95 = arith.constant 0 : index
    %199 = vector.load %arg9[%c0_94, %c0_95] : memref<8x128xf32, #tpu.memory_space<vmem>>, vector<8x128xf32>
    %c0_96 = arith.constant 0 : index
    %c0_97 = arith.constant 0 : index
    %200 = vector.load %arg10[%c0_96, %c0_97] : memref<8x128xf32, #tpu.memory_space<vmem>>, vector<8x128xf32>
    %cst_98 = arith.constant dense<0.000000e+00> : vector<8x512xf32>
    %201 = tpu.matmul %199, %5, %cst_98 {dimension_numbers = #tpu.dot_dimension_numbers<[1], [0], [0], [1], [0, 0, 1, 1], [], []>} : vector<8x128xf32>, vector<128x512xf32>, vector<8x512xf32> -> vector<8x512xf32>
    %202 = arith.addf %198, %201 : vector<8x512xf32>
    %203 = vector.extract_strided_slice %202 {offsets = [0, 0], sizes = [8, 128], strides = [1, 1]} : vector<8x512xf32> to vector<8x128xf32>
    %cst_99 = arith.constant 5.000000e-01 : f32
    %204 = vector.broadcast %cst_99 : f32 to vector<8x128xf32>
    %205 = arith.mulf %204, %203 : vector<8x128xf32>
    %206 = math.tanh %205 : vector<8x128xf32>
    %cst_100 = arith.constant 5.000000e-01 : f32
    %207 = vector.broadcast %cst_100 : f32 to vector<8x128xf32>
    %208 = arith.mulf %207, %206 : vector<8x128xf32>
    %cst_101 = arith.constant 5.000000e-01 : f32
    %209 = vector.broadcast %cst_101 : f32 to vector<8x128xf32>
    %210 = arith.addf %208, %209 : vector<8x128xf32>
    %211 = vector.extract_strided_slice %202 {offsets = [0, 128], sizes = [8, 128], strides = [1, 1]} : vector<8x512xf32> to vector<8x128xf32>
    %cst_102 = arith.constant 5.000000e-01 : f32
    %212 = vector.broadcast %cst_102 : f32 to vector<8x128xf32>
    %213 = arith.mulf %212, %211 : vector<8x128xf32>
    %214 = math.tanh %213 : vector<8x128xf32>
    %cst_103 = arith.constant 5.000000e-01 : f32
    %215 = vector.broadcast %cst_103 : f32 to vector<8x128xf32>
    %216 = arith.mulf %215, %214 : vector<8x128xf32>
    %cst_104 = arith.constant 5.000000e-01 : f32
    %217 = vector.broadcast %cst_104 : f32 to vector<8x128xf32>
    %218 = arith.addf %216, %217 : vector<8x128xf32>
    %219 = vector.extract_strided_slice %202 {offsets = [0, 256], sizes = [8, 128], strides = [1, 1]} : vector<8x512xf32> to vector<8x128xf32>
    %220 = math.tanh %219 : vector<8x128xf32>
    %221 = vector.extract_strided_slice %202 {offsets = [0, 384], sizes = [8, 128], strides = [1, 1]} : vector<8x512xf32> to vector<8x128xf32>
    %cst_105 = arith.constant 5.000000e-01 : f32
    %222 = vector.broadcast %cst_105 : f32 to vector<8x128xf32>
    %223 = arith.mulf %222, %221 : vector<8x128xf32>
    %224 = math.tanh %223 : vector<8x128xf32>
    %cst_106 = arith.constant 5.000000e-01 : f32
    %225 = vector.broadcast %cst_106 : f32 to vector<8x128xf32>
    %226 = arith.mulf %225, %224 : vector<8x128xf32>
    %cst_107 = arith.constant 5.000000e-01 : f32
    %227 = vector.broadcast %cst_107 : f32 to vector<8x128xf32>
    %228 = arith.addf %226, %227 : vector<8x128xf32>
    %229 = arith.mulf %218, %200 : vector<8x128xf32>
    %230 = arith.mulf %210, %220 : vector<8x128xf32>
    %231 = arith.addf %229, %230 : vector<8x128xf32>
    %232 = math.tanh %231 : vector<8x128xf32>
    %233 = arith.mulf %228, %232 : vector<8x128xf32>
    %234 = vector.shape_cast %195 : vector<8x1xi1> to vector<8x1xi1>
    %235 = vector.broadcast %234 : vector<8x1xi1> to vector<8x128xi1>
    %236 = arith.select %235, %233, %199 : vector<8x128xi1>, vector<8x128xf32>
    %c0_108 = arith.constant 0 : index
    %c0_109 = arith.constant 0 : index
    %237 = vector.load %arg9[%c0_108, %c0_109] : memref<8x128xf32, #tpu.memory_space<vmem>>, vector<8x128xf32>
    tpu.vector_store %arg9[%c0_108, %c0_109], %236 {strides = array<i32>} : memref<8x128xf32, #tpu.memory_space<vmem>>, vector<8x128xf32>,
    %238 = vector.shape_cast %195 : vector<8x1xi1> to vector<8x1xi1>
    %239 = vector.broadcast %238 : vector<8x1xi1> to vector<8x128xi1>
    %240 = arith.select %239, %231, %200 : vector<8x128xi1>, vector<8x128xf32>
    %c0_110 = arith.constant 0 : index
    %c0_111 = arith.constant 0 : index
    %241 = vector.load %arg10[%c0_110, %c0_111] : memref<8x128xf32, #tpu.memory_space<vmem>>, vector<8x128xf32>
    tpu.vector_store %arg10[%c0_110, %c0_111], %240 {strides = array<i32>} : memref<8x128xf32, #tpu.memory_space<vmem>>, vector<8x128xf32>,
    %cst_112 = arith.constant 0.000000e+00 : f32
    %242 = vector.shape_cast %195 : vector<8x1xi1> to vector<8x1xi1>
    %243 = vector.broadcast %242 : vector<8x1xi1> to vector<8x128xi1>
    %244 = vector.broadcast %cst_112 : f32 to vector<8x128xf32>
    %245 = arith.select %243, %233, %244 : vector<8x128xi1>, vector<8x128xf32>
    %true_113 = arith.constant true
    %246 = arith.xori %0, %true_113 : i1
    %247 = arith.extui %246 : i1 to i32
    %c0_i32_114 = arith.constant 0 : i32
    %248 = arith.cmpi ne, %247, %c0_i32_114 : i32
    scf.if %248 {
      %c0_236 = arith.constant 0 : index
      %c3 = arith.constant 3 : index
      %c0_237 = arith.constant 0 : index
      %500 = vector.load %arg8[%c0_236, %c3, %c0_237] : memref<8x8x128xf32, #tpu.memory_space<vmem>>, vector<8x1x128xf32>
      %501 = vector.shape_cast %500 : vector<8x1x128xf32> to vector<8x128xf32>
      %502 = vector.shape_cast %245 : vector<8x128xf32> to vector<8x1x128xf32>
      tpu.vector_store %arg8[%c0_236, %c3, %c0_237], %502 {strides = array<i32>} : memref<8x8x128xf32, #tpu.memory_space<vmem>>, vector<8x1x128xf32>,
    } else {
    }
    %249 = arith.extui %0 : i1 to i32
    %c0_i32_115 = arith.constant 0 : i32
    %250 = arith.cmpi ne, %249, %c0_i32_115 : i32
    scf.if %250 {
      %c0_236 = arith.constant 0 : index
      %c4 = arith.constant 4 : index
      %c0_237 = arith.constant 0 : index
      %500 = vector.load %arg8[%c0_236, %c4, %c0_237] : memref<8x8x128xf32, #tpu.memory_space<vmem>>, vector<8x1x128xf32>
      %501 = vector.shape_cast %500 : vector<8x1x128xf32> to vector<8x128xf32>
      %502 = vector.shape_cast %245 : vector<8x128xf32> to vector<8x1x128xf32>
      tpu.vector_store %arg8[%c0_236, %c4, %c0_237], %502 {strides = array<i32>} : memref<8x8x128xf32, #tpu.memory_space<vmem>>, vector<8x1x128xf32>,
    } else {
    }
    %c8_i32_116 = arith.constant 8 : i32
    %251 = arith.muli %arg1, %c8_i32_116 : i32
    %c4_i32 = arith.constant 4 : i32
    %252 = arith.addi %251, %c4_i32 : i32
    %c15_i32_117 = arith.constant 15 : i32
    %253 = arith.subi %c15_i32_117, %252 : i32
    %254 = arith.select %0, %253, %252 : i32
    %255 = vector.broadcast %254 : i32 to vector<8x1xi32>
    %256 = arith.cmpi slt, %255, %6 : vector<8x1xi32>
    %c0_i32_118 = arith.constant 0 : i32
    %c0_i32_119 = arith.constant 0 : i32
    %c0_i32_120 = arith.constant 0 : i32
    %257 = tpu.memref_slice %arg2[%c0_i32_118, %c0_i32_119, %c0_i32_120] : memref<1x64x512xf32, #tpu.memory_space<vmem>> -> memref<1x64x512xf32, #tpu.memory_space<vmem>>
    %258 = tpu.memref_squeeze %257 : memref<1x64x512xf32, #tpu.memory_space<vmem>> -> memref<64x512xf32, #tpu.memory_space<vmem>>
    %c32 = arith.constant 32 : index
    %c0_121 = arith.constant 0 : index
    %259 = vector.load %258[%c32, %c0_121] : memref<64x512xf32, #tpu.memory_space<vmem>>, vector<8x512xf32>
    %c0_122 = arith.constant 0 : index
    %c0_123 = arith.constant 0 : index
    %260 = vector.load %arg9[%c0_122, %c0_123] : memref<8x128xf32, #tpu.memory_space<vmem>>, vector<8x128xf32>
    %c0_124 = arith.constant 0 : index
    %c0_125 = arith.constant 0 : index
    %261 = vector.load %arg10[%c0_124, %c0_125] : memref<8x128xf32, #tpu.memory_space<vmem>>, vector<8x128xf32>
    %cst_126 = arith.constant dense<0.000000e+00> : vector<8x512xf32>
    %262 = tpu.matmul %260, %5, %cst_126 {dimension_numbers = #tpu.dot_dimension_numbers<[1], [0], [0], [1], [0, 0, 1, 1], [], []>} : vector<8x128xf32>, vector<128x512xf32>, vector<8x512xf32> -> vector<8x512xf32>
    %263 = arith.addf %259, %262 : vector<8x512xf32>
    %264 = vector.extract_strided_slice %263 {offsets = [0, 0], sizes = [8, 128], strides = [1, 1]} : vector<8x512xf32> to vector<8x128xf32>
    %cst_127 = arith.constant 5.000000e-01 : f32
    %265 = vector.broadcast %cst_127 : f32 to vector<8x128xf32>
    %266 = arith.mulf %265, %264 : vector<8x128xf32>
    %267 = math.tanh %266 : vector<8x128xf32>
    %cst_128 = arith.constant 5.000000e-01 : f32
    %268 = vector.broadcast %cst_128 : f32 to vector<8x128xf32>
    %269 = arith.mulf %268, %267 : vector<8x128xf32>
    %cst_129 = arith.constant 5.000000e-01 : f32
    %270 = vector.broadcast %cst_129 : f32 to vector<8x128xf32>
    %271 = arith.addf %269, %270 : vector<8x128xf32>
    %272 = vector.extract_strided_slice %263 {offsets = [0, 128], sizes = [8, 128], strides = [1, 1]} : vector<8x512xf32> to vector<8x128xf32>
    %cst_130 = arith.constant 5.000000e-01 : f32
    %273 = vector.broadcast %cst_130 : f32 to vector<8x128xf32>
    %274 = arith.mulf %273, %272 : vector<8x128xf32>
    %275 = math.tanh %274 : vector<8x128xf32>
    %cst_131 = arith.constant 5.000000e-01 : f32
    %276 = vector.broadcast %cst_131 : f32 to vector<8x128xf32>
    %277 = arith.mulf %276, %275 : vector<8x128xf32>
    %cst_132 = arith.constant 5.000000e-01 : f32
    %278 = vector.broadcast %cst_132 : f32 to vector<8x128xf32>
    %279 = arith.addf %277, %278 : vector<8x128xf32>
    %280 = vector.extract_strided_slice %263 {offsets = [0, 256], sizes = [8, 128], strides = [1, 1]} : vector<8x512xf32> to vector<8x128xf32>
    %281 = math.tanh %280 : vector<8x128xf32>
    %282 = vector.extract_strided_slice %263 {offsets = [0, 384], sizes = [8, 128], strides = [1, 1]} : vector<8x512xf32> to vector<8x128xf32>
    %cst_133 = arith.constant 5.000000e-01 : f32
    %283 = vector.broadcast %cst_133 : f32 to vector<8x128xf32>
    %284 = arith.mulf %283, %282 : vector<8x128xf32>
    %285 = math.tanh %284 : vector<8x128xf32>
    %cst_134 = arith.constant 5.000000e-01 : f32
    %286 = vector.broadcast %cst_134 : f32 to vector<8x128xf32>
    %287 = arith.mulf %286, %285 : vector<8x128xf32>
    %cst_135 = arith.constant 5.000000e-01 : f32
    %288 = vector.broadcast %cst_135 : f32 to vector<8x128xf32>
    %289 = arith.addf %287, %288 : vector<8x128xf32>
    %290 = arith.mulf %279, %261 : vector<8x128xf32>
    %291 = arith.mulf %271, %281 : vector<8x128xf32>
    %292 = arith.addf %290, %291 : vector<8x128xf32>
    %293 = math.tanh %292 : vector<8x128xf32>
    %294 = arith.mulf %289, %293 : vector<8x128xf32>
    %295 = vector.shape_cast %256 : vector<8x1xi1> to vector<8x1xi1>
    %296 = vector.broadcast %295 : vector<8x1xi1> to vector<8x128xi1>
    %297 = arith.select %296, %294, %260 : vector<8x128xi1>, vector<8x128xf32>
    %c0_136 = arith.constant 0 : index
    %c0_137 = arith.constant 0 : index
    %298 = vector.load %arg9[%c0_136, %c0_137] : memref<8x128xf32, #tpu.memory_space<vmem>>, vector<8x128xf32>
    tpu.vector_store %arg9[%c0_136, %c0_137], %297 {strides = array<i32>} : memref<8x128xf32, #tpu.memory_space<vmem>>, vector<8x128xf32>,
    %299 = vector.shape_cast %256 : vector<8x1xi1> to vector<8x1xi1>
    %300 = vector.broadcast %299 : vector<8x1xi1> to vector<8x128xi1>
    %301 = arith.select %300, %292, %261 : vector<8x128xi1>, vector<8x128xf32>
    %c0_138 = arith.constant 0 : index
    %c0_139 = arith.constant 0 : index
    %302 = vector.load %arg10[%c0_138, %c0_139] : memref<8x128xf32, #tpu.memory_space<vmem>>, vector<8x128xf32>
    tpu.vector_store %arg10[%c0_138, %c0_139], %301 {strides = array<i32>} : memref<8x128xf32, #tpu.memory_space<vmem>>, vector<8x128xf32>,
    %cst_140 = arith.constant 0.000000e+00 : f32
    %303 = vector.shape_cast %256 : vector<8x1xi1> to vector<8x1xi1>
    %304 = vector.broadcast %303 : vector<8x1xi1> to vector<8x128xi1>
    %305 = vector.broadcast %cst_140 : f32 to vector<8x128xf32>
    %306 = arith.select %304, %294, %305 : vector<8x128xi1>, vector<8x128xf32>
    %true_141 = arith.constant true
    %307 = arith.xori %0, %true_141 : i1
    %308 = arith.extui %307 : i1 to i32
    %c0_i32_142 = arith.constant 0 : i32
    %309 = arith.cmpi ne, %308, %c0_i32_142 : i32
    scf.if %309 {
      %c0_236 = arith.constant 0 : index
      %c4 = arith.constant 4 : index
      %c0_237 = arith.constant 0 : index
      %500 = vector.load %arg8[%c0_236, %c4, %c0_237] : memref<8x8x128xf32, #tpu.memory_space<vmem>>, vector<8x1x128xf32>
      %501 = vector.shape_cast %500 : vector<8x1x128xf32> to vector<8x128xf32>
      %502 = vector.shape_cast %306 : vector<8x128xf32> to vector<8x1x128xf32>
      tpu.vector_store %arg8[%c0_236, %c4, %c0_237], %502 {strides = array<i32>} : memref<8x8x128xf32, #tpu.memory_space<vmem>>, vector<8x1x128xf32>,
    } else {
    }
    %310 = arith.extui %0 : i1 to i32
    %c0_i32_143 = arith.constant 0 : i32
    %311 = arith.cmpi ne, %310, %c0_i32_143 : i32
    scf.if %311 {
      %c0_236 = arith.constant 0 : index
      %c3 = arith.constant 3 : index
      %c0_237 = arith.constant 0 : index
      %500 = vector.load %arg8[%c0_236, %c3, %c0_237] : memref<8x8x128xf32, #tpu.memory_space<vmem>>, vector<8x1x128xf32>
      %501 = vector.shape_cast %500 : vector<8x1x128xf32> to vector<8x128xf32>
      %502 = vector.shape_cast %306 : vector<8x128xf32> to vector<8x1x128xf32>
      tpu.vector_store %arg8[%c0_236, %c3, %c0_237], %502 {strides = array<i32>} : memref<8x8x128xf32, #tpu.memory_space<vmem>>, vector<8x1x128xf32>,
    } else {
    }
    %c8_i32_144 = arith.constant 8 : i32
    %312 = arith.muli %arg1, %c8_i32_144 : i32
    %c5_i32 = arith.constant 5 : i32
    %313 = arith.addi %312, %c5_i32 : i32
    %c15_i32_145 = arith.constant 15 : i32
    %314 = arith.subi %c15_i32_145, %313 : i32
    %315 = arith.select %0, %314, %313 : i32
    %316 = vector.broadcast %315 : i32 to vector<8x1xi32>
    %317 = arith.cmpi slt, %316, %6 : vector<8x1xi32>
    %c0_i32_146 = arith.constant 0 : i32
    %c0_i32_147 = arith.constant 0 : i32
    %c0_i32_148 = arith.constant 0 : i32
    %318 = tpu.memref_slice %arg2[%c0_i32_146, %c0_i32_147, %c0_i32_148] : memref<1x64x512xf32, #tpu.memory_space<vmem>> -> memref<1x64x512xf32, #tpu.memory_space<vmem>>
    %319 = tpu.memref_squeeze %318 : memref<1x64x512xf32, #tpu.memory_space<vmem>> -> memref<64x512xf32, #tpu.memory_space<vmem>>
    %c40 = arith.constant 40 : index
    %c0_149 = arith.constant 0 : index
    %320 = vector.load %319[%c40, %c0_149] : memref<64x512xf32, #tpu.memory_space<vmem>>, vector<8x512xf32>
    %c0_150 = arith.constant 0 : index
    %c0_151 = arith.constant 0 : index
    %321 = vector.load %arg9[%c0_150, %c0_151] : memref<8x128xf32, #tpu.memory_space<vmem>>, vector<8x128xf32>
    %c0_152 = arith.constant 0 : index
    %c0_153 = arith.constant 0 : index
    %322 = vector.load %arg10[%c0_152, %c0_153] : memref<8x128xf32, #tpu.memory_space<vmem>>, vector<8x128xf32>
    %cst_154 = arith.constant dense<0.000000e+00> : vector<8x512xf32>
    %323 = tpu.matmul %321, %5, %cst_154 {dimension_numbers = #tpu.dot_dimension_numbers<[1], [0], [0], [1], [0, 0, 1, 1], [], []>} : vector<8x128xf32>, vector<128x512xf32>, vector<8x512xf32> -> vector<8x512xf32>
    %324 = arith.addf %320, %323 : vector<8x512xf32>
    %325 = vector.extract_strided_slice %324 {offsets = [0, 0], sizes = [8, 128], strides = [1, 1]} : vector<8x512xf32> to vector<8x128xf32>
    %cst_155 = arith.constant 5.000000e-01 : f32
    %326 = vector.broadcast %cst_155 : f32 to vector<8x128xf32>
    %327 = arith.mulf %326, %325 : vector<8x128xf32>
    %328 = math.tanh %327 : vector<8x128xf32>
    %cst_156 = arith.constant 5.000000e-01 : f32
    %329 = vector.broadcast %cst_156 : f32 to vector<8x128xf32>
    %330 = arith.mulf %329, %328 : vector<8x128xf32>
    %cst_157 = arith.constant 5.000000e-01 : f32
    %331 = vector.broadcast %cst_157 : f32 to vector<8x128xf32>
    %332 = arith.addf %330, %331 : vector<8x128xf32>
    %333 = vector.extract_strided_slice %324 {offsets = [0, 128], sizes = [8, 128], strides = [1, 1]} : vector<8x512xf32> to vector<8x128xf32>
    %cst_158 = arith.constant 5.000000e-01 : f32
    %334 = vector.broadcast %cst_158 : f32 to vector<8x128xf32>
    %335 = arith.mulf %334, %333 : vector<8x128xf32>
    %336 = math.tanh %335 : vector<8x128xf32>
    %cst_159 = arith.constant 5.000000e-01 : f32
    %337 = vector.broadcast %cst_159 : f32 to vector<8x128xf32>
    %338 = arith.mulf %337, %336 : vector<8x128xf32>
    %cst_160 = arith.constant 5.000000e-01 : f32
    %339 = vector.broadcast %cst_160 : f32 to vector<8x128xf32>
    %340 = arith.addf %338, %339 : vector<8x128xf32>
    %341 = vector.extract_strided_slice %324 {offsets = [0, 256], sizes = [8, 128], strides = [1, 1]} : vector<8x512xf32> to vector<8x128xf32>
    %342 = math.tanh %341 : vector<8x128xf32>
    %343 = vector.extract_strided_slice %324 {offsets = [0, 384], sizes = [8, 128], strides = [1, 1]} : vector<8x512xf32> to vector<8x128xf32>
    %cst_161 = arith.constant 5.000000e-01 : f32
    %344 = vector.broadcast %cst_161 : f32 to vector<8x128xf32>
    %345 = arith.mulf %344, %343 : vector<8x128xf32>
    %346 = math.tanh %345 : vector<8x128xf32>
    %cst_162 = arith.constant 5.000000e-01 : f32
    %347 = vector.broadcast %cst_162 : f32 to vector<8x128xf32>
    %348 = arith.mulf %347, %346 : vector<8x128xf32>
    %cst_163 = arith.constant 5.000000e-01 : f32
    %349 = vector.broadcast %cst_163 : f32 to vector<8x128xf32>
    %350 = arith.addf %348, %349 : vector<8x128xf32>
    %351 = arith.mulf %340, %322 : vector<8x128xf32>
    %352 = arith.mulf %332, %342 : vector<8x128xf32>
    %353 = arith.addf %351, %352 : vector<8x128xf32>
    %354 = math.tanh %353 : vector<8x128xf32>
    %355 = arith.mulf %350, %354 : vector<8x128xf32>
    %356 = vector.shape_cast %317 : vector<8x1xi1> to vector<8x1xi1>
    %357 = vector.broadcast %356 : vector<8x1xi1> to vector<8x128xi1>
    %358 = arith.select %357, %355, %321 : vector<8x128xi1>, vector<8x128xf32>
    %c0_164 = arith.constant 0 : index
    %c0_165 = arith.constant 0 : index
    %359 = vector.load %arg9[%c0_164, %c0_165] : memref<8x128xf32, #tpu.memory_space<vmem>>, vector<8x128xf32>
    tpu.vector_store %arg9[%c0_164, %c0_165], %358 {strides = array<i32>} : memref<8x128xf32, #tpu.memory_space<vmem>>, vector<8x128xf32>,
    %360 = vector.shape_cast %317 : vector<8x1xi1> to vector<8x1xi1>
    %361 = vector.broadcast %360 : vector<8x1xi1> to vector<8x128xi1>
    %362 = arith.select %361, %353, %322 : vector<8x128xi1>, vector<8x128xf32>
    %c0_166 = arith.constant 0 : index
    %c0_167 = arith.constant 0 : index
    %363 = vector.load %arg10[%c0_166, %c0_167] : memref<8x128xf32, #tpu.memory_space<vmem>>, vector<8x128xf32>
    tpu.vector_store %arg10[%c0_166, %c0_167], %362 {strides = array<i32>} : memref<8x128xf32, #tpu.memory_space<vmem>>, vector<8x128xf32>,
    %cst_168 = arith.constant 0.000000e+00 : f32
    %364 = vector.shape_cast %317 : vector<8x1xi1> to vector<8x1xi1>
    %365 = vector.broadcast %364 : vector<8x1xi1> to vector<8x128xi1>
    %366 = vector.broadcast %cst_168 : f32 to vector<8x128xf32>
    %367 = arith.select %365, %355, %366 : vector<8x128xi1>, vector<8x128xf32>
    %true_169 = arith.constant true
    %368 = arith.xori %0, %true_169 : i1
    %369 = arith.extui %368 : i1 to i32
    %c0_i32_170 = arith.constant 0 : i32
    %370 = arith.cmpi ne, %369, %c0_i32_170 : i32
    scf.if %370 {
      %c0_236 = arith.constant 0 : index
      %c5 = arith.constant 5 : index
      %c0_237 = arith.constant 0 : index
      %500 = vector.load %arg8[%c0_236, %c5, %c0_237] : memref<8x8x128xf32, #tpu.memory_space<vmem>>, vector<8x1x128xf32>
      %501 = vector.shape_cast %500 : vector<8x1x128xf32> to vector<8x128xf32>
      %502 = vector.shape_cast %367 : vector<8x128xf32> to vector<8x1x128xf32>
      tpu.vector_store %arg8[%c0_236, %c5, %c0_237], %502 {strides = array<i32>} : memref<8x8x128xf32, #tpu.memory_space<vmem>>, vector<8x1x128xf32>,
    } else {
    }
    %371 = arith.extui %0 : i1 to i32
    %c0_i32_171 = arith.constant 0 : i32
    %372 = arith.cmpi ne, %371, %c0_i32_171 : i32
    scf.if %372 {
      %c0_236 = arith.constant 0 : index
      %c2 = arith.constant 2 : index
      %c0_237 = arith.constant 0 : index
      %500 = vector.load %arg8[%c0_236, %c2, %c0_237] : memref<8x8x128xf32, #tpu.memory_space<vmem>>, vector<8x1x128xf32>
      %501 = vector.shape_cast %500 : vector<8x1x128xf32> to vector<8x128xf32>
      %502 = vector.shape_cast %367 : vector<8x128xf32> to vector<8x1x128xf32>
      tpu.vector_store %arg8[%c0_236, %c2, %c0_237], %502 {strides = array<i32>} : memref<8x8x128xf32, #tpu.memory_space<vmem>>, vector<8x1x128xf32>,
    } else {
    }
    %c8_i32_172 = arith.constant 8 : i32
    %373 = arith.muli %arg1, %c8_i32_172 : i32
    %c6_i32 = arith.constant 6 : i32
    %374 = arith.addi %373, %c6_i32 : i32
    %c15_i32_173 = arith.constant 15 : i32
    %375 = arith.subi %c15_i32_173, %374 : i32
    %376 = arith.select %0, %375, %374 : i32
    %377 = vector.broadcast %376 : i32 to vector<8x1xi32>
    %378 = arith.cmpi slt, %377, %6 : vector<8x1xi32>
    %c0_i32_174 = arith.constant 0 : i32
    %c0_i32_175 = arith.constant 0 : i32
    %c0_i32_176 = arith.constant 0 : i32
    %379 = tpu.memref_slice %arg2[%c0_i32_174, %c0_i32_175, %c0_i32_176] : memref<1x64x512xf32, #tpu.memory_space<vmem>> -> memref<1x64x512xf32, #tpu.memory_space<vmem>>
    %380 = tpu.memref_squeeze %379 : memref<1x64x512xf32, #tpu.memory_space<vmem>> -> memref<64x512xf32, #tpu.memory_space<vmem>>
    %c48 = arith.constant 48 : index
    %c0_177 = arith.constant 0 : index
    %381 = vector.load %380[%c48, %c0_177] : memref<64x512xf32, #tpu.memory_space<vmem>>, vector<8x512xf32>
    %c0_178 = arith.constant 0 : index
    %c0_179 = arith.constant 0 : index
    %382 = vector.load %arg9[%c0_178, %c0_179] : memref<8x128xf32, #tpu.memory_space<vmem>>, vector<8x128xf32>
    %c0_180 = arith.constant 0 : index
    %c0_181 = arith.constant 0 : index
    %383 = vector.load %arg10[%c0_180, %c0_181] : memref<8x128xf32, #tpu.memory_space<vmem>>, vector<8x128xf32>
    %cst_182 = arith.constant dense<0.000000e+00> : vector<8x512xf32>
    %384 = tpu.matmul %382, %5, %cst_182 {dimension_numbers = #tpu.dot_dimension_numbers<[1], [0], [0], [1], [0, 0, 1, 1], [], []>} : vector<8x128xf32>, vector<128x512xf32>, vector<8x512xf32> -> vector<8x512xf32>
    %385 = arith.addf %381, %384 : vector<8x512xf32>
    %386 = vector.extract_strided_slice %385 {offsets = [0, 0], sizes = [8, 128], strides = [1, 1]} : vector<8x512xf32> to vector<8x128xf32>
    %cst_183 = arith.constant 5.000000e-01 : f32
    %387 = vector.broadcast %cst_183 : f32 to vector<8x128xf32>
    %388 = arith.mulf %387, %386 : vector<8x128xf32>
    %389 = math.tanh %388 : vector<8x128xf32>
    %cst_184 = arith.constant 5.000000e-01 : f32
    %390 = vector.broadcast %cst_184 : f32 to vector<8x128xf32>
    %391 = arith.mulf %390, %389 : vector<8x128xf32>
    %cst_185 = arith.constant 5.000000e-01 : f32
    %392 = vector.broadcast %cst_185 : f32 to vector<8x128xf32>
    %393 = arith.addf %391, %392 : vector<8x128xf32>
    %394 = vector.extract_strided_slice %385 {offsets = [0, 128], sizes = [8, 128], strides = [1, 1]} : vector<8x512xf32> to vector<8x128xf32>
    %cst_186 = arith.constant 5.000000e-01 : f32
    %395 = vector.broadcast %cst_186 : f32 to vector<8x128xf32>
    %396 = arith.mulf %395, %394 : vector<8x128xf32>
    %397 = math.tanh %396 : vector<8x128xf32>
    %cst_187 = arith.constant 5.000000e-01 : f32
    %398 = vector.broadcast %cst_187 : f32 to vector<8x128xf32>
    %399 = arith.mulf %398, %397 : vector<8x128xf32>
    %cst_188 = arith.constant 5.000000e-01 : f32
    %400 = vector.broadcast %cst_188 : f32 to vector<8x128xf32>
    %401 = arith.addf %399, %400 : vector<8x128xf32>
    %402 = vector.extract_strided_slice %385 {offsets = [0, 256], sizes = [8, 128], strides = [1, 1]} : vector<8x512xf32> to vector<8x128xf32>
    %403 = math.tanh %402 : vector<8x128xf32>
    %404 = vector.extract_strided_slice %385 {offsets = [0, 384], sizes = [8, 128], strides = [1, 1]} : vector<8x512xf32> to vector<8x128xf32>
    %cst_189 = arith.constant 5.000000e-01 : f32
    %405 = vector.broadcast %cst_189 : f32 to vector<8x128xf32>
    %406 = arith.mulf %405, %404 : vector<8x128xf32>
    %407 = math.tanh %406 : vector<8x128xf32>
    %cst_190 = arith.constant 5.000000e-01 : f32
    %408 = vector.broadcast %cst_190 : f32 to vector<8x128xf32>
    %409 = arith.mulf %408, %407 : vector<8x128xf32>
    %cst_191 = arith.constant 5.000000e-01 : f32
    %410 = vector.broadcast %cst_191 : f32 to vector<8x128xf32>
    %411 = arith.addf %409, %410 : vector<8x128xf32>
    %412 = arith.mulf %401, %383 : vector<8x128xf32>
    %413 = arith.mulf %393, %403 : vector<8x128xf32>
    %414 = arith.addf %412, %413 : vector<8x128xf32>
    %415 = math.tanh %414 : vector<8x128xf32>
    %416 = arith.mulf %411, %415 : vector<8x128xf32>
    %417 = vector.shape_cast %378 : vector<8x1xi1> to vector<8x1xi1>
    %418 = vector.broadcast %417 : vector<8x1xi1> to vector<8x128xi1>
    %419 = arith.select %418, %416, %382 : vector<8x128xi1>, vector<8x128xf32>
    %c0_192 = arith.constant 0 : index
    %c0_193 = arith.constant 0 : index
    %420 = vector.load %arg9[%c0_192, %c0_193] : memref<8x128xf32, #tpu.memory_space<vmem>>, vector<8x128xf32>
    tpu.vector_store %arg9[%c0_192, %c0_193], %419 {strides = array<i32>} : memref<8x128xf32, #tpu.memory_space<vmem>>, vector<8x128xf32>,
    %421 = vector.shape_cast %378 : vector<8x1xi1> to vector<8x1xi1>
    %422 = vector.broadcast %421 : vector<8x1xi1> to vector<8x128xi1>
    %423 = arith.select %422, %414, %383 : vector<8x128xi1>, vector<8x128xf32>
    %c0_194 = arith.constant 0 : index
    %c0_195 = arith.constant 0 : index
    %424 = vector.load %arg10[%c0_194, %c0_195] : memref<8x128xf32, #tpu.memory_space<vmem>>, vector<8x128xf32>
    tpu.vector_store %arg10[%c0_194, %c0_195], %423 {strides = array<i32>} : memref<8x128xf32, #tpu.memory_space<vmem>>, vector<8x128xf32>,
    %cst_196 = arith.constant 0.000000e+00 : f32
    %425 = vector.shape_cast %378 : vector<8x1xi1> to vector<8x1xi1>
    %426 = vector.broadcast %425 : vector<8x1xi1> to vector<8x128xi1>
    %427 = vector.broadcast %cst_196 : f32 to vector<8x128xf32>
    %428 = arith.select %426, %416, %427 : vector<8x128xi1>, vector<8x128xf32>
    %true_197 = arith.constant true
    %429 = arith.xori %0, %true_197 : i1
    %430 = arith.extui %429 : i1 to i32
    %c0_i32_198 = arith.constant 0 : i32
    %431 = arith.cmpi ne, %430, %c0_i32_198 : i32
    scf.if %431 {
      %c0_236 = arith.constant 0 : index
      %c6 = arith.constant 6 : index
      %c0_237 = arith.constant 0 : index
      %500 = vector.load %arg8[%c0_236, %c6, %c0_237] : memref<8x8x128xf32, #tpu.memory_space<vmem>>, vector<8x1x128xf32>
      %501 = vector.shape_cast %500 : vector<8x1x128xf32> to vector<8x128xf32>
      %502 = vector.shape_cast %428 : vector<8x128xf32> to vector<8x1x128xf32>
      tpu.vector_store %arg8[%c0_236, %c6, %c0_237], %502 {strides = array<i32>} : memref<8x8x128xf32, #tpu.memory_space<vmem>>, vector<8x1x128xf32>,
    } else {
    }
    %432 = arith.extui %0 : i1 to i32
    %c0_i32_199 = arith.constant 0 : i32
    %433 = arith.cmpi ne, %432, %c0_i32_199 : i32
    scf.if %433 {
      %c0_236 = arith.constant 0 : index
      %c1 = arith.constant 1 : index
      %c0_237 = arith.constant 0 : index
      %500 = vector.load %arg8[%c0_236, %c1, %c0_237] : memref<8x8x128xf32, #tpu.memory_space<vmem>>, vector<8x1x128xf32>
      %501 = vector.shape_cast %500 : vector<8x1x128xf32> to vector<8x128xf32>
      %502 = vector.shape_cast %428 : vector<8x128xf32> to vector<8x1x128xf32>
      tpu.vector_store %arg8[%c0_236, %c1, %c0_237], %502 {strides = array<i32>} : memref<8x8x128xf32, #tpu.memory_space<vmem>>, vector<8x1x128xf32>,
    } else {
    }
    %c8_i32_200 = arith.constant 8 : i32
    %434 = arith.muli %arg1, %c8_i32_200 : i32
    %c7_i32 = arith.constant 7 : i32
    %435 = arith.addi %434, %c7_i32 : i32
    %c15_i32_201 = arith.constant 15 : i32
    %436 = arith.subi %c15_i32_201, %435 : i32
    %437 = arith.select %0, %436, %435 : i32
    %438 = vector.broadcast %437 : i32 to vector<8x1xi32>
    %439 = arith.cmpi slt, %438, %6 : vector<8x1xi32>
    %c0_i32_202 = arith.constant 0 : i32
    %c0_i32_203 = arith.constant 0 : i32
    %c0_i32_204 = arith.constant 0 : i32
    %440 = tpu.memref_slice %arg2[%c0_i32_202, %c0_i32_203, %c0_i32_204] : memref<1x64x512xf32, #tpu.memory_space<vmem>> -> memref<1x64x512xf32, #tpu.memory_space<vmem>>
    %441 = tpu.memref_squeeze %440 : memref<1x64x512xf32, #tpu.memory_space<vmem>> -> memref<64x512xf32, #tpu.memory_space<vmem>>
    %c56 = arith.constant 56 : index
    %c0_205 = arith.constant 0 : index
    %442 = vector.load %441[%c56, %c0_205] : memref<64x512xf32, #tpu.memory_space<vmem>>, vector<8x512xf32>
    %c0_206 = arith.constant 0 : index
    %c0_207 = arith.constant 0 : index
    %443 = vector.load %arg9[%c0_206, %c0_207] : memref<8x128xf32, #tpu.memory_space<vmem>>, vector<8x128xf32>
    %c0_208 = arith.constant 0 : index
    %c0_209 = arith.constant 0 : index
    %444 = vector.load %arg10[%c0_208, %c0_209] : memref<8x128xf32, #tpu.memory_space<vmem>>, vector<8x128xf32>
    %cst_210 = arith.constant dense<0.000000e+00> : vector<8x512xf32>
    %445 = tpu.matmul %443, %5, %cst_210 {dimension_numbers = #tpu.dot_dimension_numbers<[1], [0], [0], [1], [0, 0, 1, 1], [], []>} : vector<8x128xf32>, vector<128x512xf32>, vector<8x512xf32> -> vector<8x512xf32>
    %446 = arith.addf %442, %445 : vector<8x512xf32>
    %447 = vector.extract_strided_slice %446 {offsets = [0, 0], sizes = [8, 128], strides = [1, 1]} : vector<8x512xf32> to vector<8x128xf32>
    %cst_211 = arith.constant 5.000000e-01 : f32
    %448 = vector.broadcast %cst_211 : f32 to vector<8x128xf32>
    %449 = arith.mulf %448, %447 : vector<8x128xf32>
    %450 = math.tanh %449 : vector<8x128xf32>
    %cst_212 = arith.constant 5.000000e-01 : f32
    %451 = vector.broadcast %cst_212 : f32 to vector<8x128xf32>
    %452 = arith.mulf %451, %450 : vector<8x128xf32>
    %cst_213 = arith.constant 5.000000e-01 : f32
    %453 = vector.broadcast %cst_213 : f32 to vector<8x128xf32>
    %454 = arith.addf %452, %453 : vector<8x128xf32>
    %455 = vector.extract_strided_slice %446 {offsets = [0, 128], sizes = [8, 128], strides = [1, 1]} : vector<8x512xf32> to vector<8x128xf32>
    %cst_214 = arith.constant 5.000000e-01 : f32
    %456 = vector.broadcast %cst_214 : f32 to vector<8x128xf32>
    %457 = arith.mulf %456, %455 : vector<8x128xf32>
    %458 = math.tanh %457 : vector<8x128xf32>
    %cst_215 = arith.constant 5.000000e-01 : f32
    %459 = vector.broadcast %cst_215 : f32 to vector<8x128xf32>
    %460 = arith.mulf %459, %458 : vector<8x128xf32>
    %cst_216 = arith.constant 5.000000e-01 : f32
    %461 = vector.broadcast %cst_216 : f32 to vector<8x128xf32>
    %462 = arith.addf %460, %461 : vector<8x128xf32>
    %463 = vector.extract_strided_slice %446 {offsets = [0, 256], sizes = [8, 128], strides = [1, 1]} : vector<8x512xf32> to vector<8x128xf32>
    %464 = math.tanh %463 : vector<8x128xf32>
    %465 = vector.extract_strided_slice %446 {offsets = [0, 384], sizes = [8, 128], strides = [1, 1]} : vector<8x512xf32> to vector<8x128xf32>
    %cst_217 = arith.constant 5.000000e-01 : f32
    %466 = vector.broadcast %cst_217 : f32 to vector<8x128xf32>
    %467 = arith.mulf %466, %465 : vector<8x128xf32>
    %468 = math.tanh %467 : vector<8x128xf32>
    %cst_218 = arith.constant 5.000000e-01 : f32
    %469 = vector.broadcast %cst_218 : f32 to vector<8x128xf32>
    %470 = arith.mulf %469, %468 : vector<8x128xf32>
    %cst_219 = arith.constant 5.000000e-01 : f32
    %471 = vector.broadcast %cst_219 : f32 to vector<8x128xf32>
    %472 = arith.addf %470, %471 : vector<8x128xf32>
    %473 = arith.mulf %462, %444 : vector<8x128xf32>
    %474 = arith.mulf %454, %464 : vector<8x128xf32>
    %475 = arith.addf %473, %474 : vector<8x128xf32>
    %476 = math.tanh %475 : vector<8x128xf32>
    %477 = arith.mulf %472, %476 : vector<8x128xf32>
    %478 = vector.shape_cast %439 : vector<8x1xi1> to vector<8x1xi1>
    %479 = vector.broadcast %478 : vector<8x1xi1> to vector<8x128xi1>
    %480 = arith.select %479, %477, %443 : vector<8x128xi1>, vector<8x128xf32>
    %c0_220 = arith.constant 0 : index
    %c0_221 = arith.constant 0 : index
    %481 = vector.load %arg9[%c0_220, %c0_221] : memref<8x128xf32, #tpu.memory_space<vmem>>, vector<8x128xf32>
    tpu.vector_store %arg9[%c0_220, %c0_221], %480 {strides = array<i32>} : memref<8x128xf32, #tpu.memory_space<vmem>>, vector<8x128xf32>,
    %482 = vector.shape_cast %439 : vector<8x1xi1> to vector<8x1xi1>
    %483 = vector.broadcast %482 : vector<8x1xi1> to vector<8x128xi1>
    %484 = arith.select %483, %475, %444 : vector<8x128xi1>, vector<8x128xf32>
    %c0_222 = arith.constant 0 : index
    %c0_223 = arith.constant 0 : index
    %485 = vector.load %arg10[%c0_222, %c0_223] : memref<8x128xf32, #tpu.memory_space<vmem>>, vector<8x128xf32>
    tpu.vector_store %arg10[%c0_222, %c0_223], %484 {strides = array<i32>} : memref<8x128xf32, #tpu.memory_space<vmem>>, vector<8x128xf32>,
    %cst_224 = arith.constant 0.000000e+00 : f32
    %486 = vector.shape_cast %439 : vector<8x1xi1> to vector<8x1xi1>
    %487 = vector.broadcast %486 : vector<8x1xi1> to vector<8x128xi1>
    %488 = vector.broadcast %cst_224 : f32 to vector<8x128xf32>
    %489 = arith.select %487, %477, %488 : vector<8x128xi1>, vector<8x128xf32>
    %true_225 = arith.constant true
    %490 = arith.xori %0, %true_225 : i1
    %491 = arith.extui %490 : i1 to i32
    %c0_i32_226 = arith.constant 0 : i32
    %492 = arith.cmpi ne, %491, %c0_i32_226 : i32
    scf.if %492 {
      %c0_236 = arith.constant 0 : index
      %c7 = arith.constant 7 : index
      %c0_237 = arith.constant 0 : index
      %500 = vector.load %arg8[%c0_236, %c7, %c0_237] : memref<8x8x128xf32, #tpu.memory_space<vmem>>, vector<8x1x128xf32>
      %501 = vector.shape_cast %500 : vector<8x1x128xf32> to vector<8x128xf32>
      %502 = vector.shape_cast %489 : vector<8x128xf32> to vector<8x1x128xf32>
      tpu.vector_store %arg8[%c0_236, %c7, %c0_237], %502 {strides = array<i32>} : memref<8x8x128xf32, #tpu.memory_space<vmem>>, vector<8x1x128xf32>,
    } else {
    }
    %493 = arith.extui %0 : i1 to i32
    %c0_i32_227 = arith.constant 0 : i32
    %494 = arith.cmpi ne, %493, %c0_i32_227 : i32
    scf.if %494 {
      %c0_236 = arith.constant 0 : index
      %c0_237 = arith.constant 0 : index
      %c0_238 = arith.constant 0 : index
      %500 = vector.load %arg8[%c0_236, %c0_237, %c0_238] : memref<8x8x128xf32, #tpu.memory_space<vmem>>, vector<8x1x128xf32>
      %501 = vector.shape_cast %500 : vector<8x1x128xf32> to vector<8x128xf32>
      %502 = vector.shape_cast %489 : vector<8x128xf32> to vector<8x1x128xf32>
      tpu.vector_store %arg8[%c0_236, %c0_237, %c0_238], %502 {strides = array<i32>} : memref<8x8x128xf32, #tpu.memory_space<vmem>>, vector<8x1x128xf32>,
    } else {
    }
    %c0_228 = arith.constant 0 : index
    %c0_229 = arith.constant 0 : index
    %c0_230 = arith.constant 0 : index
    %495 = vector.load %arg8[%c0_228, %c0_229, %c0_230] : memref<8x8x128xf32, #tpu.memory_space<vmem>>, vector<8x8x128xf32>
    %c0_231 = arith.constant 0 : index
    %c0_232 = arith.constant 0 : index
    %c0_233 = arith.constant 0 : index
    %496 = vector.load %arg5[%c0_231, %c0_232, %c0_233] : memref<8x8x128xf32, #tpu.memory_space<vmem>>, vector<8x8x128xf32>
    tpu.vector_store %arg5[%c0_231, %c0_232, %c0_233], %495 {strides = array<i32>} : memref<8x8x128xf32, #tpu.memory_space<vmem>>, vector<8x8x128xf32>,
    %c1_i32_234 = arith.constant 1 : i32
    %497 = arith.cmpi eq, %arg1, %c1_i32_234 : i32
    %498 = arith.extui %497 : i1 to i32
    %c0_i32_235 = arith.constant 0 : i32
    %499 = arith.cmpi ne, %498, %c0_i32_235 : i32
    scf.if %499 {
      %c0_236 = arith.constant 0 : index
      %c0_237 = arith.constant 0 : index
      %500 = vector.load %arg9[%c0_236, %c0_237] : memref<8x128xf32, #tpu.memory_space<vmem>>, vector<8x128xf32>
      %c0_238 = arith.constant 0 : index
      %c0_239 = arith.constant 0 : index
      %c0_240 = arith.constant 0 : index
      %501 = vector.load %arg6[%c0_238, %c0_239, %c0_240] : memref<1x8x128xf32, #tpu.memory_space<vmem>>, vector<1x8x128xf32>
      %502 = vector.shape_cast %501 : vector<1x8x128xf32> to vector<8x128xf32>
      %503 = vector.shape_cast %500 : vector<8x128xf32> to vector<1x8x128xf32>
      tpu.vector_store %arg6[%c0_238, %c0_239, %c0_240], %503 {strides = array<i32>} : memref<1x8x128xf32, #tpu.memory_space<vmem>>, vector<1x8x128xf32>,
      %c0_241 = arith.constant 0 : index
      %c0_242 = arith.constant 0 : index
      %504 = vector.load %arg10[%c0_241, %c0_242] : memref<8x128xf32, #tpu.memory_space<vmem>>, vector<8x128xf32>
      %c0_243 = arith.constant 0 : index
      %c0_244 = arith.constant 0 : index
      %c0_245 = arith.constant 0 : index
      %505 = vector.load %arg7[%c0_243, %c0_244, %c0_245] : memref<1x8x128xf32, #tpu.memory_space<vmem>>, vector<1x8x128xf32>
      %506 = vector.shape_cast %505 : vector<1x8x128xf32> to vector<8x128xf32>
      %507 = vector.shape_cast %504 : vector<8x128xf32> to vector<1x8x128xf32>
      tpu.vector_store %arg7[%c0_243, %c0_244, %c0_245], %507 {strides = array<i32>} : memref<1x8x128xf32, #tpu.memory_space<vmem>>, vector<1x8x128xf32>,
    } else {
    }
    return
  }
  func.func @transform_0(%arg0: i32, %arg1: i32) -> (i32, i32, i32) {
    %c0_i32 = arith.constant 0 : i32
    %c0_i32_0 = arith.constant 0 : i32
    return %arg0, %arg1, %c0_i32 : i32, i32, i32
  }
  func.func @transform_1(%arg0: i32, %arg1: i32) -> (i32, i32, i32) {
    %c0_i32 = arith.constant 0 : i32
    %c0_i32_0 = arith.constant 0 : i32
    %c0_i32_1 = arith.constant 0 : i32
    return %arg0, %c0_i32, %c0_i32_0 : i32, i32, i32
  }
  func.func @transform_2(%arg0: i32, %arg1: i32) -> (i32, i32) {
    %c0_i32 = arith.constant 0 : i32
    %c0_i32_0 = arith.constant 0 : i32
    %c0_i32_1 = arith.constant 0 : i32
    return %c0_i32, %c0_i32_0 : i32, i32
  }
  func.func @transform_3(%arg0: i32, %arg1: i32) -> (i32, i32, i32) {
    %c2_i32 = arith.constant 2 : i32
    %0 = arith.muli %c2_i32, %arg1 : i32
    %c1_i32 = arith.constant 1 : i32
    %1 = arith.subi %c1_i32, %0 : i32
    %2 = arith.muli %arg0, %1 : i32
    %3 = arith.addi %arg1, %2 : i32
    %c0_i32 = arith.constant 0 : i32
    %c0_i32_0 = arith.constant 0 : i32
    return %c0_i32, %3, %arg0 : i32, i32, i32
  }
  func.func @transform_4(%arg0: i32, %arg1: i32) -> (i32, i32, i32) {
    %c0_i32 = arith.constant 0 : i32
    %c0_i32_0 = arith.constant 0 : i32
    %c0_i32_1 = arith.constant 0 : i32
    return %arg0, %c0_i32, %c0_i32_0 : i32, i32, i32
  }
  func.func @transform_5(%arg0: i32, %arg1: i32) -> (i32, i32, i32) {
    %c0_i32 = arith.constant 0 : i32
    %c0_i32_0 = arith.constant 0 : i32
    %c0_i32_1 = arith.constant 0 : i32
    return %arg0, %c0_i32, %c0_i32_0 : i32, i32, i32
  }
}

</mosaic_0001>

<llo_original>
// kernel: encoder_forward.1
$region0: #{encoder_forward.1}
  #allocation0 [shape = 'u32[]', space=smem, size = 0x4, offset = 0x4, fixed_abs, tag = 'smem constant byte address 0x4 - core index']
  #allocation1 [shape = 'u32[144,128]{1,0:T(1,128)}', space=vmem, size = 0x12000, scoped, tag = 'internal scratch']
  #allocation2 [shape = 'f32[8,8,128]{2,1,0:T(8,128)}', space=vmem, size = 0x8000, scoped, tag = 'scratch operand']
  #allocation3 [shape = 'f32[8,128]{1,0:T(8,128)}', space=vmem, size = 0x1000, scoped, tag = 'scratch operand']
  #allocation4 [shape = 'f32[8,128]{1,0:T(8,128)}', space=vmem, size = 0x1000, scoped, tag = 'scratch operand']
  %s0 = inlined_call_operand.vmem [shape: f32[2,128,512], index: 0, kind: input, shape index: {}]
  %s1 = inlined_call_operand.vmem [shape: f32[2,128,512], index: 1, kind: input, shape index: {}]
  %s2 = inlined_call_operand.vmem [shape: s32[8,1], index: 2, kind: input, shape index: {}]
  %s3 = inlined_call_operand.vmem [shape: f32[8,16,256], index: 3, kind: output, shape index: {0}]
  %s4 = inlined_call_operand.vmem [shape: f32[2,8,128], index: 4, kind: output, shape index: {1}]
  %s5 = inlined_call_operand.vmem [shape: f32[2,8,128], index: 5, kind: output, shape index: {2}]
  %6 = xla_tuple %s3, %s4, %s5
  %s7 = sld [smem:[#allocation0]]
  $region167: #{encoder_forward.1} parent=0
    _
  %s9 = ssub.s32 1, %s7
  %s10 = scalar_select 0, %s9, %s7
  $region1: #{encoder_forward.1} parent=0
    #allocation5 [shape = 'u8[65536]{0}', space=vmem, size = 0x10000, scoped, tag = 'output window, operand 0']
    loop: start=0, step=1, limit=6
    $region2: #{encoder_forward.1} parent=1 // loop_pre_header
      _
    $region3: #{encoder_forward.1} parent=1 // loop_header
      %s12 = sphi 0, %s16
      %p13 = scmp.ge.s32.totalorder %s12, 6
      %s19 = sphi 0, %s31
      %s20 = sphi 0, %s27
      %s21 = sphi 0, %s19
      %s22 = sphi 0, %s20
      %s23 = sphi 0, %s21
      %s24 = sphi 0, %s22
      %s36 = sphi 0, %s38
      %s39 = sphi 0, %s36
      %s40 = sphi 0, %s39
      %s56 = sphi 0, %s40
      %s62 = sphi 0, %s64
      %s65 = sphi 0, %s62
      %s66 = sphi 0, %s65
      %s82 = sphi 0, %s66
      %s86 = sphi 0, %s86
      %s88 = sphi 0, %s86
      %s89 = sphi 0, %s88
      %s103 = sphi 0, %s89
      %s119 = sphi 0, %s121
      %s122 = sphi 0, %s119
      %s123 = sphi 0, %s122
      %s139 = sphi 0, %s123
      %s145 = sphi 0, %s147
      %s148 = sphi 0, %s145
      %s149 = sphi 0, %s148
      %s165 = sphi 0, %s149
      %s171 = sphi 0, %s173
      %s174 = sphi 0, %s171
      %s175 = sphi 0, %s174
      %s191 = sphi 0, %s175
    $region4: #{encoder_forward.1} parent=1 // loop_header_branch
      %15 = sbr.rel (%p13) target = $region8
    $region5: #{encoder_forward.1} parent=1 // loop_body
      %s17 = ssub.s32 %s12, 1
      %s18 = ssub.s32 %s12, 2
      %s25 = sadd.s32 1, %s20
      %p26 = scmp.ge.s32.totalorder %s25, 2
      %s27 = scalar_select %p26, 0, %s25
      %s28 = sadd.s32 1, %s19
      %s29 = scalar_select %p26, %s28, %s19
      %p30 = scmp.ge.s32.totalorder %s29, 2
      %s31 = scalar_select %p30, 0, %s29
      %s32 = ssub.s32 %s19, %s31
      %s33 = ssub.s32 %s20, %s27
      %s34 = sor.u32 %s32, %s33
      %p35 = scmp.eq.s32.totalorder %s34, 0
      %s37 = sadd.s32 %s36, 1
      %s38 = scalar_select %p35, %s36, %s37
      %p41 = pneg %p35
      %p42 = scmp.eq.s32.totalorder %s12, 3
      %p43 = por %p41, %p42
      %p44 = scmp.ne.s32.totalorder %s36, %s39
      %p45 = scmp.eq.s32.totalorder %s12, 0
      %p46 = por %p44, %p45
      %p47 = scmp.ne.s32.totalorder %s36, %s39
      %p48 = scmp.eq.s32.totalorder %s17, 3
      %p49 = por %p47, %p48
      %p50 = scmp.ne.s32.totalorder %s39, %s40
      %p51 = scmp.eq.s32.totalorder %s17, 0
      %p52 = por %p50, %p51
      %p53 = scmp.ne.s32.totalorder %s39, %s40
      %p54 = scmp.eq.s32.totalorder %s18, 3
      %p55 = por %p53, %p54
      %p57 = scmp.ne.s32.totalorder %s40, %s56
      %p58 = scmp.eq.s32.totalorder %s18, 0
      %p59 = por %p57, %p58
      %s60 = ssub.s32 %s19, %s31
      %p61 = scmp.eq.s32.totalorder %s60, 0
      %s63 = sadd.s32 %s62, 1
      %s64 = scalar_select %p61, %s62, %s63
      %p67 = pneg %p61
      %p68 = scmp.eq.s32.totalorder %s12, 3
      %p69 = por %p67, %p68
      %p70 = scmp.ne.s32.totalorder %s62, %s65
      %p71 = scmp.eq.s32.totalorder %s12, 0
      %p72 = por %p70, %p71
      %p73 = scmp.ne.s32.totalorder %s62, %s65
      %p74 = scmp.eq.s32.totalorder %s17, 3
      %p75 = por %p73, %p74
      %p76 = scmp.ne.s32.totalorder %s65, %s66
      %p77 = scmp.eq.s32.totalorder %s17, 0
      %p78 = por %p76, %p77
      %p79 = scmp.ne.s32.totalorder %s65, %s66
      %p80 = scmp.eq.s32.totalorder %s18, 3
      %p81 = por %p79, %p80
      %p83 = scmp.ne.s32.totalorder %s66, %s82
      %p84 = scmp.eq.s32.totalorder %s18, 0
      %p85 = por %p83, %p84
      %s87 = sadd.s32 %s86, 1
      %p90 = scmp.eq.s32.totalorder %s12, 3
      %p91 = scmp.ne.s32.totalorder %s86, %s88
      %p92 = scmp.eq.s32.totalorder %s12, 0
      %p93 = por %p91, %p92
      %p94 = scmp.ne.s32.totalorder %s86, %s88
      %p95 = scmp.eq.s32.totalorder %s17, 3
      %p96 = por %p94, %p95
      %p97 = scmp.ne.s32.totalorder %s88, %s89
      %p98 = scmp.eq.s32.totalorder %s17, 0
      %p99 = por %p97, %p98
      %p100 = scmp.ne.s32.totalorder %s88, %s89
      %p101 = scmp.eq.s32.totalorder %s18, 3
      %p102 = por %p100, %p101
      %p104 = scmp.ne.s32.totalorder %s89, %s103
      %p105 = scmp.eq.s32.totalorder %s18, 0
      %p106 = por %p104, %p105
      %s107 = smul.u32 %s20, 2
      %s108 = ssub.s32 1, %s107
      %s109 = smul.u32 %s19, %s108
      %s110 = sadd.s32 %s20, %s109
      %s111 = smul.u32 %s27, 2
      %s112 = ssub.s32 1, %s111
      %s113 = smul.u32 %s31, %s112
      %s114 = sadd.s32 %s27, %s113
      %s115 = ssub.s32 %s110, %s114
      %s116 = ssub.s32 %s19, %s31
      %s117 = sor.u32 %s115, %s116
      %p118 = scmp.eq.s32.totalorder %s117, 0
      %s120 = sadd.s32 %s119, 1
      %s121 = scalar_select %p118, %s119, %s120
      %p124 = pneg %p118
      %p125 = scmp.eq.s32.totalorder %s12, 3
      %p126 = por %p124, %p125
      %p127 = scmp.ne.s32.totalorder %s119, %s122
      %p128 = scmp.eq.s32.totalorder %s12, 0
      %p129 = por %p127, %p128
      %p130 = scmp.ne.s32.totalorder %s119, %s122
      %p131 = scmp.eq.s32.totalorder %s17, 3
      %p132 = por %p130, %p131
      %p133 = scmp.ne.s32.totalorder %s122, %s123
      %p134 = scmp.eq.s32.totalorder %s17, 0
      %p135 = por %p133, %p134
      %p136 = scmp.ne.s32.totalorder %s122, %s123
      %p137 = scmp.eq.s32.totalorder %s18, 3
      %p138 = por %p136, %p137
      %p140 = scmp.ne.s32.totalorder %s123, %s139
      %p141 = scmp.eq.s32.totalorder %s18, 0
      %p142 = por %p140, %p141
      %s143 = ssub.s32 %s19, %s31
      %p144 = scmp.eq.s32.totalorder %s143, 0
      %s146 = sadd.s32 %s145, 1
      %s147 = scalar_select %p144, %s145, %s146
      %p150 = pneg %p144
      %p151 = scmp.eq.s32.totalorder %s12, 3
      %p152 = por %p150, %p151
      %p153 = scmp.ne.s32.totalorder %s145, %s148
      %p154 = scmp.eq.s32.totalorder %s12, 0
      %p155 = por %p153, %p154
      %p156 = scmp.ne.s32.totalorder %s145, %s148
      %p157 = scmp.eq.s32.totalorder %s17, 3
      %p158 = por %p156, %p157
      %p159 = scmp.ne.s32.totalorder %s148, %s149
      %p160 = scmp.eq.s32.totalorder %s17, 0
      %p161 = por %p159, %p160
      %p162 = scmp.ne.s32.totalorder %s148, %s149
      %p163 = scmp.eq.s32.totalorder %s18, 3
      %p164 = por %p162, %p163
      %p166 = scmp.ne.s32.totalorder %s149, %s165
      %p167 = scmp.eq.s32.totalorder %s18, 0
      %p168 = por %p166, %p167
      %s169 = ssub.s32 %s19, %s31
      %p170 = scmp.eq.s32.totalorder %s169, 0
      %s172 = sadd.s32 %s171, 1
      %s173 = scalar_select %p170, %s171, %s172
      %p176 = pneg %p170
      %p177 = scmp.eq.s32.totalorder %s12, 3
      %p178 = por %p176, %p177
      %p179 = scmp.ne.s32.totalorder %s171, %s174
      %p180 = scmp.eq.s32.totalorder %s12, 0
      %p181 = por %p179, %p180
      %p182 = scmp.ne.s32.totalorder %s171, %s174
      %p183 = scmp.eq.s32.totalorder %s17, 3
      %p184 = por %p182, %p183
      %p185 = scmp.ne.s32.totalorder %s174, %s175
      %p186 = scmp.eq.s32.totalorder %s17, 0
      %p187 = por %p185, %p186
      %p188 = scmp.ne.s32.totalorder %s174, %s175
      %p189 = scmp.eq.s32.totalorder %s18, 3
      %p190 = por %p188, %p189
      %p192 = scmp.ne.s32.totalorder %s175, %s191
      %p193 = scmp.eq.s32.totalorder %s18, 0
      %p194 = por %p192, %p193
      %p195 = scmp.le.s32.totalorder 1, %s12
      %p196 = scmp.lt.s32.totalorder %s12, 5
      %p197 = pnand %p195, %p196
      %p198 = pneg %p197
      // Predicated region
      $region9: #{encoder_forward.1} parent=5 // pred_check
        _
      $region10: #{encoder_forward.1} parent=5 // pred_check_branch
        %200 = sbr.rel (%p197) target = $region12
      $region11: #{encoder_forward.1} parent=5 // pred_region
        %s201 = ssub.s32 %s12, 1
        // Predicated region
        $region13: #{encoder_forward.1} parent=11 // pred_check
          %p202 = pneg %p99
        $region14: #{encoder_forward.1} parent=11 // pred_check_branch
          %204 = sbr.rel (%p202) target = $region16
        $region15: #{encoder_forward.1} parent=11 // pred_region
          _
        $region16: #{encoder_forward.1} parent=11 // pred_fallthru
          _
      $region12: #{encoder_forward.1} parent=5 // pred_fallthru
        _
      %p205 = scmp.lt.s32.totalorder %s12, 4
      // Predicated region
      $region17: #{encoder_forward.1} parent=5 // pred_check
        %p206 = pneg %p205
      $region18: #{encoder_forward.1} parent=5 // pred_check_branch
        %208 = sbr.rel (%p206) target = $region20
      $region19: #{encoder_forward.1} parent=5 // pred_region
        // Predicated region
        $region21: #{encoder_forward.1} parent=19 // pred_check
          %p209 = pneg %p46
        $region22: #{encoder_forward.1} parent=19 // pred_check_branch
          %211 = sbr.rel (%p209) target = $region24
        $region23: #{encoder_forward.1} parent=19 // pred_region
          %s212 = smul.u32 8, %s20
          %p213 = scmp.lt.s32.totalorder %s19, 1
          %s214 = scalar_select %p213, %s19, 1
          %p215 = scmp.lt.s32.totalorder %s212, 15
          %s216 = scalar_select %p215, %s212, 15
          %s217 = smul.addr %s216, 4
          %s218 = smul.addr %s214, 64
          %s219 = sadd.s32 %s217, %s218
          %s220 = smul.addr %s219, 8
          %s221 = scalar_lea.vmem %s0, %s220
          %s222 = smul.u32 8, %s20
        $region24: #{encoder_forward.1} parent=19 // pred_fallthru
          _
        // Predicated region
        $region25: #{encoder_forward.1} parent=19 // pred_check
          %p223 = pneg %p72
        $region26: #{encoder_forward.1} parent=19 // pred_check_branch
          %225 = sbr.rel (%p223) target = $region28
        $region27: #{encoder_forward.1} parent=19 // pred_region
          %p226 = scmp.lt.s32.totalorder %s19, 1
          %s227 = scalar_select %p226, %s19, 1
          %s228 = smul.addr %s227, 64
          %s229 = smul.addr %s228, 8
          %s230 = scalar_lea.vmem %s1, %s229
        $region28: #{encoder_forward.1} parent=19 // pred_fallthru
          _
      $region20: #{encoder_forward.1} parent=5 // pred_fallthru
        _
      %p231 = scmp.le.s32.totalorder 1, %s12
      %p232 = scmp.lt.s32.totalorder %s12, 5
      %p233 = pnand %p231, %p232
      %p234 = pneg %p233
      // Predicated region
      $region29: #{encoder_forward.1} parent=5 // pred_check
        _
      $region30: #{encoder_forward.1} parent=5 // pred_check_branch
        %236 = sbr.rel (%p233) target = $region32
      $region31: #{encoder_forward.1} parent=5 // pred_region
        %s237 = ssub.s32 %s12, 1
        %s238 = smul.u32 8, %s22
        %p239 = scmp.lt.s32.totalorder %s21, 1
        %s240 = scalar_select %p239, %s21, 1
        %p241 = scmp.lt.s32.totalorder %s238, 15
        %s242 = scalar_select %p241, %s238, 15
        %s243 = smul.addr %s242, 4
        %s244 = smul.addr %s240, 64
        %s245 = sadd.s32 %s243, %s244
        %s246 = smul.addr %s245, 8
        %s247 = scalar_lea.vmem %s0, %s246
        %p248 = pneg %p52
        %p249 = pneg %p49
        %p250 = scmp.lt.s32.totalorder %s21, 1
        %s251 = scalar_select %p250, %s21, 1
        %s252 = smul.addr %s251, 64
        %s253 = smul.addr %s252, 8
        %s254 = scalar_lea.vmem %s1, %s253
        %p255 = pneg %p78
        %p256 = pneg %p75
        %p257 = pneg %p99
        %p258 = pneg %p96
        %p259 = pneg %p135
        %p260 = pneg %p132
        %s261 = sand.u32 %s122, 1
        %s262 = sand.u32 %s122, 1
        %s263 = smul.addr %s262, 64
        %s264 = scalar_lea.vmem [#allocation5], %s263
        %p265 = pneg %p161
        %p266 = pneg %p158
        %p267 = scmp.lt.s32.totalorder %s21, 1
        %s268 = scalar_select %p267, %s21, 1
        %s269 = smul.addr %s268, 8
        %s270 = scalar_lea.vmem %s4, %s269
        %p271 = pneg %p187
        %p272 = pneg %p184
        %p273 = scmp.lt.s32.totalorder %s21, 1
        %s274 = scalar_select %p273, %s21, 1
        %s275 = smul.addr %s274, 8
        %s276 = scalar_lea.vmem %s5, %s275
        %s277 = smul.u32 8, %s22
        %p278 = scmp.lt.s32.totalorder %s21, 1
        %s279 = scalar_select %p278, %s21, 1
        %p280 = scmp.lt.s32.totalorder %s277, 15
        %s281 = scalar_select %p280, %s277, 15
        %s282 = smul.addr %s281, 4
        %s283 = smul.addr %s279, 64
        %s284 = sadd.s32 %s282, %s283
        %s285 = smul.addr %s284, 8
        %s286 = scalar_lea.vmem %s0, %s285
        %s287 = smul.u32 8, %s22
        %p288 = scmp.lt.s32.totalorder %s21, 1
        %s289 = scalar_select %p288, %s21, 1
        %s290 = smul.addr %s289, 64
        %s291 = smul.addr %s290, 8
        %s292 = scalar_lea.vmem %s1, %s291
        %s293 = smul.u32 %s22, 2
        %s294 = ssub.s32 1, %s293
        %s295 = smul.u32 %s21, %s294
        %s296 = sadd.s32 %s22, %s295
        %p297 = scmp.lt.s32.totalorder %s21, 1
        %s298 = scalar_select %p297, %s21, 1
        %s299 = smul.addr %s298, 8
        %s300 = scalar_lea.vmem %s4, %s299
        %p301 = scmp.lt.s32.totalorder %s21, 1
        %s302 = scalar_select %p301, %s21, 1
        %s303 = smul.addr %s302, 8
        %s304 = scalar_lea.vmem %s5, %s303
        %p305 = scmp.eq.s32.totalorder %s21, 1
        %p306 = scmp.eq.s32.totalorder %s22, 0
        // Predicated region
        $region33: #{encoder_forward.1} parent=31 // pred_check
          %p307 = pneg %p306
        $region34: #{encoder_forward.1} parent=31 // pred_check_branch
          %309 = sbr.rel (%p307) target = $region36
        $region35: #{encoder_forward.1} parent=31 // pred_region
          %310 = vst [vmem:[#allocation3] sm:$0xff] 0.0
          %311 = vst [vmem:[#allocation4] sm:$0xff] 0.0
        $region36: #{encoder_forward.1} parent=31 // pred_fallthru
          _
        %v312 = vld [vmem:[%s292] sm:$0xff]
        %v313 = vld [vmem:[%s292 + $0x8] sm:$0xff]
        %v314 = vld [vmem:[%s292 + $0x10] sm:$0xff]
        %v315 = vld [vmem:[%s292 + $0x18] sm:$0xff]
        %v316 = vld [vmem:[%s292 + $0x20] sm:$0xff]
        %v317 = vld [vmem:[%s292 + $0x28] sm:$0xff]
        %v318 = vld [vmem:[%s292 + $0x30] sm:$0xff]
        %v319 = vld [vmem:[%s292 + $0x38] sm:$0xff]
        %v320 = vld [vmem:[%s292 + $0x40] sm:$0xff]
        %v321 = vld [vmem:[%s292 + $0x48] sm:$0xff]
        %v322 = vld [vmem:[%s292 + $0x50] sm:$0xff]
        %v323 = vld [vmem:[%s292 + $0x58] sm:$0xff]
        %v324 = vld [vmem:[%s292 + $0x60] sm:$0xff]
        %v325 = vld [vmem:[%s292 + $0x68] sm:$0xff]
        %v326 = vld [vmem:[%s292 + $0x70] sm:$0xff]
        %v327 = vld [vmem:[%s292 + $0x78] sm:$0xff]
        %v328 = vld [vmem:[%s292 + $0x80] sm:$0xff]
        %v329 = vld [vmem:[%s292 + $0x88] sm:$0xff]
        %v330 = vld [vmem:[%s292 + $0x90] sm:$0xff]
        %v331 = vld [vmem:[%s292 + $0x98] sm:$0xff]
        %v332 = vld [vmem:[%s292 + $0xa0] sm:$0xff]
        %v333 = vld [vmem:[%s292 + $0xa8] sm:$0xff]
        %v334 = vld [vmem:[%s292 + $0xb0] sm:$0xff]
        %v335 = vld [vmem:[%s292 + $0xb8] sm:$0xff]
        %v336 = vld [vmem:[%s292 + $0xc0] sm:$0xff]
        %v337 = vld [vmem:[%s292 + $0xc8] sm:$0xff]
        %v338 = vld [vmem:[%s292 + $0xd0] sm:$0xff]
        %v339 = vld [vmem:[%s292 + $0xd8] sm:$0xff]
        %v340 = vld [vmem:[%s292 + $0xe0] sm:$0xff]
        %v341 = vld [vmem:[%s292 + $0xe8] sm:$0xff]
        %v342 = vld [vmem:[%s292 + $0xf0] sm:$0xff]
        %v343 = vld [vmem:[%s292 + $0xf8] sm:$0xff]
        %v344 = vld [vmem:[%s292 + $0x100] sm:$0xff]
        %v345 = vld [vmem:[%s292 + $0x108] sm:$0xff]
        %v346 = vld [vmem:[%s292 + $0x110] sm:$0xff]
        %v347 = vld [vmem:[%s292 + $0x118] sm:$0xff]
        %v348 = vld [vmem:[%s292 + $0x120] sm:$0xff]
        %v349 = vld [vmem:[%s292 + $0x128] sm:$0xff]
        %v350 = vld [vmem:[%s292 + $0x130] sm:$0xff]
        %v351 = vld [vmem:[%s292 + $0x138] sm:$0xff]
        %v352 = vld [vmem:[%s292 + $0x140] sm:$0xff]
        %v353 = vld [vmem:[%s292 + $0x148] sm:$0xff]
        %v354 = vld [vmem:[%s292 + $0x150] sm:$0xff]
        %v355 = vld [vmem:[%s292 + $0x158] sm:$0xff]
        %v356 = vld [vmem:[%s292 + $0x160] sm:$0xff]
        %v357 = vld [vmem:[%s292 + $0x168] sm:$0xff]
        %v358 = vld [vmem:[%s292 + $0x170] sm:$0xff]
        %v359 = vld [vmem:[%s292 + $0x178] sm:$0xff]
        %v360 = vld [vmem:[%s292 + $0x180] sm:$0xff]
        %v361 = vld [vmem:[%s292 + $0x188] sm:$0xff]
        %v362 = vld [vmem:[%s292 + $0x190] sm:$0xff]
        %v363 = vld [vmem:[%s292 + $0x198] sm:$0xff]
        %v364 = vld [vmem:[%s292 + $0x1a0] sm:$0xff]
        %v365 = vld [vmem:[%s292 + $0x1a8] sm:$0xff]
        %v366 = vld [vmem:[%s292 + $0x1b0] sm:$0xff]
        %v367 = vld [vmem:[%s292 + $0x1b8] sm:$0xff]
        %v368 = vld [vmem:[%s292 + $0x1c0] sm:$0xff]
        %v369 = vld [vmem:[%s292 + $0x1c8] sm:$0xff]
        %v370 = vld [vmem:[%s292 + $0x1d0] sm:$0xff]
        %v371 = vld [vmem:[%s292 + $0x1d8] sm:$0xff]
        %v372 = vld [vmem:[%s292 + $0x1e0] sm:$0xff]
        %v373 = vld [vmem:[%s292 + $0x1e8] sm:$0xff]
        %v374 = vld [vmem:[%s292 + $0x1f0] sm:$0xff]
        %v375 = vld [vmem:[%s292 + $0x1f8] sm:$0xff]
        %v376 = vld [vmem:[%s2] sm:$0xff]
        %s377 = smul.u32 %s22, 8
        %s378 = ssub.s32 15, %s377
        %s379 = scalar_select %p305, %s378, %s377
        %v380 = vstv %s379
        %vm381 = vcmp.lt.s32.totalorder %v380, %v376
        %v382 = vld [vmem:[%s286] sm:$0xff]
        %v383 = vld [vmem:[%s286 + $0x8] sm:$0xff]
        %v384 = vld [vmem:[%s286 + $0x10] sm:$0xff]
        %v385 = vld [vmem:[%s286 + $0x18] sm:$0xff]
        %v386 = vld [vmem:[#allocation3] sm:$0xff]
        %v387 = vld [vmem:[#allocation4] sm:$0xff]
        %388 = vmatprep.subr.mxu0 %v313
        %389 = vmatpush1.msra.mxu0 %v312
        %390 = vmatprep.subr.mxu0 %v317
        %391 = vmatpush1.msra.mxu0 %v316
        %392 = vmatprep.subr.mxu0 %v321
        %393 = vmatpush1.msra.mxu0 %v320
        %394 = vmatprep.subr.mxu0 %v325
        %395 = vmatpush1.msra.mxu0 %v324
        %396 = vmatprep.subr.mxu0 %v329
        %397 = vmatpush1.msra.mxu0 %v328
        %398 = vmatprep.subr.mxu0 %v333
        %399 = vmatpush1.msra.mxu0 %v332
        %400 = vmatprep.subr.mxu0 %v337
        %401 = vmatpush1.msra.mxu0 %v336
        %402 = vmatprep.subr.mxu0 %v341
        %403 = vmatpush1.msra.mxu0 %v340
        %404 = vmatprep.subr.mxu0 %v345
        %405 = vmatpush1.msra.mxu0 %v344
        %406 = vmatprep.subr.mxu0 %v349
        %407 = vmatpush1.msra.mxu0 %v348
        %408 = vmatprep.subr.mxu0 %v353
        %409 = vmatpush1.msra.mxu0 %v352
        %410 = vmatprep.subr.mxu0 %v357
        %411 = vmatpush1.msra.mxu0 %v356
        %412 = vmatprep.subr.mxu0 %v361
        %413 = vmatpush1.msra.mxu0 %v360
        %414 = vmatprep.subr.mxu0 %v365
        %415 = vmatpush1.msra.mxu0 %v364
        %416 = vmatprep.subr.mxu0 %v369
        %417 = vmatpush1.msra.mxu0 %v368
        %418 = vmatprep.subr.mxu0 %v373
        %419 = vmatpush1.msra.mxu0 %v372
        %420 = vmatprep.subr.mxu0 0.0
        %421 = vmatpush1.msra.mxu0 0.0
        %422 = vmatprep.subr.mxu0 0.0
        %423 = vmatpush1.msra.mxu0 0.0
        %424 = vmatprep.subr.mxu0 0.0
        %425 = vmatpush1.msra.mxu0 0.0
        %426 = vmatprep.subr.mxu0 0.0
        %427 = vmatpush1.msra.mxu0 0.0
        %428 = vmatprep.subr.mxu0 0.0
        %429 = vmatpush1.msra.mxu0 0.0
        %430 = vmatprep.subr.mxu0 0.0
        %431 = vmatpush1.msra.mxu0 0.0
        %432 = vmatprep.subr.mxu0 0.0
        %433 = vmatpush1.msra.mxu0 0.0
        %434 = vmatprep.subr.mxu0 0.0
        %435 = vmatpush1.msra.mxu0 0.0
        %436 = vmatprep.subr.mxu0 0.0
        %437 = vmatpush1.msra.mxu0 0.0
        %438 = vmatprep.subr.mxu0 0.0
        %439 = vmatpush1.msra.mxu0 0.0
        %440 = vmatprep.subr.mxu0 0.0
        %441 = vmatpush1.msra.mxu0 0.0
        %442 = vmatprep.subr.mxu0 0.0
        %443 = vmatpush1.msra.mxu0 0.0
        %444 = vmatprep.subr.mxu0 0.0
        %445 = vmatpush1.msra.mxu0 0.0
        %446 = vmatprep.subr.mxu0 0.0
        %447 = vmatpush1.msra.mxu0 0.0
        %448 = vmatprep.subr.mxu0 0.0
        %449 = vmatpush1.msra.mxu0 0.0
        %450 = vmatprep.subr.mxu0 0.0
        %451 = vmatpush1.msra.mxu0 0.0
        %452 = vmatprep.mubr.f32.mxu0 0.0
        %453 = vmatmul.mubr.f32.gmra.mrb[0].mxu0 %v386
        %v454 = vpop.f32.mrb[0].mxu0
        %v455 = vadd.f32 0.0, %v454
        %v456 = vpop.f32.mrb[0].mxu0
        %v457 = vadd.f32 0.0, %v456
        %458 = vdwg.mxu0
        %459 = vmatprep.subr.mxu0 %v315
        %460 = vmatpush1.msra.mxu0 %v314
        %461 = vmatprep.subr.mxu0 %v319
        %462 = vmatpush1.msra.mxu0 %v318
        %463 = vmatprep.subr.mxu0 %v323
        %464 = vmatpush1.msra.mxu0 %v322
        %465 = vmatprep.subr.mxu0 %v327
        %466 = vmatpush1.msra.mxu0 %v326
        %467 = vmatprep.subr.mxu0 %v331
        %468 = vmatpush1.msra.mxu0 %v330
        %469 = vmatprep.subr.mxu0 %v335
        %470 = vmatpush1.msra.mxu0 %v334
        %471 = vmatprep.subr.mxu0 %v339
        %472 = vmatpush1.msra.mxu0 %v338
        %473 = vmatprep.subr.mxu0 %v343
        %474 = vmatpush1.msra.mxu0 %v342
        %475 = vmatprep.subr.mxu0 %v347
        %476 = vmatpush1.msra.mxu0 %v346
        %477 = vmatprep.subr.mxu0 %v351
        %478 = vmatpush1.msra.mxu0 %v350
        %479 = vmatprep.subr.mxu0 %v355
        %480 = vmatpush1.msra.mxu0 %v354
        %481 = vmatprep.subr.mxu0 %v359
        %482 = vmatpush1.msra.mxu0 %v358
        %483 = vmatprep.subr.mxu0 %v363
        %484 = vmatpush1.msra.mxu0 %v362
        %485 = vmatprep.subr.mxu0 %v367
        %486 = vmatpush1.msra.mxu0 %v366
        %487 = vmatprep.subr.mxu0 %v371
        %488 = vmatpush1.msra.mxu0 %v370
        %489 = vmatprep.subr.mxu0 %v375
        %490 = vmatpush1.msra.mxu0 %v374
        %491 = vmatprep.subr.mxu0 0.0
        %492 = vmatpush1.msra.mxu0 0.0
        %493 = vmatprep.subr.mxu0 0.0
        %494 = vmatpush1.msra.mxu0 0.0
        %495 = vmatprep.subr.mxu0 0.0
        %496 = vmatpush1.msra.mxu0 0.0
        %497 = vmatprep.subr.mxu0 0.0
        %498 = vmatpush1.msra.mxu0 0.0
        %499 = vmatprep.subr.mxu0 0.0
        %500 = vmatpush1.msra.mxu0 0.0
        %501 = vmatprep.subr.mxu0 0.0
        %502 = vmatpush1.msra.mxu0 0.0
        %503 = vmatprep.subr.mxu0 0.0
        %504 = vmatpush1.msra.mxu0 0.0
        %505 = vmatprep.subr.mxu0 0.0
        %506 = vmatpush1.msra.mxu0 0.0
        %507 = vmatprep.subr.mxu0 0.0
        %508 = vmatpush1.msra.mxu0 0.0
        %509 = vmatprep.subr.mxu0 0.0
        %510 = vmatpush1.msra.mxu0 0.0
        %511 = vmatprep.subr.mxu0 0.0
        %512 = vmatpush1.msra.mxu0 0.0
        %513 = vmatprep.subr.mxu0 0.0
        %514 = vmatpush1.msra.mxu0 0.0
        %515 = vmatprep.subr.mxu0 0.0
        %516 = vmatpush1.msra.mxu0 0.0
        %517 = vmatprep.subr.mxu0 0.0
        %518 = vmatpush1.msra.mxu0 0.0
        %519 = vmatprep.subr.mxu0 0.0
        %520 = vmatpush1.msra.mxu0 0.0
        %521 = vmatprep.subr.mxu0 0.0
        %522 = vmatpush1.msra.mxu0 0.0
        %523 = vmatprep.mubr.f32.mxu0 0.0
        %524 = vmatmul.mubr.f32.gmra.mrb[0].mxu0 %v386
        %v525 = vpop.f32.mrb[0].mxu0
        %v526 = vadd.f32 0.0, %v525
        %v527 = vpop.f32.mrb[0].mxu0
        %v528 = vadd.f32 0.0, %v527
        %529 = vdwg.mxu0
        %v530 = vadd.f32 %v382, %v455
        %v531 = vadd.f32 %v383, %v457
        %v532 = vadd.f32 %v384, %v526
        %v533 = vadd.f32 %v385, %v528
        %v534 = vmul.f32 %v530, 0.5
        %v535 = vtanh.pop %v534
        %v536 = vmul.f32 %v535, 0.5
        %v537 = vadd.f32 %v536, 0.5
        %v538 = vmul.f32 %v531, 0.5
        %v539 = vtanh.pop %v538
        %v540 = vmul.f32 %v539, 0.5
        %v541 = vadd.f32 %v540, 0.5
        %v542 = vtanh.pop %v532
        %v543 = vmul.f32 %v533, 0.5
        %v544 = vtanh.pop %v543
        %v545 = vmul.f32 %v544, 0.5
        %v546 = vadd.f32 %v545, 0.5
        %v547 = vmul.f32 %v541, %v387
        %v548 = vmul.f32 %v537, %v542
        %v549 = vadd.f32 %v547, %v548
        %v550 = vtanh.pop %v549
        %v551 = vmul.f32 %v546, %v550
        %v552 = vsel %vm381, 1, 0
        %553 = vset.pattern.permute.xlu0 0
        %554 = vperm.xlu0 %553, %v552
        %v555 = vpop.permute.xlu0 %554
        %vm556 = vcmp.eq.s32.totalorder %v555, 1
        %v557 = vsel %vm556, %v551, %v386
        %558 = vst [vmem:[#allocation3] sm:$0xff] %v557
        %v559 = vsel %vm556, %v549, %v387
        %560 = vst [vmem:[#allocation4] sm:$0xff] %v559
        %v561 = vsel %vm556, %v551, 0.0
        %p562 = scmp.ne.s32.totalorder %s21, 1
        // Predicated region
        $region37: #{encoder_forward.1} parent=31 // pred_check
          %p563 = pneg %p562
        $region38: #{encoder_forward.1} parent=31 // pred_check_branch
          %565 = sbr.rel (%p563) target = $region40
        $region39: #{encoder_forward.1} parent=31 // pred_region
          %v567 = vcombine.high %v561, %v561
          %v569 = vunpack.c.l.s4 1966171168
          %v570 = vunpack.c.0.s8 %v569
          %v571 = vlaneseq
          %v572 = vshrl.u32 %v571, 7
          %v573 = vsub.s32 %v570, %v572
          %v574 = vrot.slane %v561, %v573
          %v576 = vunpack.c.l.s4 1966171168
          %v577 = vunpack.c.0.s8 %v576
          %v578 = vlaneseq
          %v579 = vshrl.u32 %v578, 7
          %v580 = vsub.s32 %v577, %v579
          %v581 = vrot.slane %v567, %v580
          %v582 = vcombine.high %v574, %v574
          %v583 = vcombine.high %v581, %v581
          %v585 = vunpack.c.l.s4 1966171168
          %v586 = vunpack.c.0.s8 %v585
          %v587 = vlaneseq
          %v588 = vshrl.u32 %v587, 7
          %v589 = vsub.s32 %v586, %v588
          %v590 = vrot.slane %v574, %v589
          %v592 = vunpack.c.l.s4 1966171168
          %v593 = vunpack.c.0.s8 %v592
          %v594 = vlaneseq
          %v595 = vshrl.u32 %v594, 7
          %v596 = vsub.s32 %v593, %v595
          %v597 = vrot.slane %v581, %v596
          %v599 = vunpack.c.l.s4 1966171168
          %v600 = vunpack.c.0.s8 %v599
          %v601 = vlaneseq
          %v602 = vshrl.u32 %v601, 7
          %v603 = vsub.s32 %v600, %v602
          %v604 = vrot.slane %v582, %v603
          %v606 = vunpack.c.l.s4 1966171168
          %v607 = vunpack.c.0.s8 %v606
          %v608 = vlaneseq
          %v609 = vshrl.u32 %v608, 7
          %v610 = vsub.s32 %v607, %v609
          %v611 = vrot.slane %v583, %v610
          %v612 = vcombine.high %v590, %v590
          %v613 = vcombine.high %v597, %v597
          %v614 = vcombine.high %v604, %v604
          %v615 = vcombine.high %v611, %v611
          %624 = vst [vmem:[#allocation2] sm:$0x1] %v590
          %625 = vst [vmem:[#allocation2 + $0x8] sm:$0x1] %v604
          %626 = vst [vmem:[#allocation2 + $0x10] sm:$0x1] %v612
          %627 = vst [vmem:[#allocation2 + $0x18] sm:$0x1] %v614
          %628 = vst [vmem:[#allocation2 + $0x20] sm:$0x1] %v597
          %629 = vst [vmem:[#allocation2 + $0x28] sm:$0x1] %v611
          %630 = vst [vmem:[#allocation2 + $0x30] sm:$0x1] %v613
          %631 = vst [vmem:[#allocation2 + $0x38] sm:$0x1] %v615
        $region40: #{encoder_forward.1} parent=31 // pred_fallthru
          _
        // Predicated region
        $region41: #{encoder_forward.1} parent=31 // pred_check
          %p632 = pneg %p305
        $region42: #{encoder_forward.1} parent=31 // pred_check_branch
          %634 = sbr.rel (%p632) target = $region44
        $region43: #{encoder_forward.1} parent=31 // pred_region
          %v636 = vcombine.high %v561, %v561
          %v638 = vunpack.c.l.s4 1966171168
          %v639 = vunpack.c.0.s8 %v638
          %v640 = vlaneseq
          %v641 = vshrl.u32 %v640, 7
          %v642 = vsub.s32 %v639, %v641
          %v643 = vrot.slane %v561, %v642
          %v645 = vunpack.c.l.s4 1966171168
          %v646 = vunpack.c.0.s8 %v645
          %v647 = vlaneseq
          %v648 = vshrl.u32 %v647, 7
          %v649 = vsub.s32 %v646, %v648
          %v650 = vrot.slane %v636, %v649
          %v651 = vcombine.high %v643, %v643
          %v652 = vcombine.high %v650, %v650
          %v654 = vunpack.c.l.s4 1966171168
          %v655 = vunpack.c.0.s8 %v654
          %v656 = vlaneseq
          %v657 = vshrl.u32 %v656, 7
          %v658 = vsub.s32 %v655, %v657
          %v659 = vrot.slane %v643, %v658
          %v661 = vunpack.c.l.s4 1966171168
          %v662 = vunpack.c.0.s8 %v661
          %v663 = vlaneseq
          %v664 = vshrl.u32 %v663, 7
          %v665 = vsub.s32 %v662, %v664
          %v666 = vrot.slane %v650, %v665
          %v668 = vunpack.c.l.s4 1966171168
          %v669 = vunpack.c.0.s8 %v668
          %v670 = vlaneseq
          %v671 = vshrl.u32 %v670, 7
          %v672 = vsub.s32 %v669, %v671
          %v673 = vrot.slane %v651, %v672
          %v675 = vunpack.c.l.s4 1966171168
          %v676 = vunpack.c.0.s8 %v675
          %v677 = vlaneseq
          %v678 = vshrl.u32 %v677, 7
          %v679 = vsub.s32 %v676, %v678
          %v680 = vrot.slane %v652, %v679
          %v681 = vcombine.high %v659, %v659
          %v682 = vcombine.high %v666, %v666
          %v683 = vcombine.high %v673, %v673
          %v684 = vcombine.high %v680, %v680
          %693 = vst [vmem:[#allocation2 + $0x7] sm:$0x1] %v659
          %694 = vst [vmem:[#allocation2 + $0xf] sm:$0x1] %v673
          %695 = vst [vmem:[#allocation2 + $0x17] sm:$0x1] %v681
          %696 = vst [vmem:[#allocation2 + $0x1f] sm:$0x1] %v683
          %697 = vst [vmem:[#allocation2 + $0x27] sm:$0x1] %v666
          %698 = vst [vmem:[#allocation2 + $0x2f] sm:$0x1] %v680
          %699 = vst [vmem:[#allocation2 + $0x37] sm:$0x1] %v682
          %700 = vst [vmem:[#allocation2 + $0x3f] sm:$0x1] %v684
        $region44: #{encoder_forward.1} parent=31 // pred_fallthru
          _
        %s701 = sadd.s32 %s377, 1
        %s702 = ssub.s32 14, %s377
        %s703 = scalar_select %p305, %s702, %s701
        %v704 = vstv %s703
        %vm705 = vcmp.lt.s32.totalorder %v704, %v376
        %v706 = vld [vmem:[%s286 + $0x20] sm:$0xff]
        %v707 = vld [vmem:[%s286 + $0x28] sm:$0xff]
        %v708 = vld [vmem:[%s286 + $0x30] sm:$0xff]
        %v709 = vld [vmem:[%s286 + $0x38] sm:$0xff]
        %v710 = vld [vmem:[#allocation3] sm:$0xff]
        %v711 = vld [vmem:[#allocation4] sm:$0xff]
        %712 = vmatprep.subr.mxu0 %v313
        %713 = vmatpush1.msra.mxu0 %v312
        %714 = vmatprep.subr.mxu0 %v317
        %715 = vmatpush1.msra.mxu0 %v316
        %716 = vmatprep.subr.mxu0 %v321
        %717 = vmatpush1.msra.mxu0 %v320
        %718 = vmatprep.subr.mxu0 %v325
        %719 = vmatpush1.msra.mxu0 %v324
        %720 = vmatprep.subr.mxu0 %v329
        %721 = vmatpush1.msra.mxu0 %v328
        %722 = vmatprep.subr.mxu0 %v333
        %723 = vmatpush1.msra.mxu0 %v332
        %724 = vmatprep.subr.mxu0 %v337
        %725 = vmatpush1.msra.mxu0 %v336
        %726 = vmatprep.subr.mxu0 %v341
        %727 = vmatpush1.msra.mxu0 %v340
        %728 = vmatprep.subr.mxu0 %v345
        %729 = vmatpush1.msra.mxu0 %v344
        %730 = vmatprep.subr.mxu0 %v349
        %731 = vmatpush1.msra.mxu0 %v348
        %732 = vmatprep.subr.mxu0 %v353
        %733 = vmatpush1.msra.mxu0 %v352
        %734 = vmatprep.subr.mxu0 %v357
        %735 = vmatpush1.msra.mxu0 %v356
        %736 = vmatprep.subr.mxu0 %v361
        %737 = vmatpush1.msra.mxu0 %v360
        %738 = vmatprep.subr.mxu0 %v365
        %739 = vmatpush1.msra.mxu0 %v364
        %740 = vmatprep.subr.mxu0 %v369
        %741 = vmatpush1.msra.mxu0 %v368
        %742 = vmatprep.subr.mxu0 %v373
        %743 = vmatpush1.msra.mxu0 %v372
        %744 = vmatprep.subr.mxu0 0.0
        %745 = vmatpush1.msra.mxu0 0.0
        %746 = vmatprep.subr.mxu0 0.0
        %747 = vmatpush1.msra.mxu0 0.0
        %748 = vmatprep.subr.mxu0 0.0
        %749 = vmatpush1.msra.mxu0 0.0
        %750 = vmatprep.subr.mxu0 0.0
        %751 = vmatpush1.msra.mxu0 0.0
        %752 = vmatprep.subr.mxu0 0.0
        %753 = vmatpush1.msra.mxu0 0.0
        %754 = vmatprep.subr.mxu0 0.0
        %755 = vmatpush1.msra.mxu0 0.0
        %756 = vmatprep.subr.mxu0 0.0
        %757 = vmatpush1.msra.mxu0 0.0
        %758 = vmatprep.subr.mxu0 0.0
        %759 = vmatpush1.msra.mxu0 0.0
        %760 = vmatprep.subr.mxu0 0.0
        %761 = vmatpush1.msra.mxu0 0.0
        %762 = vmatprep.subr.mxu0 0.0
        %763 = vmatpush1.msra.mxu0 0.0
        %764 = vmatprep.subr.mxu0 0.0
        %765 = vmatpush1.msra.mxu0 0.0
        %766 = vmatprep.subr.mxu0 0.0
        %767 = vmatpush1.msra.mxu0 0.0
        %768 = vmatprep.subr.mxu0 0.0
        %769 = vmatpush1.msra.mxu0 0.0
        %770 = vmatprep.subr.mxu0 0.0
        %771 = vmatpush1.msra.mxu0 0.0
        %772 = vmatprep.subr.mxu0 0.0
        %773 = vmatpush1.msra.mxu0 0.0
        %774 = vmatprep.subr.mxu0 0.0
        %775 = vmatpush1.msra.mxu0 0.0
        %776 = vmatprep.mubr.f32.mxu0 0.0
        %777 = vmatmul.mubr.f32.gmra.mrb[0].mxu0 %v710
        %v778 = vpop.f32.mrb[0].mxu0
        %v779 = vadd.f32 0.0, %v778
        %v780 = vpop.f32.mrb[0].mxu0
        %v781 = vadd.f32 0.0, %v780
        %782 = vdwg.mxu0
        %783 = vmatprep.subr.mxu0 %v315
        %784 = vmatpush1.msra.mxu0 %v314
        %785 = vmatprep.subr.mxu0 %v319
        %786 = vmatpush1.msra.mxu0 %v318
        %787 = vmatprep.subr.mxu0 %v323
        %788 = vmatpush1.msra.mxu0 %v322
        %789 = vmatprep.subr.mxu0 %v327
        %790 = vmatpush1.msra.mxu0 %v326
        %791 = vmatprep.subr.mxu0 %v331
        %792 = vmatpush1.msra.mxu0 %v330
        %793 = vmatprep.subr.mxu0 %v335
        %794 = vmatpush1.msra.mxu0 %v334
        %795 = vmatprep.subr.mxu0 %v339
        %796 = vmatpush1.msra.mxu0 %v338
        %797 = vmatprep.subr.mxu0 %v343
        %798 = vmatpush1.msra.mxu0 %v342
        %799 = vmatprep.subr.mxu0 %v347
        %800 = vmatpush1.msra.mxu0 %v346
        %801 = vmatprep.subr.mxu0 %v351
        %802 = vmatpush1.msra.mxu0 %v350
        %803 = vmatprep.subr.mxu0 %v355
        %804 = vmatpush1.msra.mxu0 %v354
        %805 = vmatprep.subr.mxu0 %v359
        %806 = vmatpush1.msra.mxu0 %v358
        %807 = vmatprep.subr.mxu0 %v363
        %808 = vmatpush1.msra.mxu0 %v362
        %809 = vmatprep.subr.mxu0 %v367
        %810 = vmatpush1.msra.mxu0 %v366
        %811 = vmatprep.subr.mxu0 %v371
        %812 = vmatpush1.msra.mxu0 %v370
        %813 = vmatprep.subr.mxu0 %v375
        %814 = vmatpush1.msra.mxu0 %v374
        %815 = vmatprep.subr.mxu0 0.0
        %816 = vmatpush1.msra.mxu0 0.0
        %817 = vmatprep.subr.mxu0 0.0
        %818 = vmatpush1.msra.mxu0 0.0
        %819 = vmatprep.subr.mxu0 0.0
        %820 = vmatpush1.msra.mxu0 0.0
        %821 = vmatprep.subr.mxu0 0.0
        %822 = vmatpush1.msra.mxu0 0.0
        %823 = vmatprep.subr.mxu0 0.0
        %824 = vmatpush1.msra.mxu0 0.0
        %825 = vmatprep.subr.mxu0 0.0
        %826 = vmatpush1.msra.mxu0 0.0
        %827 = vmatprep.subr.mxu0 0.0
        %828 = vmatpush1.msra.mxu0 0.0
        %829 = vmatprep.subr.mxu0 0.0
        %830 = vmatpush1.msra.mxu0 0.0
        %831 = vmatprep.subr.mxu0 0.0
        %832 = vmatpush1.msra.mxu0 0.0
        %833 = vmatprep.subr.mxu0 0.0
        %834 = vmatpush1.msra.mxu0 0.0
        %835 = vmatprep.subr.mxu0 0.0
        %836 = vmatpush1.msra.mxu0 0.0
        %837 = vmatprep.subr.mxu0 0.0
        %838 = vmatpush1.msra.mxu0 0.0
        %839 = vmatprep.subr.mxu0 0.0
        %840 = vmatpush1.msra.mxu0 0.0
        %841 = vmatprep.subr.mxu0 0.0
        %842 = vmatpush1.msra.mxu0 0.0
        %843 = vmatprep.subr.mxu0 0.0
        %844 = vmatpush1.msra.mxu0 0.0
        %845 = vmatprep.subr.mxu0 0.0
        %846 = vmatpush1.msra.mxu0 0.0
        %847 = vmatprep.mubr.f32.mxu0 0.0
        %848 = vmatmul.mubr.f32.gmra.mrb[0].mxu0 %v710
        %v849 = vpop.f32.mrb[0].mxu0
        %v850 = vadd.f32 0.0, %v849
        %v851 = vpop.f32.mrb[0].mxu0
        %v852 = vadd.f32 0.0, %v851
        %853 = vdwg.mxu0
        %v854 = vadd.f32 %v706, %v779
        %v855 = vadd.f32 %v707, %v781
        %v856 = vadd.f32 %v708, %v850
        %v857 = vadd.f32 %v709, %v852
        %v858 = vmul.f32 %v854, 0.5
        %v859 = vtanh.pop %v858
        %v860 = vmul.f32 %v859, 0.5
        %v861 = vadd.f32 %v860, 0.5
        %v862 = vmul.f32 %v855, 0.5
        %v863 = vtanh.pop %v862
        %v864 = vmul.f32 %v863, 0.5
        %v865 = vadd.f32 %v864, 0.5
        %v866 = vtanh.pop %v856
        %v867 = vmul.f32 %v857, 0.5
        %v868 = vtanh.pop %v867
        %v869 = vmul.f32 %v868, 0.5
        %v870 = vadd.f32 %v869, 0.5
        %v871 = vmul.f32 %v865, %v711
        %v872 = vmul.f32 %v861, %v866
        %v873 = vadd.f32 %v871, %v872
        %v874 = vtanh.pop %v873
        %v875 = vmul.f32 %v870, %v874
        %v876 = vsel %vm705, 1, 0
        %877 = vset.pattern.permute.xlu0 0
        %878 = vperm.xlu0 %877, %v876
        %v879 = vpop.permute.xlu0 %878
        %vm880 = vcmp.eq.s32.totalorder %v879, 1
        %v881 = vsel %vm880, %v875, %v710
        %882 = vst [vmem:[#allocation3] sm:$0xff] %v881
        %v883 = vsel %vm880, %v873, %v711
        %884 = vst [vmem:[#allocation4] sm:$0xff] %v883
        %v885 = vsel %vm880, %v875, 0.0
        // Predicated region
        $region45: #{encoder_forward.1} parent=31 // pred_check
          %p886 = pneg %p562
        $region46: #{encoder_forward.1} parent=31 // pred_check_branch
          %888 = sbr.rel (%p886) target = $region48
        $region47: #{encoder_forward.1} parent=31 // pred_region
          %v890 = vcombine.high %v885, %v885
          %v892 = vunpack.c.l.s4 1966171168
          %v893 = vunpack.c.0.s8 %v892
          %v894 = vlaneseq
          %v895 = vshrl.u32 %v894, 7
          %v896 = vsub.s32 %v893, %v895
          %v897 = vrot.slane %v885, %v896
          %v899 = vunpack.c.l.s4 1966171168
          %v900 = vunpack.c.0.s8 %v899
          %v901 = vlaneseq
          %v902 = vshrl.u32 %v901, 7
          %v903 = vsub.s32 %v900, %v902
          %v904 = vrot.slane %v890, %v903
          %v905 = vcombine.high %v897, %v897
          %v906 = vcombine.high %v904, %v904
          %v908 = vunpack.c.l.s4 1966171168
          %v909 = vunpack.c.0.s8 %v908
          %v910 = vlaneseq
          %v911 = vshrl.u32 %v910, 7
          %v912 = vsub.s32 %v909, %v911
          %v913 = vrot.slane %v897, %v912
          %v915 = vunpack.c.l.s4 1966171168
          %v916 = vunpack.c.0.s8 %v915
          %v917 = vlaneseq
          %v918 = vshrl.u32 %v917, 7
          %v919 = vsub.s32 %v916, %v918
          %v920 = vrot.slane %v904, %v919
          %v922 = vunpack.c.l.s4 1966171168
          %v923 = vunpack.c.0.s8 %v922
          %v924 = vlaneseq
          %v925 = vshrl.u32 %v924, 7
          %v926 = vsub.s32 %v923, %v925
          %v927 = vrot.slane %v905, %v926
          %v929 = vunpack.c.l.s4 1966171168
          %v930 = vunpack.c.0.s8 %v929
          %v931 = vlaneseq
          %v932 = vshrl.u32 %v931, 7
          %v933 = vsub.s32 %v930, %v932
          %v934 = vrot.slane %v906, %v933
          %v935 = vcombine.high %v913, %v913
          %v936 = vcombine.high %v920, %v920
          %v937 = vcombine.high %v927, %v927
          %v938 = vcombine.high %v934, %v934
          %947 = vst [vmem:[#allocation2 + $0x1] sm:$0x1] %v913
          %948 = vst [vmem:[#allocation2 + $0x9] sm:$0x1] %v927
          %949 = vst [vmem:[#allocation2 + $0x11] sm:$0x1] %v935
          %950 = vst [vmem:[#allocation2 + $0x19] sm:$0x1] %v937
          %951 = vst [vmem:[#allocation2 + $0x21] sm:$0x1] %v920
          %952 = vst [vmem:[#allocation2 + $0x29] sm:$0x1] %v934
          %953 = vst [vmem:[#allocation2 + $0x31] sm:$0x1] %v936
          %954 = vst [vmem:[#allocation2 + $0x39] sm:$0x1] %v938
        $region48: #{encoder_forward.1} parent=31 // pred_fallthru
          _
        // Predicated region
        $region49: #{encoder_forward.1} parent=31 // pred_check
          %p955 = pneg %p305
        $region50: #{encoder_forward.1} parent=31 // pred_check_branch
          %957 = sbr.rel (%p955) target = $region52
        $region51: #{encoder_forward.1} parent=31 // pred_region
          %v959 = vcombine.high %v885, %v885
          %v961 = vunpack.c.l.s4 1966171168
          %v962 = vunpack.c.0.s8 %v961
          %v963 = vlaneseq
          %v964 = vshrl.u32 %v963, 7
          %v965 = vsub.s32 %v962, %v964
          %v966 = vrot.slane %v885, %v965
          %v968 = vunpack.c.l.s4 1966171168
          %v969 = vunpack.c.0.s8 %v968
          %v970 = vlaneseq
          %v971 = vshrl.u32 %v970, 7
          %v972 = vsub.s32 %v969, %v971
          %v973 = vrot.slane %v959, %v972
          %v974 = vcombine.high %v966, %v966
          %v975 = vcombine.high %v973, %v973
          %v977 = vunpack.c.l.s4 1966171168
          %v978 = vunpack.c.0.s8 %v977
          %v979 = vlaneseq
          %v980 = vshrl.u32 %v979, 7
          %v981 = vsub.s32 %v978, %v980
          %v982 = vrot.slane %v966, %v981
          %v984 = vunpack.c.l.s4 1966171168
          %v985 = vunpack.c.0.s8 %v984
          %v986 = vlaneseq
          %v987 = vshrl.u32 %v986, 7
          %v988 = vsub.s32 %v985, %v987
          %v989 = vrot.slane %v973, %v988
          %v991 = vunpack.c.l.s4 1966171168
          %v992 = vunpack.c.0.s8 %v991
          %v993 = vlaneseq
          %v994 = vshrl.u32 %v993, 7
          %v995 = vsub.s32 %v992, %v994
          %v996 = vrot.slane %v974, %v995
          %v998 = vunpack.c.l.s4 1966171168
          %v999 = vunpack.c.0.s8 %v998
          %v1000 = vlaneseq
          %v1001 = vshrl.u32 %v1000, 7
          %v1002 = vsub.s32 %v999, %v1001
          %v1003 = vrot.slane %v975, %v1002
          %v1004 = vcombine.high %v982, %v982
          %v1005 = vcombine.high %v989, %v989
          %v1006 = vcombine.high %v996, %v996
          %v1007 = vcombine.high %v1003, %v1003
          %1016 = vst [vmem:[#allocation2 + $0x6] sm:$0x1] %v982
          %1017 = vst [vmem:[#allocation2 + $0xe] sm:$0x1] %v996
          %1018 = vst [vmem:[#allocation2 + $0x16] sm:$0x1] %v1004
          %1019 = vst [vmem:[#allocation2 + $0x1e] sm:$0x1] %v1006
          %1020 = vst [vmem:[#allocation2 + $0x26] sm:$0x1] %v989
          %1021 = vst [vmem:[#allocation2 + $0x2e] sm:$0x1] %v1003
          %1022 = vst [vmem:[#allocation2 + $0x36] sm:$0x1] %v1005
          %1023 = vst [vmem:[#allocation2 + $0x3e] sm:$0x1] %v1007
        $region52: #{encoder_forward.1} parent=31 // pred_fallthru
          _
        %s1024 = sadd.s32 %s377, 2
        %s1025 = ssub.s32 13, %s377
        %s1026 = scalar_select %p305, %s1025, %s1024
        %v1027 = vstv %s1026
        %vm1028 = vcmp.lt.s32.totalorder %v1027, %v376
        %v1029 = vld [vmem:[%s286 + $0x40] sm:$0xff]
        %v1030 = vld [vmem:[%s286 + $0x48] sm:$0xff]
        %v1031 = vld [vmem:[%s286 + $0x50] sm:$0xff]
        %v1032 = vld [vmem:[%s286 + $0x58] sm:$0xff]
        %v1033 = vld [vmem:[#allocation3] sm:$0xff]
        %v1034 = vld [vmem:[#allocation4] sm:$0xff]
        %1035 = vmatprep.subr.mxu0 %v313
        %1036 = vmatpush1.msra.mxu0 %v312
        %1037 = vmatprep.subr.mxu0 %v317
        %1038 = vmatpush1.msra.mxu0 %v316
        %1039 = vmatprep.subr.mxu0 %v321
        %1040 = vmatpush1.msra.mxu0 %v320
        %1041 = vmatprep.subr.mxu0 %v325
        %1042 = vmatpush1.msra.mxu0 %v324
        %1043 = vmatprep.subr.mxu0 %v329
        %1044 = vmatpush1.msra.mxu0 %v328
        %1045 = vmatprep.subr.mxu0 %v333
        %1046 = vmatpush1.msra.mxu0 %v332
        %1047 = vmatprep.subr.mxu0 %v337
        %1048 = vmatpush1.msra.mxu0 %v336
        %1049 = vmatprep.subr.mxu0 %v341
        %1050 = vmatpush1.msra.mxu0 %v340
        %1051 = vmatprep.subr.mxu0 %v345
        %1052 = vmatpush1.msra.mxu0 %v344
        %1053 = vmatprep.subr.mxu0 %v349
        %1054 = vmatpush1.msra.mxu0 %v348
        %1055 = vmatprep.subr.mxu0 %v353
        %1056 = vmatpush1.msra.mxu0 %v352
        %1057 = vmatprep.subr.mxu0 %v357
        %1058 = vmatpush1.msra.mxu0 %v356
        %1059 = vmatprep.subr.mxu0 %v361
        %1060 = vmatpush1.msra.mxu0 %v360
        %1061 = vmatprep.subr.mxu0 %v365
        %1062 = vmatpush1.msra.mxu0 %v364
        %1063 = vmatprep.subr.mxu0 %v369
        %1064 = vmatpush1.msra.mxu0 %v368
        %1065 = vmatprep.subr.mxu0 %v373
        %1066 = vmatpush1.msra.mxu0 %v372
        %1067 = vmatprep.subr.mxu0 0.0
        %1068 = vmatpush1.msra.mxu0 0.0
        %1069 = vmatprep.subr.mxu0 0.0
        %1070 = vmatpush1.msra.mxu0 0.0
        %1071 = vmatprep.subr.mxu0 0.0
        %1072 = vmatpush1.msra.mxu0 0.0
        %1073 = vmatprep.subr.mxu0 0.0
        %1074 = vmatpush1.msra.mxu0 0.0
        %1075 = vmatprep.subr.mxu0 0.0
        %1076 = vmatpush1.msra.mxu0 0.0
        %1077 = vmatprep.subr.mxu0 0.0
        %1078 = vmatpush1.msra.mxu0 0.0
        %1079 = vmatprep.subr.mxu0 0.0
        %1080 = vmatpush1.msra.mxu0 0.0
        %1081 = vmatprep.subr.mxu0 0.0
        %1082 = vmatpush1.msra.mxu0 0.0
        %1083 = vmatprep.subr.mxu0 0.0
        %1084 = vmatpush1.msra.mxu0 0.0
        %1085 = vmatprep.subr.mxu0 0.0
        %1086 = vmatpush1.msra.mxu0 0.0
        %1087 = vmatprep.subr.mxu0 0.0
        %1088 = vmatpush1.msra.mxu0 0.0
        %1089 = vmatprep.subr.mxu0 0.0
        %1090 = vmatpush1.msra.mxu0 0.0
        %1091 = vmatprep.subr.mxu0 0.0
        %1092 = vmatpush1.msra.mxu0 0.0
        %1093 = vmatprep.subr.mxu0 0.0
        %1094 = vmatpush1.msra.mxu0 0.0
        %1095 = vmatprep.subr.mxu0 0.0
        %1096 = vmatpush1.msra.mxu0 0.0
        %1097 = vmatprep.subr.mxu0 0.0
        %1098 = vmatpush1.msra.mxu0 0.0
        %1099 = vmatprep.mubr.f32.mxu0 0.0
        %1100 = vmatmul.mubr.f32.gmra.mrb[0].mxu0 %v1033
        %v1101 = vpop.f32.mrb[0].mxu0
        %v1102 = vadd.f32 0.0, %v1101
        %v1103 = vpop.f32.mrb[0].mxu0
        %v1104 = vadd.f32 0.0, %v1103
        %1105 = vdwg.mxu0
        %1106 = vmatprep.subr.mxu0 %v315
        %1107 = vmatpush1.msra.mxu0 %v314
        %1108 = vmatprep.subr.mxu0 %v319
        %1109 = vmatpush1.msra.mxu0 %v318
        %1110 = vmatprep.subr.mxu0 %v323
        %1111 = vmatpush1.msra.mxu0 %v322
        %1112 = vmatprep.subr.mxu0 %v327
        %1113 = vmatpush1.msra.mxu0 %v326
        %1114 = vmatprep.subr.mxu0 %v331
        %1115 = vmatpush1.msra.mxu0 %v330
        %1116 = vmatprep.subr.mxu0 %v335
        %1117 = vmatpush1.msra.mxu0 %v334
        %1118 = vmatprep.subr.mxu0 %v339
        %1119 = vmatpush1.msra.mxu0 %v338
        %1120 = vmatprep.subr.mxu0 %v343
        %1121 = vmatpush1.msra.mxu0 %v342
        %1122 = vmatprep.subr.mxu0 %v347
        %1123 = vmatpush1.msra.mxu0 %v346
        %1124 = vmatprep.subr.mxu0 %v351
        %1125 = vmatpush1.msra.mxu0 %v350
        %1126 = vmatprep.subr.mxu0 %v355
        %1127 = vmatpush1.msra.mxu0 %v354
        %1128 = vmatprep.subr.mxu0 %v359
        %1129 = vmatpush1.msra.mxu0 %v358
        %1130 = vmatprep.subr.mxu0 %v363
        %1131 = vmatpush1.msra.mxu0 %v362
        %1132 = vmatprep.subr.mxu0 %v367
        %1133 = vmatpush1.msra.mxu0 %v366
        %1134 = vmatprep.subr.mxu0 %v371
        %1135 = vmatpush1.msra.mxu0 %v370
        %1136 = vmatprep.subr.mxu0 %v375
        %1137 = vmatpush1.msra.mxu0 %v374
        %1138 = vmatprep.subr.mxu0 0.0
        %1139 = vmatpush1.msra.mxu0 0.0
        %1140 = vmatprep.subr.mxu0 0.0
        %1141 = vmatpush1.msra.mxu0 0.0
        %1142 = vmatprep.subr.mxu0 0.0
        %1143 = vmatpush1.msra.mxu0 0.0
        %1144 = vmatprep.subr.mxu0 0.0
        %1145 = vmatpush1.msra.mxu0 0.0
        %1146 = vmatprep.subr.mxu0 0.0
        %1147 = vmatpush1.msra.mxu0 0.0
        %1148 = vmatprep.subr.mxu0 0.0
        %1149 = vmatpush1.msra.mxu0 0.0
        %1150 = vmatprep.subr.mxu0 0.0
        %1151 = vmatpush1.msra.mxu0 0.0
        %1152 = vmatprep.subr.mxu0 0.0
        %1153 = vmatpush1.msra.mxu0 0.0
        %1154 = vmatprep.subr.mxu0 0.0
        %1155 = vmatpush1.msra.mxu0 0.0
        %1156 = vmatprep.subr.mxu0 0.0
        %1157 = vmatpush1.msra.mxu0 0.0
        %1158 = vmatprep.subr.mxu0 0.0
        %1159 = vmatpush1.msra.mxu0 0.0
        %1160 = vmatprep.subr.mxu0 0.0
        %1161 = vmatpush1.msra.mxu0 0.0
        %1162 = vmatprep.subr.mxu0 0.0
        %1163 = vmatpush1.msra.mxu0 0.0
        %1164 = vmatprep.subr.mxu0 0.0
        %1165 = vmatpush1.msra.mxu0 0.0
        %1166 = vmatprep.subr.mxu0 0.0
        %1167 = vmatpush1.msra.mxu0 0.0
        %1168 = vmatprep.subr.mxu0 0.0
        %1169 = vmatpush1.msra.mxu0 0.0
        %1170 = vmatprep.mubr.f32.mxu0 0.0
        %1171 = vmatmul.mubr.f32.gmra.mrb[0].mxu0 %v1033
        %v1172 = vpop.f32.mrb[0].mxu0
        %v1173 = vadd.f32 0.0, %v1172
        %v1174 = vpop.f32.mrb[0].mxu0
        %v1175 = vadd.f32 0.0, %v1174
        %1176 = vdwg.mxu0
        %v1177 = vadd.f32 %v1029, %v1102
        %v1178 = vadd.f32 %v1030, %v1104
        %v1179 = vadd.f32 %v1031, %v1173
        %v1180 = vadd.f32 %v1032, %v1175
        %v1181 = vmul.f32 %v1177, 0.5
        %v1182 = vtanh.pop %v1181
        %v1183 = vmul.f32 %v1182, 0.5
        %v1184 = vadd.f32 %v1183, 0.5
        %v1185 = vmul.f32 %v1178, 0.5
        %v1186 = vtanh.pop %v1185
        %v1187 = vmul.f32 %v1186, 0.5
        %v1188 = vadd.f32 %v1187, 0.5
        %v1189 = vtanh.pop %v1179
        %v1190 = vmul.f32 %v1180, 0.5
        %v1191 = vtanh.pop %v1190
        %v1192 = vmul.f32 %v1191, 0.5
        %v1193 = vadd.f32 %v1192, 0.5
        %v1194 = vmul.f32 %v1188, %v1034
        %v1195 = vmul.f32 %v1184, %v1189
        %v1196 = vadd.f32 %v1194, %v1195
        %v1197 = vtanh.pop %v1196
        %v1198 = vmul.f32 %v1193, %v1197
        %v1199 = vsel %vm1028, 1, 0
        %1200 = vset.pattern.permute.xlu0 0
        %1201 = vperm.xlu0 %1200, %v1199
        %v1202 = vpop.permute.xlu0 %1201
        %vm1203 = vcmp.eq.s32.totalorder %v1202, 1
        %v1204 = vsel %vm1203, %v1198, %v1033
        %1205 = vst [vmem:[#allocation3] sm:$0xff] %v1204
        %v1206 = vsel %vm1203, %v1196, %v1034
        %1207 = vst [vmem:[#allocation4] sm:$0xff] %v1206
        %v1208 = vsel %vm1203, %v1198, 0.0
        // Predicated region
        $region53: #{encoder_forward.1} parent=31 // pred_check
          %p1209 = pneg %p562
        $region54: #{encoder_forward.1} parent=31 // pred_check_branch
          %1211 = sbr.rel (%p1209) target = $region56
        $region55: #{encoder_forward.1} parent=31 // pred_region
          %v1213 = vcombine.high %v1208, %v1208
          %v1215 = vunpack.c.l.s4 1966171168
          %v1216 = vunpack.c.0.s8 %v1215
          %v1217 = vlaneseq
          %v1218 = vshrl.u32 %v1217, 7
          %v1219 = vsub.s32 %v1216, %v1218
          %v1220 = vrot.slane %v1208, %v1219
          %v1222 = vunpack.c.l.s4 1966171168
          %v1223 = vunpack.c.0.s8 %v1222
          %v1224 = vlaneseq
          %v1225 = vshrl.u32 %v1224, 7
          %v1226 = vsub.s32 %v1223, %v1225
          %v1227 = vrot.slane %v1213, %v1226
          %v1228 = vcombine.high %v1220, %v1220
          %v1229 = vcombine.high %v1227, %v1227
          %v1231 = vunpack.c.l.s4 1966171168
          %v1232 = vunpack.c.0.s8 %v1231
          %v1233 = vlaneseq
          %v1234 = vshrl.u32 %v1233, 7
          %v1235 = vsub.s32 %v1232, %v1234
          %v1236 = vrot.slane %v1220, %v1235
          %v1238 = vunpack.c.l.s4 1966171168
          %v1239 = vunpack.c.0.s8 %v1238
          %v1240 = vlaneseq
          %v1241 = vshrl.u32 %v1240, 7
          %v1242 = vsub.s32 %v1239, %v1241
          %v1243 = vrot.slane %v1227, %v1242
          %v1245 = vunpack.c.l.s4 1966171168
          %v1246 = vunpack.c.0.s8 %v1245
          %v1247 = vlaneseq
          %v1248 = vshrl.u32 %v1247, 7
          %v1249 = vsub.s32 %v1246, %v1248
          %v1250 = vrot.slane %v1228, %v1249
          %v1252 = vunpack.c.l.s4 1966171168
          %v1253 = vunpack.c.0.s8 %v1252
          %v1254 = vlaneseq
          %v1255 = vshrl.u32 %v1254, 7
          %v1256 = vsub.s32 %v1253, %v1255
          %v1257 = vrot.slane %v1229, %v1256
          %v1258 = vcombine.high %v1236, %v1236
          %v1259 = vcombine.high %v1243, %v1243
          %v1260 = vcombine.high %v1250, %v1250
          %v1261 = vcombine.high %v1257, %v1257
          %1270 = vst [vmem:[#allocation2 + $0x2] sm:$0x1] %v1236
          %1271 = vst [vmem:[#allocation2 + $0xa] sm:$0x1] %v1250
          %1272 = vst [vmem:[#allocation2 + $0x12] sm:$0x1] %v1258
          %1273 = vst [vmem:[#allocation2 + $0x1a] sm:$0x1] %v1260
          %1274 = vst [vmem:[#allocation2 + $0x22] sm:$0x1] %v1243
          %1275 = vst [vmem:[#allocation2 + $0x2a] sm:$0x1] %v1257
          %1276 = vst [vmem:[#allocation2 + $0x32] sm:$0x1] %v1259
          %1277 = vst [vmem:[#allocation2 + $0x3a] sm:$0x1] %v1261
        $region56: #{encoder_forward.1} parent=31 // pred_fallthru
          _
        // Predicated region
        $region57: #{encoder_forward.1} parent=31 // pred_check
          %p1278 = pneg %p305
        $region58: #{encoder_forward.1} parent=31 // pred_check_branch
          %1280 = sbr.rel (%p1278) target = $region60
        $region59: #{encoder_forward.1} parent=31 // pred_region
          %v1282 = vcombine.high %v1208, %v1208
          %v1284 = vunpack.c.l.s4 1966171168
          %v1285 = vunpack.c.0.s8 %v1284
          %v1286 = vlaneseq
          %v1287 = vshrl.u32 %v1286, 7
          %v1288 = vsub.s32 %v1285, %v1287
          %v1289 = vrot.slane %v1208, %v1288
          %v1291 = vunpack.c.l.s4 1966171168
          %v1292 = vunpack.c.0.s8 %v1291
          %v1293 = vlaneseq
          %v1294 = vshrl.u32 %v1293, 7
          %v1295 = vsub.s32 %v1292, %v1294
          %v1296 = vrot.slane %v1282, %v1295
          %v1297 = vcombine.high %v1289, %v1289
          %v1298 = vcombine.high %v1296, %v1296
          %v1300 = vunpack.c.l.s4 1966171168
          %v1301 = vunpack.c.0.s8 %v1300
          %v1302 = vlaneseq
          %v1303 = vshrl.u32 %v1302, 7
          %v1304 = vsub.s32 %v1301, %v1303
          %v1305 = vrot.slane %v1289, %v1304
          %v1307 = vunpack.c.l.s4 1966171168
          %v1308 = vunpack.c.0.s8 %v1307
          %v1309 = vlaneseq
          %v1310 = vshrl.u32 %v1309, 7
          %v1311 = vsub.s32 %v1308, %v1310
          %v1312 = vrot.slane %v1296, %v1311
          %v1314 = vunpack.c.l.s4 1966171168
          %v1315 = vunpack.c.0.s8 %v1314
          %v1316 = vlaneseq
          %v1317 = vshrl.u32 %v1316, 7
          %v1318 = vsub.s32 %v1315, %v1317
          %v1319 = vrot.slane %v1297, %v1318
          %v1321 = vunpack.c.l.s4 1966171168
          %v1322 = vunpack.c.0.s8 %v1321
          %v1323 = vlaneseq
          %v1324 = vshrl.u32 %v1323, 7
          %v1325 = vsub.s32 %v1322, %v1324
          %v1326 = vrot.slane %v1298, %v1325
          %v1327 = vcombine.high %v1305, %v1305
          %v1328 = vcombine.high %v1312, %v1312
          %v1329 = vcombine.high %v1319, %v1319
          %v1330 = vcombine.high %v1326, %v1326
          %1339 = vst [vmem:[#allocation2 + $0x5] sm:$0x1] %v1305
          %1340 = vst [vmem:[#allocation2 + $0xd] sm:$0x1] %v1319
          %1341 = vst [vmem:[#allocation2 + $0x15] sm:$0x1] %v1327
          %1342 = vst [vmem:[#allocation2 + $0x1d] sm:$0x1] %v1329
          %1343 = vst [vmem:[#allocation2 + $0x25] sm:$0x1] %v1312
          %1344 = vst [vmem:[#allocation2 + $0x2d] sm:$0x1] %v1326
          %1345 = vst [vmem:[#allocation2 + $0x35] sm:$0x1] %v1328
          %1346 = vst [vmem:[#allocation2 + $0x3d] sm:$0x1] %v1330
        $region60: #{encoder_forward.1} parent=31 // pred_fallthru
          _
        %s1347 = sadd.s32 %s377, 3
        %s1348 = ssub.s32 12, %s377
        %s1349 = scalar_select %p305, %s1348, %s1347
        %v1350 = vstv %s1349
        %vm1351 = vcmp.lt.s32.totalorder %v1350, %v376
        %v1352 = vld [vmem:[%s286 + $0x60] sm:$0xff]
        %v1353 = vld [vmem:[%s286 + $0x68] sm:$0xff]
        %v1354 = vld [vmem:[%s286 + $0x70] sm:$0xff]
        %v1355 = vld [vmem:[%s286 + $0x78] sm:$0xff]
        %v1356 = vld [vmem:[#allocation3] sm:$0xff]
        %v1357 = vld [vmem:[#allocation4] sm:$0xff]
        %1358 = vmatprep.subr.mxu0 %v313
        %1359 = vmatpush1.msra.mxu0 %v312
        %1360 = vmatprep.subr.mxu0 %v317
        %1361 = vmatpush1.msra.mxu0 %v316
        %1362 = vmatprep.subr.mxu0 %v321
        %1363 = vmatpush1.msra.mxu0 %v320
        %1364 = vmatprep.subr.mxu0 %v325
        %1365 = vmatpush1.msra.mxu0 %v324
        %1366 = vmatprep.subr.mxu0 %v329
        %1367 = vmatpush1.msra.mxu0 %v328
        %1368 = vmatprep.subr.mxu0 %v333
        %1369 = vmatpush1.msra.mxu0 %v332
        %1370 = vmatprep.subr.mxu0 %v337
        %1371 = vmatpush1.msra.mxu0 %v336
        %1372 = vmatprep.subr.mxu0 %v341
        %1373 = vmatpush1.msra.mxu0 %v340
        %1374 = vmatprep.subr.mxu0 %v345
        %1375 = vmatpush1.msra.mxu0 %v344
        %1376 = vmatprep.subr.mxu0 %v349
        %1377 = vmatpush1.msra.mxu0 %v348
        %1378 = vmatprep.subr.mxu0 %v353
        %1379 = vmatpush1.msra.mxu0 %v352
        %1380 = vmatprep.subr.mxu0 %v357
        %1381 = vmatpush1.msra.mxu0 %v356
        %1382 = vmatprep.subr.mxu0 %v361
        %1383 = vmatpush1.msra.mxu0 %v360
        %1384 = vmatprep.subr.mxu0 %v365
        %1385 = vmatpush1.msra.mxu0 %v364
        %1386 = vmatprep.subr.mxu0 %v369
        %1387 = vmatpush1.msra.mxu0 %v368
        %1388 = vmatprep.subr.mxu0 %v373
        %1389 = vmatpush1.msra.mxu0 %v372
        %1390 = vmatprep.subr.mxu0 0.0
        %1391 = vmatpush1.msra.mxu0 0.0
        %1392 = vmatprep.subr.mxu0 0.0
        %1393 = vmatpush1.msra.mxu0 0.0
        %1394 = vmatprep.subr.mxu0 0.0
        %1395 = vmatpush1.msra.mxu0 0.0
        %1396 = vmatprep.subr.mxu0 0.0
        %1397 = vmatpush1.msra.mxu0 0.0
        %1398 = vmatprep.subr.mxu0 0.0
        %1399 = vmatpush1.msra.mxu0 0.0
        %1400 = vmatprep.subr.mxu0 0.0
        %1401 = vmatpush1.msra.mxu0 0.0
        %1402 = vmatprep.subr.mxu0 0.0
        %1403 = vmatpush1.msra.mxu0 0.0
        %1404 = vmatprep.subr.mxu0 0.0
        %1405 = vmatpush1.msra.mxu0 0.0
        %1406 = vmatprep.subr.mxu0 0.0
        %1407 = vmatpush1.msra.mxu0 0.0
        %1408 = vmatprep.subr.mxu0 0.0
        %1409 = vmatpush1.msra.mxu0 0.0
        %1410 = vmatprep.subr.mxu0 0.0
        %1411 = vmatpush1.msra.mxu0 0.0
        %1412 = vmatprep.subr.mxu0 0.0
        %1413 = vmatpush1.msra.mxu0 0.0
        %1414 = vmatprep.subr.mxu0 0.0
        %1415 = vmatpush1.msra.mxu0 0.0
        %1416 = vmatprep.subr.mxu0 0.0
        %1417 = vmatpush1.msra.mxu0 0.0
        %1418 = vmatprep.subr.mxu0 0.0
        %1419 = vmatpush1.msra.mxu0 0.0
        %1420 = vmatprep.subr.mxu0 0.0
        %1421 = vmatpush1.msra.mxu0 0.0
        %1422 = vmatprep.mubr.f32.mxu0 0.0
        %1423 = vmatmul.mubr.f32.gmra.mrb[0].mxu0 %v1356
        %v1424 = vpop.f32.mrb[0].mxu0
        %v1425 = vadd.f32 0.0, %v1424
        %v1426 = vpop.f32.mrb[0].mxu0
        %v1427 = vadd.f32 0.0, %v1426
        %1428 = vdwg.mxu0
        %1429 = vmatprep.subr.mxu0 %v315
        %1430 = vmatpush1.msra.mxu0 %v314
        %1431 = vmatprep.subr.mxu0 %v319
        %1432 = vmatpush1.msra.mxu0 %v318
        %1433 = vmatprep.subr.mxu0 %v323
        %1434 = vmatpush1.msra.mxu0 %v322
        %1435 = vmatprep.subr.mxu0 %v327
        %1436 = vmatpush1.msra.mxu0 %v326
        %1437 = vmatprep.subr.mxu0 %v331
        %1438 = vmatpush1.msra.mxu0 %v330
        %1439 = vmatprep.subr.mxu0 %v335
        %1440 = vmatpush1.msra.mxu0 %v334
        %1441 = vmatprep.subr.mxu0 %v339
        %1442 = vmatpush1.msra.mxu0 %v338
        %1443 = vmatprep.subr.mxu0 %v343
        %1444 = vmatpush1.msra.mxu0 %v342
        %1445 = vmatprep.subr.mxu0 %v347
        %1446 = vmatpush1.msra.mxu0 %v346
        %1447 = vmatprep.subr.mxu0 %v351
        %1448 = vmatpush1.msra.mxu0 %v350
        %1449 = vmatprep.subr.mxu0 %v355
        %1450 = vmatpush1.msra.mxu0 %v354
        %1451 = vmatprep.subr.mxu0 %v359
        %1452 = vmatpush1.msra.mxu0 %v358
        %1453 = vmatprep.subr.mxu0 %v363
        %1454 = vmatpush1.msra.mxu0 %v362
        %1455 = vmatprep.subr.mxu0 %v367
        %1456 = vmatpush1.msra.mxu0 %v366
        %1457 = vmatprep.subr.mxu0 %v371
        %1458 = vmatpush1.msra.mxu0 %v370
        %1459 = vmatprep.subr.mxu0 %v375
        %1460 = vmatpush1.msra.mxu0 %v374
        %1461 = vmatprep.subr.mxu0 0.0
        %1462 = vmatpush1.msra.mxu0 0.0
        %1463 = vmatprep.subr.mxu0 0.0
        %1464 = vmatpush1.msra.mxu0 0.0
        %1465 = vmatprep.subr.mxu0 0.0
        %1466 = vmatpush1.msra.mxu0 0.0
        %1467 = vmatprep.subr.mxu0 0.0
        %1468 = vmatpush1.msra.mxu0 0.0
        %1469 = vmatprep.subr.mxu0 0.0
        %1470 = vmatpush1.msra.mxu0 0.0
        %1471 = vmatprep.subr.mxu0 0.0
        %1472 = vmatpush1.msra.mxu0 0.0
        %1473 = vmatprep.subr.mxu0 0.0
        %1474 = vmatpush1.msra.mxu0 0.0
        %1475 = vmatprep.subr.mxu0 0.0
        %1476 = vmatpush1.msra.mxu0 0.0
        %1477 = vmatprep.subr.mxu0 0.0
        %1478 = vmatpush1.msra.mxu0 0.0
        %1479 = vmatprep.subr.mxu0 0.0
        %1480 = vmatpush1.msra.mxu0 0.0
        %1481 = vmatprep.subr.mxu0 0.0
        %1482 = vmatpush1.msra.mxu0 0.0
        %1483 = vmatprep.subr.mxu0 0.0
        %1484 = vmatpush1.msra.mxu0 0.0
        %1485 = vmatprep.subr.mxu0 0.0
        %1486 = vmatpush1.msra.mxu0 0.0
        %1487 = vmatprep.subr.mxu0 0.0
        %1488 = vmatpush1.msra.mxu0 0.0
        %1489 = vmatprep.subr.mxu0 0.0
        %1490 = vmatpush1.msra.mxu0 0.0
        %1491 = vmatprep.subr.mxu0 0.0
        %1492 = vmatpush1.msra.mxu0 0.0
        %1493 = vmatprep.mubr.f32.mxu0 0.0
        %1494 = vmatmul.mubr.f32.gmra.mrb[0].mxu0 %v1356
        %v1495 = vpop.f32.mrb[0].mxu0
        %v1496 = vadd.f32 0.0, %v1495
        %v1497 = vpop.f32.mrb[0].mxu0
        %v1498 = vadd.f32 0.0, %v1497
        %1499 = vdwg.mxu0
        %v1500 = vadd.f32 %v1352, %v1425
        %v1501 = vadd.f32 %v1353, %v1427
        %v1502 = vadd.f32 %v1354, %v1496
        %v1503 = vadd.f32 %v1355, %v1498
        %v1504 = vmul.f32 %v1500, 0.5
        %v1505 = vtanh.pop %v1504
        %v1506 = vmul.f32 %v1505, 0.5
        %v1507 = vadd.f32 %v1506, 0.5
        %v1508 = vmul.f32 %v1501, 0.5
        %v1509 = vtanh.pop %v1508
        %v1510 = vmul.f32 %v1509, 0.5
        %v1511 = vadd.f32 %v1510, 0.5
        %v1512 = vtanh.pop %v1502
        %v1513 = vmul.f32 %v1503, 0.5
        %v1514 = vtanh.pop %v1513
        %v1515 = vmul.f32 %v1514, 0.5
        %v1516 = vadd.f32 %v1515, 0.5
        %v1517 = vmul.f32 %v1511, %v1357
        %v1518 = vmul.f32 %v1507, %v1512
        %v1519 = vadd.f32 %v1517, %v1518
        %v1520 = vtanh.pop %v1519
        %v1521 = vmul.f32 %v1516, %v1520
        %v1522 = vsel %vm1351, 1, 0
        %1523 = vset.pattern.permute.xlu0 0
        %1524 = vperm.xlu0 %1523, %v1522
        %v1525 = vpop.permute.xlu0 %1524
        %vm1526 = vcmp.eq.s32.totalorder %v1525, 1
        %v1527 = vsel %vm1526, %v1521, %v1356
        %1528 = vst [vmem:[#allocation3] sm:$0xff] %v1527
        %v1529 = vsel %vm1526, %v1519, %v1357
        %1530 = vst [vmem:[#allocation4] sm:$0xff] %v1529
        %v1531 = vsel %vm1526, %v1521, 0.0
        // Predicated region
        $region61: #{encoder_forward.1} parent=31 // pred_check
          %p1532 = pneg %p562
        $region62: #{encoder_forward.1} parent=31 // pred_check_branch
          %1534 = sbr.rel (%p1532) target = $region64
        $region63: #{encoder_forward.1} parent=31 // pred_region
          %v1536 = vcombine.high %v1531, %v1531
          %v1538 = vunpack.c.l.s4 1966171168
          %v1539 = vunpack.c.0.s8 %v1538
          %v1540 = vlaneseq
          %v1541 = vshrl.u32 %v1540, 7
          %v1542 = vsub.s32 %v1539, %v1541
          %v1543 = vrot.slane %v1531, %v1542
          %v1545 = vunpack.c.l.s4 1966171168
          %v1546 = vunpack.c.0.s8 %v1545
          %v1547 = vlaneseq
          %v1548 = vshrl.u32 %v1547, 7
          %v1549 = vsub.s32 %v1546, %v1548
          %v1550 = vrot.slane %v1536, %v1549
          %v1551 = vcombine.high %v1543, %v1543
          %v1552 = vcombine.high %v1550, %v1550
          %v1554 = vunpack.c.l.s4 1966171168
          %v1555 = vunpack.c.0.s8 %v1554
          %v1556 = vlaneseq
          %v1557 = vshrl.u32 %v1556, 7
          %v1558 = vsub.s32 %v1555, %v1557
          %v1559 = vrot.slane %v1543, %v1558
          %v1561 = vunpack.c.l.s4 1966171168
          %v1562 = vunpack.c.0.s8 %v1561
          %v1563 = vlaneseq
          %v1564 = vshrl.u32 %v1563, 7
          %v1565 = vsub.s32 %v1562, %v1564
          %v1566 = vrot.slane %v1550, %v1565
          %v1568 = vunpack.c.l.s4 1966171168
          %v1569 = vunpack.c.0.s8 %v1568
          %v1570 = vlaneseq
          %v1571 = vshrl.u32 %v1570, 7
          %v1572 = vsub.s32 %v1569, %v1571
          %v1573 = vrot.slane %v1551, %v1572
          %v1575 = vunpack.c.l.s4 1966171168
          %v1576 = vunpack.c.0.s8 %v1575
          %v1577 = vlaneseq
          %v1578 = vshrl.u32 %v1577, 7
          %v1579 = vsub.s32 %v1576, %v1578
          %v1580 = vrot.slane %v1552, %v1579
          %v1581 = vcombine.high %v1559, %v1559
          %v1582 = vcombine.high %v1566, %v1566
          %v1583 = vcombine.high %v1573, %v1573
          %v1584 = vcombine.high %v1580, %v1580
          %1593 = vst [vmem:[#allocation2 + $0x3] sm:$0x1] %v1559
          %1594 = vst [vmem:[#allocation2 + $0xb] sm:$0x1] %v1573
          %1595 = vst [vmem:[#allocation2 + $0x13] sm:$0x1] %v1581
          %1596 = vst [vmem:[#allocation2 + $0x1b] sm:$0x1] %v1583
          %1597 = vst [vmem:[#allocation2 + $0x23] sm:$0x1] %v1566
          %1598 = vst [vmem:[#allocation2 + $0x2b] sm:$0x1] %v1580
          %1599 = vst [vmem:[#allocation2 + $0x33] sm:$0x1] %v1582
          %1600 = vst [vmem:[#allocation2 + $0x3b] sm:$0x1] %v1584
        $region64: #{encoder_forward.1} parent=31 // pred_fallthru
          _
        // Predicated region
        $region65: #{encoder_forward.1} parent=31 // pred_check
          %p1601 = pneg %p305
        $region66: #{encoder_forward.1} parent=31 // pred_check_branch
          %1603 = sbr.rel (%p1601) target = $region68
        $region67: #{encoder_forward.1} parent=31 // pred_region
          %v1605 = vcombine.high %v1531, %v1531
          %v1607 = vunpack.c.l.s4 1966171168
          %v1608 = vunpack.c.0.s8 %v1607
          %v1609 = vlaneseq
          %v1610 = vshrl.u32 %v1609, 7
          %v1611 = vsub.s32 %v1608, %v1610
          %v1612 = vrot.slane %v1531, %v1611
          %v1614 = vunpack.c.l.s4 1966171168
          %v1615 = vunpack.c.0.s8 %v1614
          %v1616 = vlaneseq
          %v1617 = vshrl.u32 %v1616, 7
          %v1618 = vsub.s32 %v1615, %v1617
          %v1619 = vrot.slane %v1605, %v1618
          %v1620 = vcombine.high %v1612, %v1612
          %v1621 = vcombine.high %v1619, %v1619
          %v1623 = vunpack.c.l.s4 1966171168
          %v1624 = vunpack.c.0.s8 %v1623
          %v1625 = vlaneseq
          %v1626 = vshrl.u32 %v1625, 7
          %v1627 = vsub.s32 %v1624, %v1626
          %v1628 = vrot.slane %v1612, %v1627
          %v1630 = vunpack.c.l.s4 1966171168
          %v1631 = vunpack.c.0.s8 %v1630
          %v1632 = vlaneseq
          %v1633 = vshrl.u32 %v1632, 7
          %v1634 = vsub.s32 %v1631, %v1633
          %v1635 = vrot.slane %v1619, %v1634
          %v1637 = vunpack.c.l.s4 1966171168
          %v1638 = vunpack.c.0.s8 %v1637
          %v1639 = vlaneseq
          %v1640 = vshrl.u32 %v1639, 7
          %v1641 = vsub.s32 %v1638, %v1640
          %v1642 = vrot.slane %v1620, %v1641
          %v1644 = vunpack.c.l.s4 1966171168
          %v1645 = vunpack.c.0.s8 %v1644
          %v1646 = vlaneseq
          %v1647 = vshrl.u32 %v1646, 7
          %v1648 = vsub.s32 %v1645, %v1647
          %v1649 = vrot.slane %v1621, %v1648
          %v1650 = vcombine.high %v1628, %v1628
          %v1651 = vcombine.high %v1635, %v1635
          %v1652 = vcombine.high %v1642, %v1642
          %v1653 = vcombine.high %v1649, %v1649
          %1662 = vst [vmem:[#allocation2 + $0x4] sm:$0x1] %v1628
          %1663 = vst [vmem:[#allocation2 + $0xc] sm:$0x1] %v1642
          %1664 = vst [vmem:[#allocation2 + $0x14] sm:$0x1] %v1650
          %1665 = vst [vmem:[#allocation2 + $0x1c] sm:$0x1] %v1652
          %1666 = vst [vmem:[#allocation2 + $0x24] sm:$0x1] %v1635
          %1667 = vst [vmem:[#allocation2 + $0x2c] sm:$0x1] %v1649
          %1668 = vst [vmem:[#allocation2 + $0x34] sm:$0x1] %v1651
          %1669 = vst [vmem:[#allocation2 + $0x3c] sm:$0x1] %v1653
        $region68: #{encoder_forward.1} parent=31 // pred_fallthru
          _
        %s1670 = sadd.s32 %s377, 4
        %s1671 = ssub.s32 11, %s377
        %s1672 = scalar_select %p305, %s1671, %s1670
        %v1673 = vstv %s1672
        %vm1674 = vcmp.lt.s32.totalorder %v1673, %v376
        %v1675 = vld [vmem:[%s286 + $0x80] sm:$0xff]
        %v1676 = vld [vmem:[%s286 + $0x88] sm:$0xff]
        %v1677 = vld [vmem:[%s286 + $0x90] sm:$0xff]
        %v1678 = vld [vmem:[%s286 + $0x98] sm:$0xff]
        %v1679 = vld [vmem:[#allocation3] sm:$0xff]
        %v1680 = vld [vmem:[#allocation4] sm:$0xff]
        %1681 = vmatprep.subr.mxu0 %v313
        %1682 = vmatpush1.msra.mxu0 %v312
        %1683 = vmatprep.subr.mxu0 %v317
        %1684 = vmatpush1.msra.mxu0 %v316
        %1685 = vmatprep.subr.mxu0 %v321
        %1686 = vmatpush1.msra.mxu0 %v320
        %1687 = vmatprep.subr.mxu0 %v325
        %1688 = vmatpush1.msra.mxu0 %v324
        %1689 = vmatprep.subr.mxu0 %v329
        %1690 = vmatpush1.msra.mxu0 %v328
        %1691 = vmatprep.subr.mxu0 %v333
        %1692 = vmatpush1.msra.mxu0 %v332
        %1693 = vmatprep.subr.mxu0 %v337
        %1694 = vmatpush1.msra.mxu0 %v336
        %1695 = vmatprep.subr.mxu0 %v341
        %1696 = vmatpush1.msra.mxu0 %v340
        %1697 = vmatprep.subr.mxu0 %v345
        %1698 = vmatpush1.msra.mxu0 %v344
        %1699 = vmatprep.subr.mxu0 %v349
        %1700 = vmatpush1.msra.mxu0 %v348
        %1701 = vmatprep.subr.mxu0 %v353
        %1702 = vmatpush1.msra.mxu0 %v352
        %1703 = vmatprep.subr.mxu0 %v357
        %1704 = vmatpush1.msra.mxu0 %v356
        %1705 = vmatprep.subr.mxu0 %v361
        %1706 = vmatpush1.msra.mxu0 %v360
        %1707 = vmatprep.subr.mxu0 %v365
        %1708 = vmatpush1.msra.mxu0 %v364
        %1709 = vmatprep.subr.mxu0 %v369
        %1710 = vmatpush1.msra.mxu0 %v368
        %1711 = vmatprep.subr.mxu0 %v373
        %1712 = vmatpush1.msra.mxu0 %v372
        %1713 = vmatprep.subr.mxu0 0.0
        %1714 = vmatpush1.msra.mxu0 0.0
        %1715 = vmatprep.subr.mxu0 0.0
        %1716 = vmatpush1.msra.mxu0 0.0
        %1717 = vmatprep.subr.mxu0 0.0
        %1718 = vmatpush1.msra.mxu0 0.0
        %1719 = vmatprep.subr.mxu0 0.0
        %1720 = vmatpush1.msra.mxu0 0.0
        %1721 = vmatprep.subr.mxu0 0.0
        %1722 = vmatpush1.msra.mxu0 0.0
        %1723 = vmatprep.subr.mxu0 0.0
        %1724 = vmatpush1.msra.mxu0 0.0
        %1725 = vmatprep.subr.mxu0 0.0
        %1726 = vmatpush1.msra.mxu0 0.0
        %1727 = vmatprep.subr.mxu0 0.0
        %1728 = vmatpush1.msra.mxu0 0.0
        %1729 = vmatprep.subr.mxu0 0.0
        %1730 = vmatpush1.msra.mxu0 0.0
        %1731 = vmatprep.subr.mxu0 0.0
        %1732 = vmatpush1.msra.mxu0 0.0
        %1733 = vmatprep.subr.mxu0 0.0
        %1734 = vmatpush1.msra.mxu0 0.0
        %1735 = vmatprep.subr.mxu0 0.0
        %1736 = vmatpush1.msra.mxu0 0.0
        %1737 = vmatprep.subr.mxu0 0.0
        %1738 = vmatpush1.msra.mxu0 0.0
        %1739 = vmatprep.subr.mxu0 0.0
        %1740 = vmatpush1.msra.mxu0 0.0
        %1741 = vmatprep.subr.mxu0 0.0
        %1742 = vmatpush1.msra.mxu0 0.0
        %1743 = vmatprep.subr.mxu0 0.0
        %1744 = vmatpush1.msra.mxu0 0.0
        %1745 = vmatprep.mubr.f32.mxu0 0.0
        %1746 = vmatmul.mubr.f32.gmra.mrb[0].mxu0 %v1679
        %v1747 = vpop.f32.mrb[0].mxu0
        %v1748 = vadd.f32 0.0, %v1747
        %v1749 = vpop.f32.mrb[0].mxu0
        %v1750 = vadd.f32 0.0, %v1749
        %1751 = vdwg.mxu0
        %1752 = vmatprep.subr.mxu0 %v315
        %1753 = vmatpush1.msra.mxu0 %v314
        %1754 = vmatprep.subr.mxu0 %v319
        %1755 = vmatpush1.msra.mxu0 %v318
        %1756 = vmatprep.subr.mxu0 %v323
        %1757 = vmatpush1.msra.mxu0 %v322
        %1758 = vmatprep.subr.mxu0 %v327
        %1759 = vmatpush1.msra.mxu0 %v326
        %1760 = vmatprep.subr.mxu0 %v331
        %1761 = vmatpush1.msra.mxu0 %v330
        %1762 = vmatprep.subr.mxu0 %v335
        %1763 = vmatpush1.msra.mxu0 %v334
        %1764 = vmatprep.subr.mxu0 %v339
        %1765 = vmatpush1.msra.mxu0 %v338
        %1766 = vmatprep.subr.mxu0 %v343
        %1767 = vmatpush1.msra.mxu0 %v342
        %1768 = vmatprep.subr.mxu0 %v347
        %1769 = vmatpush1.msra.mxu0 %v346
        %1770 = vmatprep.subr.mxu0 %v351
        %1771 = vmatpush1.msra.mxu0 %v350
        %1772 = vmatprep.subr.mxu0 %v355
        %1773 = vmatpush1.msra.mxu0 %v354
        %1774 = vmatprep.subr.mxu0 %v359
        %1775 = vmatpush1.msra.mxu0 %v358
        %1776 = vmatprep.subr.mxu0 %v363
        %1777 = vmatpush1.msra.mxu0 %v362
        %1778 = vmatprep.subr.mxu0 %v367
        %1779 = vmatpush1.msra.mxu0 %v366
        %1780 = vmatprep.subr.mxu0 %v371
        %1781 = vmatpush1.msra.mxu0 %v370
        %1782 = vmatprep.subr.mxu0 %v375
        %1783 = vmatpush1.msra.mxu0 %v374
        %1784 = vmatprep.subr.mxu0 0.0
        %1785 = vmatpush1.msra.mxu0 0.0
        %1786 = vmatprep.subr.mxu0 0.0
        %1787 = vmatpush1.msra.mxu0 0.0
        %1788 = vmatprep.subr.mxu0 0.0
        %1789 = vmatpush1.msra.mxu0 0.0
        %1790 = vmatprep.subr.mxu0 0.0
        %1791 = vmatpush1.msra.mxu0 0.0
        %1792 = vmatprep.subr.mxu0 0.0
        %1793 = vmatpush1.msra.mxu0 0.0
        %1794 = vmatprep.subr.mxu0 0.0
        %1795 = vmatpush1.msra.mxu0 0.0
        %1796 = vmatprep.subr.mxu0 0.0
        %1797 = vmatpush1.msra.mxu0 0.0
        %1798 = vmatprep.subr.mxu0 0.0
        %1799 = vmatpush1.msra.mxu0 0.0
        %1800 = vmatprep.subr.mxu0 0.0
        %1801 = vmatpush1.msra.mxu0 0.0
        %1802 = vmatprep.subr.mxu0 0.0
        %1803 = vmatpush1.msra.mxu0 0.0
        %1804 = vmatprep.subr.mxu0 0.0
        %1805 = vmatpush1.msra.mxu0 0.0
        %1806 = vmatprep.subr.mxu0 0.0
        %1807 = vmatpush1.msra.mxu0 0.0
        %1808 = vmatprep.subr.mxu0 0.0
        %1809 = vmatpush1.msra.mxu0 0.0
        %1810 = vmatprep.subr.mxu0 0.0
        %1811 = vmatpush1.msra.mxu0 0.0
        %1812 = vmatprep.subr.mxu0 0.0
        %1813 = vmatpush1.msra.mxu0 0.0
        %1814 = vmatprep.subr.mxu0 0.0
        %1815 = vmatpush1.msra.mxu0 0.0
        %1816 = vmatprep.mubr.f32.mxu0 0.0
        %1817 = vmatmul.mubr.f32.gmra.mrb[0].mxu0 %v1679
        %v1818 = vpop.f32.mrb[0].mxu0
        %v1819 = vadd.f32 0.0, %v1818
        %v1820 = vpop.f32.mrb[0].mxu0
        %v1821 = vadd.f32 0.0, %v1820
        %1822 = vdwg.mxu0
        %v1823 = vadd.f32 %v1675, %v1748
        %v1824 = vadd.f32 %v1676, %v1750
        %v1825 = vadd.f32 %v1677, %v1819
        %v1826 = vadd.f32 %v1678, %v1821
        %v1827 = vmul.f32 %v1823, 0.5
        %v1828 = vtanh.pop %v1827
        %v1829 = vmul.f32 %v1828, 0.5
        %v1830 = vadd.f32 %v1829, 0.5
        %v1831 = vmul.f32 %v1824, 0.5
        %v1832 = vtanh.pop %v1831
        %v1833 = vmul.f32 %v1832, 0.5
        %v1834 = vadd.f32 %v1833, 0.5
        %v1835 = vtanh.pop %v1825
        %v1836 = vmul.f32 %v1826, 0.5
        %v1837 = vtanh.pop %v1836
        %v1838 = vmul.f32 %v1837, 0.5
        %v1839 = vadd.f32 %v1838, 0.5
        %v1840 = vmul.f32 %v1834, %v1680
        %v1841 = vmul.f32 %v1830, %v1835
        %v1842 = vadd.f32 %v1840, %v1841
        %v1843 = vtanh.pop %v1842
        %v1844 = vmul.f32 %v1839, %v1843
        %v1845 = vsel %vm1674, 1, 0
        %1846 = vset.pattern.permute.xlu0 0
        %1847 = vperm.xlu0 %1846, %v1845
        %v1848 = vpop.permute.xlu0 %1847
        %vm1849 = vcmp.eq.s32.totalorder %v1848, 1
        %v1850 = vsel %vm1849, %v1844, %v1679
        %1851 = vst [vmem:[#allocation3] sm:$0xff] %v1850
        %v1852 = vsel %vm1849, %v1842, %v1680
        %1853 = vst [vmem:[#allocation4] sm:$0xff] %v1852
        %v1854 = vsel %vm1849, %v1844, 0.0
        // Predicated region
        $region69: #{encoder_forward.1} parent=31 // pred_check
          %p1855 = pneg %p562
        $region70: #{encoder_forward.1} parent=31 // pred_check_branch
          %1857 = sbr.rel (%p1855) target = $region72
        $region71: #{encoder_forward.1} parent=31 // pred_region
          %v1859 = vcombine.high %v1854, %v1854
          %v1861 = vunpack.c.l.s4 1966171168
          %v1862 = vunpack.c.0.s8 %v1861
          %v1863 = vlaneseq
          %v1864 = vshrl.u32 %v1863, 7
          %v1865 = vsub.s32 %v1862, %v1864
          %v1866 = vrot.slane %v1854, %v1865
          %v1868 = vunpack.c.l.s4 1966171168
          %v1869 = vunpack.c.0.s8 %v1868
          %v1870 = vlaneseq
          %v1871 = vshrl.u32 %v1870, 7
          %v1872 = vsub.s32 %v1869, %v1871
          %v1873 = vrot.slane %v1859, %v1872
          %v1874 = vcombine.high %v1866, %v1866
          %v1875 = vcombine.high %v1873, %v1873
          %v1877 = vunpack.c.l.s4 1966171168
          %v1878 = vunpack.c.0.s8 %v1877
          %v1879 = vlaneseq
          %v1880 = vshrl.u32 %v1879, 7
          %v1881 = vsub.s32 %v1878, %v1880
          %v1882 = vrot.slane %v1866, %v1881
          %v1884 = vunpack.c.l.s4 1966171168
          %v1885 = vunpack.c.0.s8 %v1884
          %v1886 = vlaneseq
          %v1887 = vshrl.u32 %v1886, 7
          %v1888 = vsub.s32 %v1885, %v1887
          %v1889 = vrot.slane %v1873, %v1888
          %v1891 = vunpack.c.l.s4 1966171168
          %v1892 = vunpack.c.0.s8 %v1891
          %v1893 = vlaneseq
          %v1894 = vshrl.u32 %v1893, 7
          %v1895 = vsub.s32 %v1892, %v1894
          %v1896 = vrot.slane %v1874, %v1895
          %v1898 = vunpack.c.l.s4 1966171168
          %v1899 = vunpack.c.0.s8 %v1898
          %v1900 = vlaneseq
          %v1901 = vshrl.u32 %v1900, 7
          %v1902 = vsub.s32 %v1899, %v1901
          %v1903 = vrot.slane %v1875, %v1902
          %v1904 = vcombine.high %v1882, %v1882
          %v1905 = vcombine.high %v1889, %v1889
          %v1906 = vcombine.high %v1896, %v1896
          %v1907 = vcombine.high %v1903, %v1903
          %1916 = vst [vmem:[#allocation2 + $0x4] sm:$0x1] %v1882
          %1917 = vst [vmem:[#allocation2 + $0xc] sm:$0x1] %v1896
          %1918 = vst [vmem:[#allocation2 + $0x14] sm:$0x1] %v1904
          %1919 = vst [vmem:[#allocation2 + $0x1c] sm:$0x1] %v1906
          %1920 = vst [vmem:[#allocation2 + $0x24] sm:$0x1] %v1889
          %1921 = vst [vmem:[#allocation2 + $0x2c] sm:$0x1] %v1903
          %1922 = vst [vmem:[#allocation2 + $0x34] sm:$0x1] %v1905
          %1923 = vst [vmem:[#allocation2 + $0x3c] sm:$0x1] %v1907
        $region72: #{encoder_forward.1} parent=31 // pred_fallthru
          _
        // Predicated region
        $region73: #{encoder_forward.1} parent=31 // pred_check
          %p1924 = pneg %p305
        $region74: #{encoder_forward.1} parent=31 // pred_check_branch
          %1926 = sbr.rel (%p1924) target = $region76
        $region75: #{encoder_forward.1} parent=31 // pred_region
          %v1928 = vcombine.high %v1854, %v1854
          %v1930 = vunpack.c.l.s4 1966171168
          %v1931 = vunpack.c.0.s8 %v1930
          %v1932 = vlaneseq
          %v1933 = vshrl.u32 %v1932, 7
          %v1934 = vsub.s32 %v1931, %v1933
          %v1935 = vrot.slane %v1854, %v1934
          %v1937 = vunpack.c.l.s4 1966171168
          %v1938 = vunpack.c.0.s8 %v1937
          %v1939 = vlaneseq
          %v1940 = vshrl.u32 %v1939, 7
          %v1941 = vsub.s32 %v1938, %v1940
          %v1942 = vrot.slane %v1928, %v1941
          %v1943 = vcombine.high %v1935, %v1935
          %v1944 = vcombine.high %v1942, %v1942
          %v1946 = vunpack.c.l.s4 1966171168
          %v1947 = vunpack.c.0.s8 %v1946
          %v1948 = vlaneseq
          %v1949 = vshrl.u32 %v1948, 7
          %v1950 = vsub.s32 %v1947, %v1949
          %v1951 = vrot.slane %v1935, %v1950
          %v1953 = vunpack.c.l.s4 1966171168
          %v1954 = vunpack.c.0.s8 %v1953
          %v1955 = vlaneseq
          %v1956 = vshrl.u32 %v1955, 7
          %v1957 = vsub.s32 %v1954, %v1956
          %v1958 = vrot.slane %v1942, %v1957
          %v1960 = vunpack.c.l.s4 1966171168
          %v1961 = vunpack.c.0.s8 %v1960
          %v1962 = vlaneseq
          %v1963 = vshrl.u32 %v1962, 7
          %v1964 = vsub.s32 %v1961, %v1963
          %v1965 = vrot.slane %v1943, %v1964
          %v1967 = vunpack.c.l.s4 1966171168
          %v1968 = vunpack.c.0.s8 %v1967
          %v1969 = vlaneseq
          %v1970 = vshrl.u32 %v1969, 7
          %v1971 = vsub.s32 %v1968, %v1970
          %v1972 = vrot.slane %v1944, %v1971
          %v1973 = vcombine.high %v1951, %v1951
          %v1974 = vcombine.high %v1958, %v1958
          %v1975 = vcombine.high %v1965, %v1965
          %v1976 = vcombine.high %v1972, %v1972
          %1985 = vst [vmem:[#allocation2 + $0x3] sm:$0x1] %v1951
          %1986 = vst [vmem:[#allocation2 + $0xb] sm:$0x1] %v1965
          %1987 = vst [vmem:[#allocation2 + $0x13] sm:$0x1] %v1973
          %1988 = vst [vmem:[#allocation2 + $0x1b] sm:$0x1] %v1975
          %1989 = vst [vmem:[#allocation2 + $0x23] sm:$0x1] %v1958
          %1990 = vst [vmem:[#allocation2 + $0x2b] sm:$0x1] %v1972
          %1991 = vst [vmem:[#allocation2 + $0x33] sm:$0x1] %v1974
          %1992 = vst [vmem:[#allocation2 + $0x3b] sm:$0x1] %v1976
        $region76: #{encoder_forward.1} parent=31 // pred_fallthru
          _
        %s1993 = sadd.s32 %s377, 5
        %s1994 = ssub.s32 10, %s377
        %s1995 = scalar_select %p305, %s1994, %s1993
        %v1996 = vstv %s1995
        %vm1997 = vcmp.lt.s32.totalorder %v1996, %v376
        %v1998 = vld [vmem:[%s286 + $0xa0] sm:$0xff]
        %v1999 = vld [vmem:[%s286 + $0xa8] sm:$0xff]
        %v2000 = vld [vmem:[%s286 + $0xb0] sm:$0xff]
        %v2001 = vld [vmem:[%s286 + $0xb8] sm:$0xff]
        %v2002 = vld [vmem:[#allocation3] sm:$0xff]
        %v2003 = vld [vmem:[#allocation4] sm:$0xff]
        %2004 = vmatprep.subr.mxu0 %v313
        %2005 = vmatpush1.msra.mxu0 %v312
        %2006 = vmatprep.subr.mxu0 %v317
        %2007 = vmatpush1.msra.mxu0 %v316
        %2008 = vmatprep.subr.mxu0 %v321
        %2009 = vmatpush1.msra.mxu0 %v320
        %2010 = vmatprep.subr.mxu0 %v325
        %2011 = vmatpush1.msra.mxu0 %v324
        %2012 = vmatprep.subr.mxu0 %v329
        %2013 = vmatpush1.msra.mxu0 %v328
        %2014 = vmatprep.subr.mxu0 %v333
        %2015 = vmatpush1.msra.mxu0 %v332
        %2016 = vmatprep.subr.mxu0 %v337
        %2017 = vmatpush1.msra.mxu0 %v336
        %2018 = vmatprep.subr.mxu0 %v341
        %2019 = vmatpush1.msra.mxu0 %v340
        %2020 = vmatprep.subr.mxu0 %v345
        %2021 = vmatpush1.msra.mxu0 %v344
        %2022 = vmatprep.subr.mxu0 %v349
        %2023 = vmatpush1.msra.mxu0 %v348
        %2024 = vmatprep.subr.mxu0 %v353
        %2025 = vmatpush1.msra.mxu0 %v352
        %2026 = vmatprep.subr.mxu0 %v357
        %2027 = vmatpush1.msra.mxu0 %v356
        %2028 = vmatprep.subr.mxu0 %v361
        %2029 = vmatpush1.msra.mxu0 %v360
        %2030 = vmatprep.subr.mxu0 %v365
        %2031 = vmatpush1.msra.mxu0 %v364
        %2032 = vmatprep.subr.mxu0 %v369
        %2033 = vmatpush1.msra.mxu0 %v368
        %2034 = vmatprep.subr.mxu0 %v373
        %2035 = vmatpush1.msra.mxu0 %v372
        %2036 = vmatprep.subr.mxu0 0.0
        %2037 = vmatpush1.msra.mxu0 0.0
        %2038 = vmatprep.subr.mxu0 0.0
        %2039 = vmatpush1.msra.mxu0 0.0
        %2040 = vmatprep.subr.mxu0 0.0
        %2041 = vmatpush1.msra.mxu0 0.0
        %2042 = vmatprep.subr.mxu0 0.0
        %2043 = vmatpush1.msra.mxu0 0.0
        %2044 = vmatprep.subr.mxu0 0.0
        %2045 = vmatpush1.msra.mxu0 0.0
        %2046 = vmatprep.subr.mxu0 0.0
        %2047 = vmatpush1.msra.mxu0 0.0
        %2048 = vmatprep.subr.mxu0 0.0
        %2049 = vmatpush1.msra.mxu0 0.0
        %2050 = vmatprep.subr.mxu0 0.0
        %2051 = vmatpush1.msra.mxu0 0.0
        %2052 = vmatprep.subr.mxu0 0.0
        %2053 = vmatpush1.msra.mxu0 0.0
        %2054 = vmatprep.subr.mxu0 0.0
        %2055 = vmatpush1.msra.mxu0 0.0
        %2056 = vmatprep.subr.mxu0 0.0
        %2057 = vmatpush1.msra.mxu0 0.0
        %2058 = vmatprep.subr.mxu0 0.0
        %2059 = vmatpush1.msra.mxu0 0.0
        %2060 = vmatprep.subr.mxu0 0.0
        %2061 = vmatpush1.msra.mxu0 0.0
        %2062 = vmatprep.subr.mxu0 0.0
        %2063 = vmatpush1.msra.mxu0 0.0
        %2064 = vmatprep.subr.mxu0 0.0
        %2065 = vmatpush1.msra.mxu0 0.0
        %2066 = vmatprep.subr.mxu0 0.0
        %2067 = vmatpush1.msra.mxu0 0.0
        %2068 = vmatprep.mubr.f32.mxu0 0.0
        %2069 = vmatmul.mubr.f32.gmra.mrb[0].mxu0 %v2002
        %v2070 = vpop.f32.mrb[0].mxu0
        %v2071 = vadd.f32 0.0, %v2070
        %v2072 = vpop.f32.mrb[0].mxu0
        %v2073 = vadd.f32 0.0, %v2072
        %2074 = vdwg.mxu0
        %2075 = vmatprep.subr.mxu0 %v315
        %2076 = vmatpush1.msra.mxu0 %v314
        %2077 = vmatprep.subr.mxu0 %v319
        %2078 = vmatpush1.msra.mxu0 %v318
        %2079 = vmatprep.subr.mxu0 %v323
        %2080 = vmatpush1.msra.mxu0 %v322
        %2081 = vmatprep.subr.mxu0 %v327
        %2082 = vmatpush1.msra.mxu0 %v326
        %2083 = vmatprep.subr.mxu0 %v331
        %2084 = vmatpush1.msra.mxu0 %v330
        %2085 = vmatprep.subr.mxu0 %v335
        %2086 = vmatpush1.msra.mxu0 %v334
        %2087 = vmatprep.subr.mxu0 %v339
        %2088 = vmatpush1.msra.mxu0 %v338
        %2089 = vmatprep.subr.mxu0 %v343
        %2090 = vmatpush1.msra.mxu0 %v342
        %2091 = vmatprep.subr.mxu0 %v347
        %2092 = vmatpush1.msra.mxu0 %v346
        %2093 = vmatprep.subr.mxu0 %v351
        %2094 = vmatpush1.msra.mxu0 %v350
        %2095 = vmatprep.subr.mxu0 %v355
        %2096 = vmatpush1.msra.mxu0 %v354
        %2097 = vmatprep.subr.mxu0 %v359
        %2098 = vmatpush1.msra.mxu0 %v358
        %2099 = vmatprep.subr.mxu0 %v363
        %2100 = vmatpush1.msra.mxu0 %v362
        %2101 = vmatprep.subr.mxu0 %v367
        %2102 = vmatpush1.msra.mxu0 %v366
        %2103 = vmatprep.subr.mxu0 %v371
        %2104 = vmatpush1.msra.mxu0 %v370
        %2105 = vmatprep.subr.mxu0 %v375
        %2106 = vmatpush1.msra.mxu0 %v374
        %2107 = vmatprep.subr.mxu0 0.0
        %2108 = vmatpush1.msra.mxu0 0.0
        %2109 = vmatprep.subr.mxu0 0.0
        %2110 = vmatpush1.msra.mxu0 0.0
        %2111 = vmatprep.subr.mxu0 0.0
        %2112 = vmatpush1.msra.mxu0 0.0
        %2113 = vmatprep.subr.mxu0 0.0
        %2114 = vmatpush1.msra.mxu0 0.0
        %2115 = vmatprep.subr.mxu0 0.0
        %2116 = vmatpush1.msra.mxu0 0.0
        %2117 = vmatprep.subr.mxu0 0.0
        %2118 = vmatpush1.msra.mxu0 0.0
        %2119 = vmatprep.subr.mxu0 0.0
        %2120 = vmatpush1.msra.mxu0 0.0
        %2121 = vmatprep.subr.mxu0 0.0
        %2122 = vmatpush1.msra.mxu0 0.0
        %2123 = vmatprep.subr.mxu0 0.0
        %2124 = vmatpush1.msra.mxu0 0.0
        %2125 = vmatprep.subr.mxu0 0.0
        %2126 = vmatpush1.msra.mxu0 0.0
        %2127 = vmatprep.subr.mxu0 0.0
        %2128 = vmatpush1.msra.mxu0 0.0
        %2129 = vmatprep.subr.mxu0 0.0
        %2130 = vmatpush1.msra.mxu0 0.0
        %2131 = vmatprep.subr.mxu0 0.0
        %2132 = vmatpush1.msra.mxu0 0.0
        %2133 = vmatprep.subr.mxu0 0.0
        %2134 = vmatpush1.msra.mxu0 0.0
        %2135 = vmatprep.subr.mxu0 0.0
        %2136 = vmatpush1.msra.mxu0 0.0
        %2137 = vmatprep.subr.mxu0 0.0
        %2138 = vmatpush1.msra.mxu0 0.0
        %2139 = vmatprep.mubr.f32.mxu0 0.0
        %2140 = vmatmul.mubr.f32.gmra.mrb[0].mxu0 %v2002
        %v2141 = vpop.f32.mrb[0].mxu0
        %v2142 = vadd.f32 0.0, %v2141
        %v2143 = vpop.f32.mrb[0].mxu0
        %v2144 = vadd.f32 0.0, %v2143
        %2145 = vdwg.mxu0
        %v2146 = vadd.f32 %v1998, %v2071
        %v2147 = vadd.f32 %v1999, %v2073
        %v2148 = vadd.f32 %v2000, %v2142
        %v2149 = vadd.f32 %v2001, %v2144
        %v2150 = vmul.f32 %v2146, 0.5
        %v2151 = vtanh.pop %v2150
        %v2152 = vmul.f32 %v2151, 0.5
        %v2153 = vadd.f32 %v2152, 0.5
        %v2154 = vmul.f32 %v2147, 0.5
        %v2155 = vtanh.pop %v2154
        %v2156 = vmul.f32 %v2155, 0.5
        %v2157 = vadd.f32 %v2156, 0.5
        %v2158 = vtanh.pop %v2148
        %v2159 = vmul.f32 %v2149, 0.5
        %v2160 = vtanh.pop %v2159
        %v2161 = vmul.f32 %v2160, 0.5
        %v2162 = vadd.f32 %v2161, 0.5
        %v2163 = vmul.f32 %v2157, %v2003
        %v2164 = vmul.f32 %v2153, %v2158
        %v2165 = vadd.f32 %v2163, %v2164
        %v2166 = vtanh.pop %v2165
        %v2167 = vmul.f32 %v2162, %v2166
        %v2168 = vsel %vm1997, 1, 0
        %2169 = vset.pattern.permute.xlu0 0
        %2170 = vperm.xlu0 %2169, %v2168
        %v2171 = vpop.permute.xlu0 %2170
        %vm2172 = vcmp.eq.s32.totalorder %v2171, 1
        %v2173 = vsel %vm2172, %v2167, %v2002
        %2174 = vst [vmem:[#allocation3] sm:$0xff] %v2173
        %v2175 = vsel %vm2172, %v2165, %v2003
        %2176 = vst [vmem:[#allocation4] sm:$0xff] %v2175
        %v2177 = vsel %vm2172, %v2167, 0.0
        // Predicated region
        $region77: #{encoder_forward.1} parent=31 // pred_check
          %p2178 = pneg %p562
        $region78: #{encoder_forward.1} parent=31 // pred_check_branch
          %2180 = sbr.rel (%p2178) target = $region80
        $region79: #{encoder_forward.1} parent=31 // pred_region
          %v2182 = vcombine.high %v2177, %v2177
          %v2184 = vunpack.c.l.s4 1966171168
          %v2185 = vunpack.c.0.s8 %v2184
          %v2186 = vlaneseq
          %v2187 = vshrl.u32 %v2186, 7
          %v2188 = vsub.s32 %v2185, %v2187
          %v2189 = vrot.slane %v2177, %v2188
          %v2191 = vunpack.c.l.s4 1966171168
          %v2192 = vunpack.c.0.s8 %v2191
          %v2193 = vlaneseq
          %v2194 = vshrl.u32 %v2193, 7
          %v2195 = vsub.s32 %v2192, %v2194
          %v2196 = vrot.slane %v2182, %v2195
          %v2197 = vcombine.high %v2189, %v2189
          %v2198 = vcombine.high %v2196, %v2196
          %v2200 = vunpack.c.l.s4 1966171168
          %v2201 = vunpack.c.0.s8 %v2200
          %v2202 = vlaneseq
          %v2203 = vshrl.u32 %v2202, 7
          %v2204 = vsub.s32 %v2201, %v2203
          %v2205 = vrot.slane %v2189, %v2204
          %v2207 = vunpack.c.l.s4 1966171168
          %v2208 = vunpack.c.0.s8 %v2207
          %v2209 = vlaneseq
          %v2210 = vshrl.u32 %v2209, 7
          %v2211 = vsub.s32 %v2208, %v2210
          %v2212 = vrot.slane %v2196, %v2211
          %v2214 = vunpack.c.l.s4 1966171168
          %v2215 = vunpack.c.0.s8 %v2214
          %v2216 = vlaneseq
          %v2217 = vshrl.u32 %v2216, 7
          %v2218 = vsub.s32 %v2215, %v2217
          %v2219 = vrot.slane %v2197, %v2218
          %v2221 = vunpack.c.l.s4 1966171168
          %v2222 = vunpack.c.0.s8 %v2221
          %v2223 = vlaneseq
          %v2224 = vshrl.u32 %v2223, 7
          %v2225 = vsub.s32 %v2222, %v2224
          %v2226 = vrot.slane %v2198, %v2225
          %v2227 = vcombine.high %v2205, %v2205
          %v2228 = vcombine.high %v2212, %v2212
          %v2229 = vcombine.high %v2219, %v2219
          %v2230 = vcombine.high %v2226, %v2226
          %2239 = vst [vmem:[#allocation2 + $0x5] sm:$0x1] %v2205
          %2240 = vst [vmem:[#allocation2 + $0xd] sm:$0x1] %v2219
          %2241 = vst [vmem:[#allocation2 + $0x15] sm:$0x1] %v2227
          %2242 = vst [vmem:[#allocation2 + $0x1d] sm:$0x1] %v2229
          %2243 = vst [vmem:[#allocation2 + $0x25] sm:$0x1] %v2212
          %2244 = vst [vmem:[#allocation2 + $0x2d] sm:$0x1] %v2226
          %2245 = vst [vmem:[#allocation2 + $0x35] sm:$0x1] %v2228
          %2246 = vst [vmem:[#allocation2 + $0x3d] sm:$0x1] %v2230
        $region80: #{encoder_forward.1} parent=31 // pred_fallthru
          _
        // Predicated region
        $region81: #{encoder_forward.1} parent=31 // pred_check
          %p2247 = pneg %p305
        $region82: #{encoder_forward.1} parent=31 // pred_check_branch
          %2249 = sbr.rel (%p2247) target = $region84
        $region83: #{encoder_forward.1} parent=31 // pred_region
          %v2251 = vcombine.high %v2177, %v2177
          %v2253 = vunpack.c.l.s4 1966171168
          %v2254 = vunpack.c.0.s8 %v2253
          %v2255 = vlaneseq
          %v2256 = vshrl.u32 %v2255, 7
          %v2257 = vsub.s32 %v2254, %v2256
          %v2258 = vrot.slane %v2177, %v2257
          %v2260 = vunpack.c.l.s4 1966171168
          %v2261 = vunpack.c.0.s8 %v2260
          %v2262 = vlaneseq
          %v2263 = vshrl.u32 %v2262, 7
          %v2264 = vsub.s32 %v2261, %v2263
          %v2265 = vrot.slane %v2251, %v2264
          %v2266 = vcombine.high %v2258, %v2258
          %v2267 = vcombine.high %v2265, %v2265
          %v2269 = vunpack.c.l.s4 1966171168
          %v2270 = vunpack.c.0.s8 %v2269
          %v2271 = vlaneseq
          %v2272 = vshrl.u32 %v2271, 7
          %v2273 = vsub.s32 %v2270, %v2272
          %v2274 = vrot.slane %v2258, %v2273
          %v2276 = vunpack.c.l.s4 1966171168
          %v2277 = vunpack.c.0.s8 %v2276
          %v2278 = vlaneseq
          %v2279 = vshrl.u32 %v2278, 7
          %v2280 = vsub.s32 %v2277, %v2279
          %v2281 = vrot.slane %v2265, %v2280
          %v2283 = vunpack.c.l.s4 1966171168
          %v2284 = vunpack.c.0.s8 %v2283
          %v2285 = vlaneseq
          %v2286 = vshrl.u32 %v2285, 7
          %v2287 = vsub.s32 %v2284, %v2286
          %v2288 = vrot.slane %v2266, %v2287
          %v2290 = vunpack.c.l.s4 1966171168
          %v2291 = vunpack.c.0.s8 %v2290
          %v2292 = vlaneseq
          %v2293 = vshrl.u32 %v2292, 7
          %v2294 = vsub.s32 %v2291, %v2293
          %v2295 = vrot.slane %v2267, %v2294
          %v2296 = vcombine.high %v2274, %v2274
          %v2297 = vcombine.high %v2281, %v2281
          %v2298 = vcombine.high %v2288, %v2288
          %v2299 = vcombine.high %v2295, %v2295
          %2308 = vst [vmem:[#allocation2 + $0x2] sm:$0x1] %v2274
          %2309 = vst [vmem:[#allocation2 + $0xa] sm:$0x1] %v2288
          %2310 = vst [vmem:[#allocation2 + $0x12] sm:$0x1] %v2296
          %2311 = vst [vmem:[#allocation2 + $0x1a] sm:$0x1] %v2298
          %2312 = vst [vmem:[#allocation2 + $0x22] sm:$0x1] %v2281
          %2313 = vst [vmem:[#allocation2 + $0x2a] sm:$0x1] %v2295
          %2314 = vst [vmem:[#allocation2 + $0x32] sm:$0x1] %v2297
          %2315 = vst [vmem:[#allocation2 + $0x3a] sm:$0x1] %v2299
        $region84: #{encoder_forward.1} parent=31 // pred_fallthru
          _
        %s2316 = sadd.s32 %s377, 6
        %s2317 = ssub.s32 9, %s377
        %s2318 = scalar_select %p305, %s2317, %s2316
        %v2319 = vstv %s2318
        %vm2320 = vcmp.lt.s32.totalorder %v2319, %v376
        %v2321 = vld [vmem:[%s286 + $0xc0] sm:$0xff]
        %v2322 = vld [vmem:[%s286 + $0xc8] sm:$0xff]
        %v2323 = vld [vmem:[%s286 + $0xd0] sm:$0xff]
        %v2324 = vld [vmem:[%s286 + $0xd8] sm:$0xff]
        %v2325 = vld [vmem:[#allocation3] sm:$0xff]
        %v2326 = vld [vmem:[#allocation4] sm:$0xff]
        %2327 = vmatprep.subr.mxu0 %v313
        %2328 = vmatpush1.msra.mxu0 %v312
        %2329 = vmatprep.subr.mxu0 %v317
        %2330 = vmatpush1.msra.mxu0 %v316
        %2331 = vmatprep.subr.mxu0 %v321
        %2332 = vmatpush1.msra.mxu0 %v320
        %2333 = vmatprep.subr.mxu0 %v325
        %2334 = vmatpush1.msra.mxu0 %v324
        %2335 = vmatprep.subr.mxu0 %v329
        %2336 = vmatpush1.msra.mxu0 %v328
        %2337 = vmatprep.subr.mxu0 %v333
        %2338 = vmatpush1.msra.mxu0 %v332
        %2339 = vmatprep.subr.mxu0 %v337
        %2340 = vmatpush1.msra.mxu0 %v336
        %2341 = vmatprep.subr.mxu0 %v341
        %2342 = vmatpush1.msra.mxu0 %v340
        %2343 = vmatprep.subr.mxu0 %v345
        %2344 = vmatpush1.msra.mxu0 %v344
        %2345 = vmatprep.subr.mxu0 %v349
        %2346 = vmatpush1.msra.mxu0 %v348
        %2347 = vmatprep.subr.mxu0 %v353
        %2348 = vmatpush1.msra.mxu0 %v352
        %2349 = vmatprep.subr.mxu0 %v357
        %2350 = vmatpush1.msra.mxu0 %v356
        %2351 = vmatprep.subr.mxu0 %v361
        %2352 = vmatpush1.msra.mxu0 %v360
        %2353 = vmatprep.subr.mxu0 %v365
        %2354 = vmatpush1.msra.mxu0 %v364
        %2355 = vmatprep.subr.mxu0 %v369
        %2356 = vmatpush1.msra.mxu0 %v368
        %2357 = vmatprep.subr.mxu0 %v373
        %2358 = vmatpush1.msra.mxu0 %v372
        %2359 = vmatprep.subr.mxu0 0.0
        %2360 = vmatpush1.msra.mxu0 0.0
        %2361 = vmatprep.subr.mxu0 0.0
        %2362 = vmatpush1.msra.mxu0 0.0
        %2363 = vmatprep.subr.mxu0 0.0
        %2364 = vmatpush1.msra.mxu0 0.0
        %2365 = vmatprep.subr.mxu0 0.0
        %2366 = vmatpush1.msra.mxu0 0.0
        %2367 = vmatprep.subr.mxu0 0.0
        %2368 = vmatpush1.msra.mxu0 0.0
        %2369 = vmatprep.subr.mxu0 0.0
        %2370 = vmatpush1.msra.mxu0 0.0
        %2371 = vmatprep.subr.mxu0 0.0
        %2372 = vmatpush1.msra.mxu0 0.0
        %2373 = vmatprep.subr.mxu0 0.0
        %2374 = vmatpush1.msra.mxu0 0.0
        %2375 = vmatprep.subr.mxu0 0.0
        %2376 = vmatpush1.msra.mxu0 0.0
        %2377 = vmatprep.subr.mxu0 0.0
        %2378 = vmatpush1.msra.mxu0 0.0
        %2379 = vmatprep.subr.mxu0 0.0
        %2380 = vmatpush1.msra.mxu0 0.0
        %2381 = vmatprep.subr.mxu0 0.0
        %2382 = vmatpush1.msra.mxu0 0.0
        %2383 = vmatprep.subr.mxu0 0.0
        %2384 = vmatpush1.msra.mxu0 0.0
        %2385 = vmatprep.subr.mxu0 0.0
        %2386 = vmatpush1.msra.mxu0 0.0
        %2387 = vmatprep.subr.mxu0 0.0
        %2388 = vmatpush1.msra.mxu0 0.0
        %2389 = vmatprep.subr.mxu0 0.0
        %2390 = vmatpush1.msra.mxu0 0.0
        %2391 = vmatprep.mubr.f32.mxu0 0.0
        %2392 = vmatmul.mubr.f32.gmra.mrb[0].mxu0 %v2325
        %v2393 = vpop.f32.mrb[0].mxu0
        %v2394 = vadd.f32 0.0, %v2393
        %v2395 = vpop.f32.mrb[0].mxu0
        %v2396 = vadd.f32 0.0, %v2395
        %2397 = vdwg.mxu0
        %2398 = vmatprep.subr.mxu0 %v315
        %2399 = vmatpush1.msra.mxu0 %v314
        %2400 = vmatprep.subr.mxu0 %v319
        %2401 = vmatpush1.msra.mxu0 %v318
        %2402 = vmatprep.subr.mxu0 %v323
        %2403 = vmatpush1.msra.mxu0 %v322
        %2404 = vmatprep.subr.mxu0 %v327
        %2405 = vmatpush1.msra.mxu0 %v326
        %2406 = vmatprep.subr.mxu0 %v331
        %2407 = vmatpush1.msra.mxu0 %v330
        %2408 = vmatprep.subr.mxu0 %v335
        %2409 = vmatpush1.msra.mxu0 %v334
        %2410 = vmatprep.subr.mxu0 %v339
        %2411 = vmatpush1.msra.mxu0 %v338
        %2412 = vmatprep.subr.mxu0 %v343
        %2413 = vmatpush1.msra.mxu0 %v342
        %2414 = vmatprep.subr.mxu0 %v347
        %2415 = vmatpush1.msra.mxu0 %v346
        %2416 = vmatprep.subr.mxu0 %v351
        %2417 = vmatpush1.msra.mxu0 %v350
        %2418 = vmatprep.subr.mxu0 %v355
        %2419 = vmatpush1.msra.mxu0 %v354
        %2420 = vmatprep.subr.mxu0 %v359
        %2421 = vmatpush1.msra.mxu0 %v358
        %2422 = vmatprep.subr.mxu0 %v363
        %2423 = vmatpush1.msra.mxu0 %v362
        %2424 = vmatprep.subr.mxu0 %v367
        %2425 = vmatpush1.msra.mxu0 %v366
        %2426 = vmatprep.subr.mxu0 %v371
        %2427 = vmatpush1.msra.mxu0 %v370
        %2428 = vmatprep.subr.mxu0 %v375
        %2429 = vmatpush1.msra.mxu0 %v374
        %2430 = vmatprep.subr.mxu0 0.0
        %2431 = vmatpush1.msra.mxu0 0.0
        %2432 = vmatprep.subr.mxu0 0.0
        %2433 = vmatpush1.msra.mxu0 0.0
        %2434 = vmatprep.subr.mxu0 0.0
        %2435 = vmatpush1.msra.mxu0 0.0
        %2436 = vmatprep.subr.mxu0 0.0
        %2437 = vmatpush1.msra.mxu0 0.0
        %2438 = vmatprep.subr.mxu0 0.0
        %2439 = vmatpush1.msra.mxu0 0.0
        %2440 = vmatprep.subr.mxu0 0.0
        %2441 = vmatpush1.msra.mxu0 0.0
        %2442 = vmatprep.subr.mxu0 0.0
        %2443 = vmatpush1.msra.mxu0 0.0
        %2444 = vmatprep.subr.mxu0 0.0
        %2445 = vmatpush1.msra.mxu0 0.0
        %2446 = vmatprep.subr.mxu0 0.0
        %2447 = vmatpush1.msra.mxu0 0.0
        %2448 = vmatprep.subr.mxu0 0.0
        %2449 = vmatpush1.msra.mxu0 0.0
        %2450 = vmatprep.subr.mxu0 0.0
        %2451 = vmatpush1.msra.mxu0 0.0
        %2452 = vmatprep.subr.mxu0 0.0
        %2453 = vmatpush1.msra.mxu0 0.0
        %2454 = vmatprep.subr.mxu0 0.0
        %2455 = vmatpush1.msra.mxu0 0.0
        %2456 = vmatprep.subr.mxu0 0.0
        %2457 = vmatpush1.msra.mxu0 0.0
        %2458 = vmatprep.subr.mxu0 0.0
        %2459 = vmatpush1.msra.mxu0 0.0
        %2460 = vmatprep.subr.mxu0 0.0
        %2461 = vmatpush1.msra.mxu0 0.0
        %2462 = vmatprep.mubr.f32.mxu0 0.0
        %2463 = vmatmul.mubr.f32.gmra.mrb[0].mxu0 %v2325
        %v2464 = vpop.f32.mrb[0].mxu0
        %v2465 = vadd.f32 0.0, %v2464
        %v2466 = vpop.f32.mrb[0].mxu0
        %v2467 = vadd.f32 0.0, %v2466
        %2468 = vdwg.mxu0
        %v2469 = vadd.f32 %v2321, %v2394
        %v2470 = vadd.f32 %v2322, %v2396
        %v2471 = vadd.f32 %v2323, %v2465
        %v2472 = vadd.f32 %v2324, %v2467
        %v2473 = vmul.f32 %v2469, 0.5
        %v2474 = vtanh.pop %v2473
        %v2475 = vmul.f32 %v2474, 0.5
        %v2476 = vadd.f32 %v2475, 0.5
        %v2477 = vmul.f32 %v2470, 0.5
        %v2478 = vtanh.pop %v2477
        %v2479 = vmul.f32 %v2478, 0.5
        %v2480 = vadd.f32 %v2479, 0.5
        %v2481 = vtanh.pop %v2471
        %v2482 = vmul.f32 %v2472, 0.5
        %v2483 = vtanh.pop %v2482
        %v2484 = vmul.f32 %v2483, 0.5
        %v2485 = vadd.f32 %v2484, 0.5
        %v2486 = vmul.f32 %v2480, %v2326
        %v2487 = vmul.f32 %v2476, %v2481
        %v2488 = vadd.f32 %v2486, %v2487
        %v2489 = vtanh.pop %v2488
        %v2490 = vmul.f32 %v2485, %v2489
        %v2491 = vsel %vm2320, 1, 0
        %2492 = vset.pattern.permute.xlu0 0
        %2493 = vperm.xlu0 %2492, %v2491
        %v2494 = vpop.permute.xlu0 %2493
        %vm2495 = vcmp.eq.s32.totalorder %v2494, 1
        %v2496 = vsel %vm2495, %v2490, %v2325
        %2497 = vst [vmem:[#allocation3] sm:$0xff] %v2496
        %v2498 = vsel %vm2495, %v2488, %v2326
        %2499 = vst [vmem:[#allocation4] sm:$0xff] %v2498
        %v2500 = vsel %vm2495, %v2490, 0.0
        // Predicated region
        $region85: #{encoder_forward.1} parent=31 // pred_check
          %p2501 = pneg %p562
        $region86: #{encoder_forward.1} parent=31 // pred_check_branch
          %2503 = sbr.rel (%p2501) target = $region88
        $region87: #{encoder_forward.1} parent=31 // pred_region
          %v2505 = vcombine.high %v2500, %v2500
          %v2507 = vunpack.c.l.s4 1966171168
          %v2508 = vunpack.c.0.s8 %v2507
          %v2509 = vlaneseq
          %v2510 = vshrl.u32 %v2509, 7
          %v2511 = vsub.s32 %v2508, %v2510
          %v2512 = vrot.slane %v2500, %v2511
          %v2514 = vunpack.c.l.s4 1966171168
          %v2515 = vunpack.c.0.s8 %v2514
          %v2516 = vlaneseq
          %v2517 = vshrl.u32 %v2516, 7
          %v2518 = vsub.s32 %v2515, %v2517
          %v2519 = vrot.slane %v2505, %v2518
          %v2520 = vcombine.high %v2512, %v2512
          %v2521 = vcombine.high %v2519, %v2519
          %v2523 = vunpack.c.l.s4 1966171168
          %v2524 = vunpack.c.0.s8 %v2523
          %v2525 = vlaneseq
          %v2526 = vshrl.u32 %v2525, 7
          %v2527 = vsub.s32 %v2524, %v2526
          %v2528 = vrot.slane %v2512, %v2527
          %v2530 = vunpack.c.l.s4 1966171168
          %v2531 = vunpack.c.0.s8 %v2530
          %v2532 = vlaneseq
          %v2533 = vshrl.u32 %v2532, 7
          %v2534 = vsub.s32 %v2531, %v2533
          %v2535 = vrot.slane %v2519, %v2534
          %v2537 = vunpack.c.l.s4 1966171168
          %v2538 = vunpack.c.0.s8 %v2537
          %v2539 = vlaneseq
          %v2540 = vshrl.u32 %v2539, 7
          %v2541 = vsub.s32 %v2538, %v2540
          %v2542 = vrot.slane %v2520, %v2541
          %v2544 = vunpack.c.l.s4 1966171168
          %v2545 = vunpack.c.0.s8 %v2544
          %v2546 = vlaneseq
          %v2547 = vshrl.u32 %v2546, 7
          %v2548 = vsub.s32 %v2545, %v2547
          %v2549 = vrot.slane %v2521, %v2548
          %v2550 = vcombine.high %v2528, %v2528
          %v2551 = vcombine.high %v2535, %v2535
          %v2552 = vcombine.high %v2542, %v2542
          %v2553 = vcombine.high %v2549, %v2549
          %2562 = vst [vmem:[#allocation2 + $0x6] sm:$0x1] %v2528
          %2563 = vst [vmem:[#allocation2 + $0xe] sm:$0x1] %v2542
          %2564 = vst [vmem:[#allocation2 + $0x16] sm:$0x1] %v2550
          %2565 = vst [vmem:[#allocation2 + $0x1e] sm:$0x1] %v2552
          %2566 = vst [vmem:[#allocation2 + $0x26] sm:$0x1] %v2535
          %2567 = vst [vmem:[#allocation2 + $0x2e] sm:$0x1] %v2549
          %2568 = vst [vmem:[#allocation2 + $0x36] sm:$0x1] %v2551
          %2569 = vst [vmem:[#allocation2 + $0x3e] sm:$0x1] %v2553
        $region88: #{encoder_forward.1} parent=31 // pred_fallthru
          _
        // Predicated region
        $region89: #{encoder_forward.1} parent=31 // pred_check
          %p2570 = pneg %p305
        $region90: #{encoder_forward.1} parent=31 // pred_check_branch
          %2572 = sbr.rel (%p2570) target = $region92
        $region91: #{encoder_forward.1} parent=31 // pred_region
          %v2574 = vcombine.high %v2500, %v2500
          %v2576 = vunpack.c.l.s4 1966171168
          %v2577 = vunpack.c.0.s8 %v2576
          %v2578 = vlaneseq
          %v2579 = vshrl.u32 %v2578, 7
          %v2580 = vsub.s32 %v2577, %v2579
          %v2581 = vrot.slane %v2500, %v2580
          %v2583 = vunpack.c.l.s4 1966171168
          %v2584 = vunpack.c.0.s8 %v2583
          %v2585 = vlaneseq
          %v2586 = vshrl.u32 %v2585, 7
          %v2587 = vsub.s32 %v2584, %v2586
          %v2588 = vrot.slane %v2574, %v2587
          %v2589 = vcombine.high %v2581, %v2581
          %v2590 = vcombine.high %v2588, %v2588
          %v2592 = vunpack.c.l.s4 1966171168
          %v2593 = vunpack.c.0.s8 %v2592
          %v2594 = vlaneseq
          %v2595 = vshrl.u32 %v2594, 7
          %v2596 = vsub.s32 %v2593, %v2595
          %v2597 = vrot.slane %v2581, %v2596
          %v2599 = vunpack.c.l.s4 1966171168
          %v2600 = vunpack.c.0.s8 %v2599
          %v2601 = vlaneseq
          %v2602 = vshrl.u32 %v2601, 7
          %v2603 = vsub.s32 %v2600, %v2602
          %v2604 = vrot.slane %v2588, %v2603
          %v2606 = vunpack.c.l.s4 1966171168
          %v2607 = vunpack.c.0.s8 %v2606
          %v2608 = vlaneseq
          %v2609 = vshrl.u32 %v2608, 7
          %v2610 = vsub.s32 %v2607, %v2609
          %v2611 = vrot.slane %v2589, %v2610
          %v2613 = vunpack.c.l.s4 1966171168
          %v2614 = vunpack.c.0.s8 %v2613
          %v2615 = vlaneseq
          %v2616 = vshrl.u32 %v2615, 7
          %v2617 = vsub.s32 %v2614, %v2616
          %v2618 = vrot.slane %v2590, %v2617
          %v2619 = vcombine.high %v2597, %v2597
          %v2620 = vcombine.high %v2604, %v2604
          %v2621 = vcombine.high %v2611, %v2611
          %v2622 = vcombine.high %v2618, %v2618
          %2631 = vst [vmem:[#allocation2 + $0x1] sm:$0x1] %v2597
          %2632 = vst [vmem:[#allocation2 + $0x9] sm:$0x1] %v2611
          %2633 = vst [vmem:[#allocation2 + $0x11] sm:$0x1] %v2619
          %2634 = vst [vmem:[#allocation2 + $0x19] sm:$0x1] %v2621
          %2635 = vst [vmem:[#allocation2 + $0x21] sm:$0x1] %v2604
          %2636 = vst [vmem:[#allocation2 + $0x29] sm:$0x1] %v2618
          %2637 = vst [vmem:[#allocation2 + $0x31] sm:$0x1] %v2620
          %2638 = vst [vmem:[#allocation2 + $0x39] sm:$0x1] %v2622
        $region92: #{encoder_forward.1} parent=31 // pred_fallthru
          _
        %s2639 = sadd.s32 %s377, 7
        %s2640 = ssub.s32 8, %s377
        %s2641 = scalar_select %p305, %s2640, %s2639
        %v2642 = vstv %s2641
        %vm2643 = vcmp.lt.s32.totalorder %v2642, %v376
        %v2644 = vld [vmem:[%s286 + $0xe0] sm:$0xff]
        %v2645 = vld [vmem:[%s286 + $0xe8] sm:$0xff]
        %v2646 = vld [vmem:[%s286 + $0xf0] sm:$0xff]
        %v2647 = vld [vmem:[%s286 + $0xf8] sm:$0xff]
        %v2648 = vld [vmem:[#allocation3] sm:$0xff]
        %v2649 = vld [vmem:[#allocation4] sm:$0xff]
        %2650 = vmatprep.subr.mxu0 %v313
        %2651 = vmatpush1.msra.mxu0 %v312
        %2652 = vmatprep.subr.mxu0 %v317
        %2653 = vmatpush1.msra.mxu0 %v316
        %2654 = vmatprep.subr.mxu0 %v321
        %2655 = vmatpush1.msra.mxu0 %v320
        %2656 = vmatprep.subr.mxu0 %v325
        %2657 = vmatpush1.msra.mxu0 %v324
        %2658 = vmatprep.subr.mxu0 %v329
        %2659 = vmatpush1.msra.mxu0 %v328
        %2660 = vmatprep.subr.mxu0 %v333
        %2661 = vmatpush1.msra.mxu0 %v332
        %2662 = vmatprep.subr.mxu0 %v337
        %2663 = vmatpush1.msra.mxu0 %v336
        %2664 = vmatprep.subr.mxu0 %v341
        %2665 = vmatpush1.msra.mxu0 %v340
        %2666 = vmatprep.subr.mxu0 %v345
        %2667 = vmatpush1.msra.mxu0 %v344
        %2668 = vmatprep.subr.mxu0 %v349
        %2669 = vmatpush1.msra.mxu0 %v348
        %2670 = vmatprep.subr.mxu0 %v353
        %2671 = vmatpush1.msra.mxu0 %v352
        %2672 = vmatprep.subr.mxu0 %v357
        %2673 = vmatpush1.msra.mxu0 %v356
        %2674 = vmatprep.subr.mxu0 %v361
        %2675 = vmatpush1.msra.mxu0 %v360
        %2676 = vmatprep.subr.mxu0 %v365
        %2677 = vmatpush1.msra.mxu0 %v364
        %2678 = vmatprep.subr.mxu0 %v369
        %2679 = vmatpush1.msra.mxu0 %v368
        %2680 = vmatprep.subr.mxu0 %v373
        %2681 = vmatpush1.msra.mxu0 %v372
        %2682 = vmatprep.subr.mxu0 0.0
        %2683 = vmatpush1.msra.mxu0 0.0
        %2684 = vmatprep.subr.mxu0 0.0
        %2685 = vmatpush1.msra.mxu0 0.0
        %2686 = vmatprep.subr.mxu0 0.0
        %2687 = vmatpush1.msra.mxu0 0.0
        %2688 = vmatprep.subr.mxu0 0.0
        %2689 = vmatpush1.msra.mxu0 0.0
        %2690 = vmatprep.subr.mxu0 0.0
        %2691 = vmatpush1.msra.mxu0 0.0
        %2692 = vmatprep.subr.mxu0 0.0
        %2693 = vmatpush1.msra.mxu0 0.0
        %2694 = vmatprep.subr.mxu0 0.0
        %2695 = vmatpush1.msra.mxu0 0.0
        %2696 = vmatprep.subr.mxu0 0.0
        %2697 = vmatpush1.msra.mxu0 0.0
        %2698 = vmatprep.subr.mxu0 0.0
        %2699 = vmatpush1.msra.mxu0 0.0
        %2700 = vmatprep.subr.mxu0 0.0
        %2701 = vmatpush1.msra.mxu0 0.0
        %2702 = vmatprep.subr.mxu0 0.0
        %2703 = vmatpush1.msra.mxu0 0.0
        %2704 = vmatprep.subr.mxu0 0.0
        %2705 = vmatpush1.msra.mxu0 0.0
        %2706 = vmatprep.subr.mxu0 0.0
        %2707 = vmatpush1.msra.mxu0 0.0
        %2708 = vmatprep.subr.mxu0 0.0
        %2709 = vmatpush1.msra.mxu0 0.0
        %2710 = vmatprep.subr.mxu0 0.0
        %2711 = vmatpush1.msra.mxu0 0.0
        %2712 = vmatprep.subr.mxu0 0.0
        %2713 = vmatpush1.msra.mxu0 0.0
        %2714 = vmatprep.mubr.f32.mxu0 0.0
        %2715 = vmatmul.mubr.f32.gmra.mrb[0].mxu0 %v2648
        %v2716 = vpop.f32.mrb[0].mxu0
        %v2717 = vadd.f32 0.0, %v2716
        %v2718 = vpop.f32.mrb[0].mxu0
        %v2719 = vadd.f32 0.0, %v2718
        %2720 = vdwg.mxu0
        %2721 = vmatprep.subr.mxu0 %v315
        %2722 = vmatpush1.msra.mxu0 %v314
        %2723 = vmatprep.subr.mxu0 %v319
        %2724 = vmatpush1.msra.mxu0 %v318
        %2725 = vmatprep.subr.mxu0 %v323
        %2726 = vmatpush1.msra.mxu0 %v322
        %2727 = vmatprep.subr.mxu0 %v327
        %2728 = vmatpush1.msra.mxu0 %v326
        %2729 = vmatprep.subr.mxu0 %v331
        %2730 = vmatpush1.msra.mxu0 %v330
        %2731 = vmatprep.subr.mxu0 %v335
        %2732 = vmatpush1.msra.mxu0 %v334
        %2733 = vmatprep.subr.mxu0 %v339
        %2734 = vmatpush1.msra.mxu0 %v338
        %2735 = vmatprep.subr.mxu0 %v343
        %2736 = vmatpush1.msra.mxu0 %v342
        %2737 = vmatprep.subr.mxu0 %v347
        %2738 = vmatpush1.msra.mxu0 %v346
        %2739 = vmatprep.subr.mxu0 %v351
        %2740 = vmatpush1.msra.mxu0 %v350
        %2741 = vmatprep.subr.mxu0 %v355
        %2742 = vmatpush1.msra.mxu0 %v354
        %2743 = vmatprep.subr.mxu0 %v359
        %2744 = vmatpush1.msra.mxu0 %v358
        %2745 = vmatprep.subr.mxu0 %v363
        %2746 = vmatpush1.msra.mxu0 %v362
        %2747 = vmatprep.subr.mxu0 %v367
        %2748 = vmatpush1.msra.mxu0 %v366
        %2749 = vmatprep.subr.mxu0 %v371
        %2750 = vmatpush1.msra.mxu0 %v370
        %2751 = vmatprep.subr.mxu0 %v375
        %2752 = vmatpush1.msra.mxu0 %v374
        %2753 = vmatprep.subr.mxu0 0.0
        %2754 = vmatpush1.msra.mxu0 0.0
        %2755 = vmatprep.subr.mxu0 0.0
        %2756 = vmatpush1.msra.mxu0 0.0
        %2757 = vmatprep.subr.mxu0 0.0
        %2758 = vmatpush1.msra.mxu0 0.0
        %2759 = vmatprep.subr.mxu0 0.0
        %2760 = vmatpush1.msra.mxu0 0.0
        %2761 = vmatprep.subr.mxu0 0.0
        %2762 = vmatpush1.msra.mxu0 0.0
        %2763 = vmatprep.subr.mxu0 0.0
        %2764 = vmatpush1.msra.mxu0 0.0
        %2765 = vmatprep.subr.mxu0 0.0
        %2766 = vmatpush1.msra.mxu0 0.0
        %2767 = vmatprep.subr.mxu0 0.0
        %2768 = vmatpush1.msra.mxu0 0.0
        %2769 = vmatprep.subr.mxu0 0.0
        %2770 = vmatpush1.msra.mxu0 0.0
        %2771 = vmatprep.subr.mxu0 0.0
        %2772 = vmatpush1.msra.mxu0 0.0
        %2773 = vmatprep.subr.mxu0 0.0
        %2774 = vmatpush1.msra.mxu0 0.0
        %2775 = vmatprep.subr.mxu0 0.0
        %2776 = vmatpush1.msra.mxu0 0.0
        %2777 = vmatprep.subr.mxu0 0.0
        %2778 = vmatpush1.msra.mxu0 0.0
        %2779 = vmatprep.subr.mxu0 0.0
        %2780 = vmatpush1.msra.mxu0 0.0
        %2781 = vmatprep.subr.mxu0 0.0
        %2782 = vmatpush1.msra.mxu0 0.0
        %2783 = vmatprep.subr.mxu0 0.0
        %2784 = vmatpush1.msra.mxu0 0.0
        %2785 = vmatprep.mubr.f32.mxu0 0.0
        %2786 = vmatmul.mubr.f32.gmra.mrb[0].mxu0 %v2648
        %v2787 = vpop.f32.mrb[0].mxu0
        %v2788 = vadd.f32 0.0, %v2787
        %v2789 = vpop.f32.mrb[0].mxu0
        %v2790 = vadd.f32 0.0, %v2789
        %2791 = vdwg.mxu0
        %v2792 = vadd.f32 %v2644, %v2717
        %v2793 = vadd.f32 %v2645, %v2719
        %v2794 = vadd.f32 %v2646, %v2788
        %v2795 = vadd.f32 %v2647, %v2790
        %v2796 = vmul.f32 %v2792, 0.5
        %v2797 = vtanh.pop %v2796
        %v2798 = vmul.f32 %v2797, 0.5
        %v2799 = vadd.f32 %v2798, 0.5
        %v2800 = vmul.f32 %v2793, 0.5
        %v2801 = vtanh.pop %v2800
        %v2802 = vmul.f32 %v2801, 0.5
        %v2803 = vadd.f32 %v2802, 0.5
        %v2804 = vtanh.pop %v2794
        %v2805 = vmul.f32 %v2795, 0.5
        %v2806 = vtanh.pop %v2805
        %v2807 = vmul.f32 %v2806, 0.5
        %v2808 = vadd.f32 %v2807, 0.5
        %v2809 = vmul.f32 %v2803, %v2649
        %v2810 = vmul.f32 %v2799, %v2804
        %v2811 = vadd.f32 %v2809, %v2810
        %v2812 = vtanh.pop %v2811
        %v2813 = vmul.f32 %v2808, %v2812
        %v2814 = vsel %vm2643, 1, 0
        %2815 = vset.pattern.permute.xlu0 0
        %2816 = vperm.xlu0 %2815, %v2814
        %v2817 = vpop.permute.xlu0 %2816
        %vm2818 = vcmp.eq.s32.totalorder %v2817, 1
        %v2819 = vsel %vm2818, %v2813, %v2648
        %2820 = vst [vmem:[#allocation3] sm:$0xff] %v2819
        %v2821 = vsel %vm2818, %v2811, %v2649
        %2822 = vst [vmem:[#allocation4] sm:$0xff] %v2821
        %v2823 = vsel %vm2818, %v2813, 0.0
        // Predicated region
        $region93: #{encoder_forward.1} parent=31 // pred_check
          %p2824 = pneg %p562
        $region94: #{encoder_forward.1} parent=31 // pred_check_branch
          %2826 = sbr.rel (%p2824) target = $region96
        $region95: #{encoder_forward.1} parent=31 // pred_region
          %v2828 = vcombine.high %v2823, %v2823
          %v2830 = vunpack.c.l.s4 1966171168
          %v2831 = vunpack.c.0.s8 %v2830
          %v2832 = vlaneseq
          %v2833 = vshrl.u32 %v2832, 7
          %v2834 = vsub.s32 %v2831, %v2833
          %v2835 = vrot.slane %v2823, %v2834
          %v2837 = vunpack.c.l.s4 1966171168
          %v2838 = vunpack.c.0.s8 %v2837
          %v2839 = vlaneseq
          %v2840 = vshrl.u32 %v2839, 7
          %v2841 = vsub.s32 %v2838, %v2840
          %v2842 = vrot.slane %v2828, %v2841
          %v2843 = vcombine.high %v2835, %v2835
          %v2844 = vcombine.high %v2842, %v2842
          %v2846 = vunpack.c.l.s4 1966171168
          %v2847 = vunpack.c.0.s8 %v2846
          %v2848 = vlaneseq
          %v2849 = vshrl.u32 %v2848, 7
          %v2850 = vsub.s32 %v2847, %v2849
          %v2851 = vrot.slane %v2835, %v2850
          %v2853 = vunpack.c.l.s4 1966171168
          %v2854 = vunpack.c.0.s8 %v2853
          %v2855 = vlaneseq
          %v2856 = vshrl.u32 %v2855, 7
          %v2857 = vsub.s32 %v2854, %v2856
          %v2858 = vrot.slane %v2842, %v2857
          %v2860 = vunpack.c.l.s4 1966171168
          %v2861 = vunpack.c.0.s8 %v2860
          %v2862 = vlaneseq
          %v2863 = vshrl.u32 %v2862, 7
          %v2864 = vsub.s32 %v2861, %v2863
          %v2865 = vrot.slane %v2843, %v2864
          %v2867 = vunpack.c.l.s4 1966171168
          %v2868 = vunpack.c.0.s8 %v2867
          %v2869 = vlaneseq
          %v2870 = vshrl.u32 %v2869, 7
          %v2871 = vsub.s32 %v2868, %v2870
          %v2872 = vrot.slane %v2844, %v2871
          %v2873 = vcombine.high %v2851, %v2851
          %v2874 = vcombine.high %v2858, %v2858
          %v2875 = vcombine.high %v2865, %v2865
          %v2876 = vcombine.high %v2872, %v2872
          %2885 = vst [vmem:[#allocation2 + $0x7] sm:$0x1] %v2851
          %2886 = vst [vmem:[#allocation2 + $0xf] sm:$0x1] %v2865
          %2887 = vst [vmem:[#allocation2 + $0x17] sm:$0x1] %v2873
          %2888 = vst [vmem:[#allocation2 + $0x1f] sm:$0x1] %v2875
          %2889 = vst [vmem:[#allocation2 + $0x27] sm:$0x1] %v2858
          %2890 = vst [vmem:[#allocation2 + $0x2f] sm:$0x1] %v2872
          %2891 = vst [vmem:[#allocation2 + $0x37] sm:$0x1] %v2874
          %2892 = vst [vmem:[#allocation2 + $0x3f] sm:$0x1] %v2876
        $region96: #{encoder_forward.1} parent=31 // pred_fallthru
          _
        // Predicated region
        $region97: #{encoder_forward.1} parent=31 // pred_check
          %p2893 = pneg %p305
        $region98: #{encoder_forward.1} parent=31 // pred_check_branch
          %2895 = sbr.rel (%p2893) target = $region100
        $region99: #{encoder_forward.1} parent=31 // pred_region
          %v2897 = vcombine.high %v2823, %v2823
          %v2899 = vunpack.c.l.s4 1966171168
          %v2900 = vunpack.c.0.s8 %v2899
          %v2901 = vlaneseq
          %v2902 = vshrl.u32 %v2901, 7
          %v2903 = vsub.s32 %v2900, %v2902
          %v2904 = vrot.slane %v2823, %v2903
          %v2906 = vunpack.c.l.s4 1966171168
          %v2907 = vunpack.c.0.s8 %v2906
          %v2908 = vlaneseq
          %v2909 = vshrl.u32 %v2908, 7
          %v2910 = vsub.s32 %v2907, %v2909
          %v2911 = vrot.slane %v2897, %v2910
          %v2912 = vcombine.high %v2904, %v2904
          %v2913 = vcombine.high %v2911, %v2911
          %v2915 = vunpack.c.l.s4 1966171168
          %v2916 = vunpack.c.0.s8 %v2915
          %v2917 = vlaneseq
          %v2918 = vshrl.u32 %v2917, 7
          %v2919 = vsub.s32 %v2916, %v2918
          %v2920 = vrot.slane %v2904, %v2919
          %v2922 = vunpack.c.l.s4 1966171168
          %v2923 = vunpack.c.0.s8 %v2922
          %v2924 = vlaneseq
          %v2925 = vshrl.u32 %v2924, 7
          %v2926 = vsub.s32 %v2923, %v2925
          %v2927 = vrot.slane %v2911, %v2926
          %v2929 = vunpack.c.l.s4 1966171168
          %v2930 = vunpack.c.0.s8 %v2929
          %v2931 = vlaneseq
          %v2932 = vshrl.u32 %v2931, 7
          %v2933 = vsub.s32 %v2930, %v2932
          %v2934 = vrot.slane %v2912, %v2933
          %v2936 = vunpack.c.l.s4 1966171168
          %v2937 = vunpack.c.0.s8 %v2936
          %v2938 = vlaneseq
          %v2939 = vshrl.u32 %v2938, 7
          %v2940 = vsub.s32 %v2937, %v2939
          %v2941 = vrot.slane %v2913, %v2940
          %v2942 = vcombine.high %v2920, %v2920
          %v2943 = vcombine.high %v2927, %v2927
          %v2944 = vcombine.high %v2934, %v2934
          %v2945 = vcombine.high %v2941, %v2941
          %2954 = vst [vmem:[#allocation2] sm:$0x1] %v2920
          %2955 = vst [vmem:[#allocation2 + $0x8] sm:$0x1] %v2934
          %2956 = vst [vmem:[#allocation2 + $0x10] sm:$0x1] %v2942
          %2957 = vst [vmem:[#allocation2 + $0x18] sm:$0x1] %v2944
          %2958 = vst [vmem:[#allocation2 + $0x20] sm:$0x1] %v2927
          %2959 = vst [vmem:[#allocation2 + $0x28] sm:$0x1] %v2941
          %2960 = vst [vmem:[#allocation2 + $0x30] sm:$0x1] %v2943
          %2961 = vst [vmem:[#allocation2 + $0x38] sm:$0x1] %v2945
        $region100: #{encoder_forward.1} parent=31 // pred_fallthru
          _
        %v2962 = vld [vmem:[#allocation2] sm:$0xff]
        %v2963 = vld [vmem:[#allocation2 + $0x8] sm:$0xff]
        %v2964 = vld [vmem:[#allocation2 + $0x10] sm:$0xff]
        %v2965 = vld [vmem:[#allocation2 + $0x18] sm:$0xff]
        %v2966 = vld [vmem:[#allocation2 + $0x20] sm:$0xff]
        %v2967 = vld [vmem:[#allocation2 + $0x28] sm:$0xff]
        %v2968 = vld [vmem:[#allocation2 + $0x30] sm:$0xff]
        %v2969 = vld [vmem:[#allocation2 + $0x38] sm:$0xff]
        %2970 = vst [vmem:[%s264] sm:$0xff] %v2962
        %2971 = vst [vmem:[%s264 + $0x8] sm:$0xff] %v2963
        %2972 = vst [vmem:[%s264 + $0x10] sm:$0xff] %v2964
        %2973 = vst [vmem:[%s264 + $0x18] sm:$0xff] %v2965
        %2974 = vst [vmem:[%s264 + $0x20] sm:$0xff] %v2966
        %2975 = vst [vmem:[%s264 + $0x28] sm:$0xff] %v2967
        %2976 = vst [vmem:[%s264 + $0x30] sm:$0xff] %v2968
        %2977 = vst [vmem:[%s264 + $0x38] sm:$0xff] %v2969
        %p2978 = scmp.eq.s32.totalorder %s22, 1
        // Predicated region
        $region101: #{encoder_forward.1} parent=31 // pred_check
          %p2979 = pneg %p2978
        $region102: #{encoder_forward.1} parent=31 // pred_check_branch
          %2981 = sbr.rel (%p2979) target = $region104
        $region103: #{encoder_forward.1} parent=31 // pred_region
          %v2982 = vld [vmem:[#allocation3] sm:$0xff]
          %2983 = vst [vmem:[%s300] sm:$0xff] %v2982
          %v2984 = vld [vmem:[#allocation4] sm:$0xff]
          %2985 = vst [vmem:[%s304] sm:$0xff] %v2984
        $region104: #{encoder_forward.1} parent=31 // pred_fallthru
          _
        %s2986 = sand.u32 %s122, 1
        %s2987 = sand.u32 %s122, 1
        %s2988 = smul.addr %s2987, 64
        %s2989 = scalar_lea.vmem [#allocation5], %s2988
        %p2990 = scmp.lt.s32.totalorder %s21, 1
        %s2991 = scalar_select %p2990, %s21, 1
        %s2992 = smul.addr %s2991, 8
        %s2993 = scalar_lea.vmem %s4, %s2992
        %p2994 = scmp.lt.s32.totalorder %s21, 1
        %s2995 = scalar_select %p2994, %s21, 1
        %s2996 = smul.addr %s2995, 8
        %s2997 = scalar_lea.vmem %s5, %s2996
        // Predicated region
        $region105: #{encoder_forward.1} parent=31 // pred_check
          %p2998 = pneg %p132
        $region106: #{encoder_forward.1} parent=31 // pred_check_branch
          %3000 = sbr.rel (%p2998) target = $region108
        $region107: #{encoder_forward.1} parent=31 // pred_region
          %s3001 = smul.u32 %s22, 2
          %s3002 = ssub.s32 1, %s3001
          %s3003 = smul.u32 %s21, %s3002
          %s3004 = sadd.s32 %s22, %s3003
          %s3005 = smul.addr %s3004, 2
          %s3006 = sadd.s32 %s21, %s3005
          %s3007 = smul.addr %s3006, 8
          %s3008 = scalar_lea.vmem %s3, %s3007
          // Predicated region
          $region109: #{encoder_forward.1} parent=107 // pred_check
            _
          $region110: #{encoder_forward.1} parent=107 // pred_check_branch
            %3010 = sbr.rel (0) target = $region112
          $region111: #{encoder_forward.1} parent=107 // pred_region
            // Predicated region
            $region113: #{encoder_forward.1} parent=111 // pred_check
              _
            $region114: #{encoder_forward.1} parent=111 // pred_check_branch
              %3012 = sbr.rel (0) target = $region116
            $region115: #{encoder_forward.1} parent=111 // pred_region
              // Predicated region
              $region128: #{encoder_forward.1} parent=115 // pred_check
                _
              $region129: #{encoder_forward.1} parent=115 // pred_check_branch
                %3041 = sbr.rel (0) target = $region131
              $region130: #{encoder_forward.1} parent=115 // pred_region
                loop: start=0, step=1, limit=1
                $region132: #{encoder_forward.1} parent=130 // loop_pre_header
                  _
                $region133: #{encoder_forward.1} parent=130 // loop_header
                  %s3043 = sphi 0, %s3047
                  %p3044 = scmp.ge.s32.totalorder %s3043, 1
                  %s3048 = sphi %s2989, %s2989
                  %s3049 = sphi %s3008, %s3008
                $region134: #{encoder_forward.1} parent=130 // loop_header_branch
                  %3046 = sbr.rel (%p3044) target = $region138
                $region135: #{encoder_forward.1} parent=130 // loop_body
                  %v3050 = vld [vmem:[%s3048] sm:$0xff]
                  %3051 = vst [vmem:[%s3049] sm:$0xff] %v3050
                  %v3052 = vld [vmem:[%s3048 + $0x8] sm:$0xff]
                  %3053 = vst [vmem:[%s3049 + $0x20] sm:$0xff] %v3052
                  %v3054 = vld [vmem:[%s3048 + $0x10] sm:$0xff]
                  %3055 = vst [vmem:[%s3049 + $0x40] sm:$0xff] %v3054
                  %v3056 = vld [vmem:[%s3048 + $0x18] sm:$0xff]
                  %3057 = vst [vmem:[%s3049 + $0x60] sm:$0xff] %v3056
                  %v3058 = vld [vmem:[%s3048 + $0x20] sm:$0xff]
                  %3059 = vst [vmem:[%s3049 + $0x80] sm:$0xff] %v3058
                  %v3060 = vld [vmem:[%s3048 + $0x28] sm:$0xff]
                  %3061 = vst [vmem:[%s3049 + $0xa0] sm:$0xff] %v3060
                  %v3062 = vld [vmem:[%s3048 + $0x30] sm:$0xff]
                  %3063 = vst [vmem:[%s3049 + $0xc0] sm:$0xff] %v3062
                  %v3064 = vld [vmem:[%s3048 + $0x38] sm:$0xff]
                  %3065 = vst [vmem:[%s3049 + $0xe0] sm:$0xff] %v3064
                $region136: #{encoder_forward.1} parent=130 // loop_footer
                  %s3047 = sadd.s32 1, %s3043
                $region137: #{encoder_forward.1} parent=130 // loop_footer_branch
                  %3042 = sbr.rel target = $region133
                $region138: #{encoder_forward.1} parent=130 // loop_exit
                  _
              $region131: #{encoder_forward.1} parent=115 // pred_fallthru
                _
              // Predicated region
              $region139: #{encoder_forward.1} parent=115 // pred_check
                _
              $region140: #{encoder_forward.1} parent=115 // pred_check_branch
                %3067 = sbr.rel target = $region142
              $region141: #{encoder_forward.1} parent=115 // pred_region
                _
              $region142: #{encoder_forward.1} parent=115 // pred_fallthru
                _
            $region116: #{encoder_forward.1} parent=111 // pred_fallthru
              _
            // Predicated region
            $region117: #{encoder_forward.1} parent=111 // pred_check
              _
            $region118: #{encoder_forward.1} parent=111 // pred_check_branch
              %3014 = sbr.rel target = $region120
            $region119: #{encoder_forward.1} parent=111 // pred_region
              loop: start=0, step=1, limit=1
              $region121: #{encoder_forward.1} parent=119 // loop_pre_header
                _
              $region122: #{encoder_forward.1} parent=119 // loop_header
                %s3017 = sphi 0, %s3021
                %p3018 = scmp.ge.s32.totalorder %s3017, 1
                %s3022 = sphi %s2989, %s2989
                %s3023 = sphi %s3008, %s3008
              $region123: #{encoder_forward.1} parent=119 // loop_header_branch
                %3020 = sbr.rel (%p3018) target = $region127
              $region124: #{encoder_forward.1} parent=119 // loop_body
                %v3024 = vld [vmem:[%s3022] sm:$0xff]
                %3025 = vst [vmem:[%s3023] sm:$0xff] %v3024
                %v3026 = vld [vmem:[%s3022 + $0x8] sm:$0xff]
                %3027 = vst [vmem:[%s3023 + $0x20] sm:$0xff] %v3026
                %v3028 = vld [vmem:[%s3022 + $0x10] sm:$0xff]
                %3029 = vst [vmem:[%s3023 + $0x40] sm:$0xff] %v3028
                %v3030 = vld [vmem:[%s3022 + $0x18] sm:$0xff]
                %3031 = vst [vmem:[%s3023 + $0x60] sm:$0xff] %v3030
                %v3032 = vld [vmem:[%s3022 + $0x20] sm:$0xff]
                %3033 = vst [vmem:[%s3023 + $0x80] sm:$0xff] %v3032
                %v3034 = vld [vmem:[%s3022 + $0x28] sm:$0xff]
                %3035 = vst [vmem:[%s3023 + $0xa0] sm:$0xff] %v3034
                %v3036 = vld [vmem:[%s3022 + $0x30] sm:$0xff]
                %3037 = vst [vmem:[%s3023 + $0xc0] sm:$0xff] %v3036
                %v3038 = vld [vmem:[%s3022 + $0x38] sm:$0xff]
                %3039 = vst [vmem:[%s3023 + $0xe0] sm:$0xff] %v3038
              $region125: #{encoder_forward.1} parent=119 // loop_footer
                %s3021 = sadd.s32 1, %s3017
              $region126: #{encoder_forward.1} parent=119 // loop_footer_branch
                %3016 = sbr.rel target = $region122
              $region127: #{encoder_forward.1} parent=119 // loop_exit
                _
            $region120: #{encoder_forward.1} parent=111 // pred_fallthru
              _
          $region112: #{encoder_forward.1} parent=107 // pred_fallthru
            _
          %3068 = vnop
        $region108: #{encoder_forward.1} parent=31 // pred_fallthru
          _
        // Predicated region
        $region143: #{encoder_forward.1} parent=31 // pred_check
          %p3069 = pneg %p158
        $region144: #{encoder_forward.1} parent=31 // pred_check_branch
          %3071 = sbr.rel (%p3069) target = $region146
        $region145: #{encoder_forward.1} parent=31 // pred_region
          _
        $region146: #{encoder_forward.1} parent=31 // pred_fallthru
          _
        // Predicated region
        $region147: #{encoder_forward.1} parent=31 // pred_check
          %p3072 = pneg %p184
        $region148: #{encoder_forward.1} parent=31 // pred_check_branch
          %3074 = sbr.rel (%p3072) target = $region150
        $region149: #{encoder_forward.1} parent=31 // pred_region
          _
        $region150: #{encoder_forward.1} parent=31 // pred_fallthru
          _
      $region32: #{encoder_forward.1} parent=5 // pred_fallthru
        _
      %p3075 = scmp.le.s32.totalorder 2, %s12
      // Predicated region
      $region151: #{encoder_forward.1} parent=5 // pred_check
        %p3076 = pneg %p3075
      $region152: #{encoder_forward.1} parent=5 // pred_check_branch
        %3078 = sbr.rel (%p3076) target = $region154
      $region153: #{encoder_forward.1} parent=5 // pred_region
        %s3079 = ssub.s32 %s12, 2
        // Predicated region
        $region155: #{encoder_forward.1} parent=153 // pred_check
          %p3080 = pneg %p138
        $region156: #{encoder_forward.1} parent=153 // pred_check_branch
          %3082 = sbr.rel (%p3080) target = $region158
        $region157: #{encoder_forward.1} parent=153 // pred_region
          %s3083 = sand.u32 %s123, 1
          %s3084 = sand.u32 %s123, 1
          %s3085 = smul.addr %s3084, 64
          %s3086 = scalar_lea.vmem [#allocation5], %s3085
        $region158: #{encoder_forward.1} parent=153 // pred_fallthru
          _
        // Predicated region
        $region159: #{encoder_forward.1} parent=153 // pred_check
          %p3087 = pneg %p164
        $region160: #{encoder_forward.1} parent=153 // pred_check_branch
          %3089 = sbr.rel (%p3087) target = $region162
        $region161: #{encoder_forward.1} parent=153 // pred_region
          %p3090 = scmp.lt.s32.totalorder %s23, 1
          %s3091 = scalar_select %p3090, %s23, 1
          %s3092 = smul.addr %s3091, 8
          %s3093 = scalar_lea.vmem %s4, %s3092
        $region162: #{encoder_forward.1} parent=153 // pred_fallthru
          _
        // Predicated region
        $region163: #{encoder_forward.1} parent=153 // pred_check
          %p3094 = pneg %p190
        $region164: #{encoder_forward.1} parent=153 // pred_check_branch
          %3096 = sbr.rel (%p3094) target = $region166
        $region165: #{encoder_forward.1} parent=153 // pred_region
          %p3097 = scmp.lt.s32.totalorder %s23, 1
          %s3098 = scalar_select %p3097, %s23, 1
          %s3099 = smul.addr %s3098, 8
          %s3100 = scalar_lea.vmem %s5, %s3099
        $region166: #{encoder_forward.1} parent=153 // pred_fallthru
          _
      $region154: #{encoder_forward.1} parent=5 // pred_fallthru
        _
    $region6: #{encoder_forward.1} parent=1 // loop_footer
      %s16 = sadd.s32 1, %s12
    $region7: #{encoder_forward.1} parent=1 // loop_footer_branch
      %11 = sbr.rel target = $region3
    $region8: #{encoder_forward.1} parent=1 // loop_exit
      _

</llo_original>
